<compile_context>
chip_gen: v7x
topology: tpu7x:2x2x1
jax: 0.10.0
libtpu: 0.0.40
codegen_flags: <defaults>
</compile_context>

<pallas_src>
import functools
import math

import jax
import jax.numpy as jnp
import numpy as np
from jax.experimental import pallas as pl
from jax.experimental.pallas import tpu as pltpu

_VMEM_LIMIT = 32 * 1024 * 1024  # safe on v5e/v6e/v7x; tiles below use ~2-4 MiB


def _pick_tile(total, candidates):
    """Largest candidate tile that divides `total`; otherwise the full extent."""
    for t in candidates:
        if total >= t and total % t == 0:
            return t
    return total


# ----------------------------- kernels ------------------------------------ #

def _qkv_proj_kernel(w_ref, b_ref, x_ref, q_ref, k_ref, v_ref, *, nhk, kd):
    # Fused, BN-folded (and attn-scale-folded) 1x1-conv projections for Q, K, V on
    # one (batch, HW-tile): (NHK + 2*Kd, Cin) @ (Cin, T) + per-channel bias.
    qkv = jnp.dot(w_ref[...], x_ref[0], preferred_element_type=jnp.float32)
    qkv = qkv + b_ref[...]                      # (QKVC, 1) broadcast over lanes
    q_ref[0] = qkv[:nhk].astype(q_ref.dtype)
    k_ref[0] = qkv[nhk:nhk + kd].astype(k_ref.dtype)
    v_ref[0] = qkv[nhk + kd:].astype(v_ref.dtype)


def _mqa_flash_kernel(q_ref, k_ref, v_ref, o_ref, m_sc, l_sc, acc_sc):
    # Online-softmax multi-query attention; heads collapsed into q rows (K/V shared).
    # q: (1, Tq, Kd), k: (1, Kd, Tk), v: (1, Tk, Kd); 1/sqrt(head_dim) folded into q.
    ki = pl.program_id(2)

    @pl.when(ki == 0)
    def _():
        m_sc[...] = jnp.full_like(m_sc, -jnp.inf)
        l_sc[...] = jnp.zeros_like(l_sc)
        acc_sc[...] = jnp.zeros_like(acc_sc)

    s = jnp.dot(q_ref[0], k_ref[0], preferred_element_type=jnp.float32)
    m_new = jnp.maximum(m_sc[...], jnp.max(s, axis=-1, keepdims=True))
    alpha = jnp.exp(m_sc[...] - m_new)
    p = jnp.exp(s - m_new)
    l_sc[...] = alpha * l_sc[...] + jnp.sum(p, axis=-1, keepdims=True)
    acc_sc[...] = alpha * acc_sc[...] + jnp.dot(
        p.astype(v_ref.dtype), v_ref[0], preferred_element_type=jnp.float32)
    m_sc[...] = m_new

    @pl.when(ki == pl.num_programs(2) - 1)
    def _():
        # TODO(synk): output block is lane-sparse (last dim = key_dim); a lane-dense
        # transposed (Kd, heads*S) result would need a host-side permutation that
        # conflicts with the module's reshape(-not-transpose) semantics.
        o_ref[0] = (acc_sc[...] *
                    pl.reciprocal(l_sc[...], approx=True)).astype(o_ref.dtype)


def _out_proj_kernel(w_ref, ctx_ref, sc_ref, o_ref):
    # Output 1x1 conv (LayerScale folded into w) + fused residual add.
    o_ref[0] = (jnp.dot(w_ref[...], ctx_ref[0], preferred_element_type=jnp.float32)
                + sc_ref[0])


def _out_proj_kernel_nores(w_ref, ctx_ref, o_ref):
    o_ref[0] = jnp.dot(w_ref[...], ctx_ref[0],
                       preferred_element_type=jnp.float32).astype(o_ref.dtype)


# ----------------------------- wrappers ------------------------------------ #

def qkv_projection(w_qkv, b_qkv, x3, nhk, kd, *, hw_tile=None):
    # x3: (N, Cin, HW) -> q (N, NHK, HW), k (N, Kd, HW), v (N, Kd, HW)
    N, C, HW = x3.shape
    qkvc = w_qkv.shape[0]
    t = hw_tile or _pick_tile(HW, (512, 256, 128))
    dt = x3.dtype
    kern = functools.partial(_qkv_proj_kernel, nhk=nhk, kd=kd)
    bytes_acc = int(w_qkv.size * w_qkv.dtype.itemsize + b_qkv.size * 4
                    + x3.size * dt.itemsize + N * qkvc * HW * dt.itemsize)
    return pl.pallas_call(
        kern,
        out_shape=(jax.ShapeDtypeStruct((N, nhk, HW), dt),
                   jax.ShapeDtypeStruct((N, kd, HW), dt),
                   jax.ShapeDtypeStruct((N, kd, HW), dt)),
        grid=(N, HW // t),
        in_specs=[pl.BlockSpec((qkvc, C), lambda b, h: (0, 0)),
                  pl.BlockSpec((qkvc, 1), lambda b, h: (0, 0)),
                  pl.BlockSpec((1, C, t), lambda b, h: (b, 0, h))],
        out_specs=(pl.BlockSpec((1, nhk, t), lambda b, h: (b, 0, h)),
                   pl.BlockSpec((1, kd, t), lambda b, h: (b, 0, h)),
                   pl.BlockSpec((1, kd, t), lambda b, h: (b, 0, h))),
        compiler_params=pltpu.CompilerParams(
            dimension_semantics=("parallel", "parallel"),
            vmem_limit_bytes=_VMEM_LIMIT),
        cost_estimate=pl.CostEstimate(flops=2 * N * qkvc * C * HW,
                                      transcendentals=0,
                                      bytes_accessed=bytes_acc),
    )(w_qkv, b_qkv, x3)


def mqa_attention(q_r, k, v_r, *, tq=None, tk=None):
    # q_r: (N, heads*S, Kd), k: (N, Kd, S), v_r: (N, S, Kd) -> (N, heads*S, Kd)
    # Grid: (batch, q-row tiles, KV tiles); only the KV axis is a reduction.
    N, HS, Kd = q_r.shape
    S = k.shape[-1]
    tq = tq or _pick_tile(HS, (512, 256, 128, 64, 32, 16, 8))
    tk = tk or _pick_tile(S, (512, 256, 128))
    flops = 4 * N * HS * S * Kd          # QK^T + PV
    trans = N * HS * S                   # exp
    bytes_acc = int((q_r.size + k.size + v_r.size + N * HS * Kd)
                    * q_r.dtype.itemsize)
    return pl.pallas_call(
        _mqa_flash_kernel,
        out_shape=jax.ShapeDtypeStruct((N, HS, Kd), q_r.dtype),
        grid=(N, HS // tq, S // tk),
        in_specs=[pl.BlockSpec((1, tq, Kd), lambda b, qi, ki: (b, qi, 0)),
                  pl.BlockSpec((1, Kd, tk), lambda b, qi, ki: (b, 0, ki)),
                  pl.BlockSpec((1, tk, Kd), lambda b, qi, ki: (b, ki, 0))],
        out_specs=pl.BlockSpec((1, tq, Kd), lambda b, qi, ki: (b, qi, 0)),
        scratch_shapes=[pltpu.VMEM((tq, 1), jnp.float32),
                        pltpu.VMEM((tq, 1), jnp.float32),
                        pltpu.VMEM((tq, Kd), jnp.float32)],
        compiler_params=pltpu.CompilerParams(
            dimension_semantics=("parallel", "parallel", "arbitrary"),
            vmem_limit_bytes=_VMEM_LIMIT),
        cost_estimate=pl.CostEstimate(flops=flops, transcendentals=trans,
                                      bytes_accessed=bytes_acc),
    )(q_r, k, v_r)


def output_projection(w_o, ctx3, shortcut=None, *, hw_tile=None):
    # ctx3: (N, NHK, HW) -> (N, C, HW); LayerScale folded into w_o; residual fused
    # and the residual buffer aliased to the output when `shortcut` is given.
    N, NHK, HW = ctx3.shape
    C = w_o.shape[0]
    t = hw_tile or _pick_tile(HW, (512, 256, 128))
    flops = 2 * N * C * NHK * HW
    comp = pltpu.CompilerParams(dimension_semantics=("parallel", "parallel"),
                                vmem_limit_bytes=_VMEM_LIMIT)
    if shortcut is not None:
        bytes_acc = int(w_o.size * w_o.dtype.itemsize
                        + ctx3.size * ctx3.dtype.itemsize
                        + 2 * N * C * HW * 4)
        return pl.pallas_call(
            _out_proj_kernel,
            out_shape=jax.ShapeDtypeStruct((N, C, HW), jnp.float32),
            grid=(N, HW // t),
            in_specs=[pl.BlockSpec((C, NHK), lambda b, h: (0, 0)),
                      pl.BlockSpec((1, NHK, t), lambda b, h: (b, 0, h)),
                      pl.BlockSpec((1, C, t), lambda b, h: (b, 0, h))],
            out_specs=pl.BlockSpec((1, C, t), lambda b, h: (b, 0, h)),
            input_output_aliases={2: 0},      # residual buffer reused for the output
            compiler_params=comp,
            cost_estimate=pl.CostEstimate(flops=flops, transcendentals=0,
                                          bytes_accessed=bytes_acc),
        )(w_o, ctx3, shortcut)
    bytes_acc = int(w_o.size * w_o.dtype.itemsize
                    + ctx3.size * ctx3.dtype.itemsize + N * C * HW * 4)
    return pl.pallas_call(
        _out_proj_kernel_nores,
        out_shape=jax.ShapeDtypeStruct((N, C, HW), jnp.float32),
        grid=(N, HW // t),
        in_specs=[pl.BlockSpec((C, NHK), lambda b, h: (0, 0)),
                  pl.BlockSpec((1, NHK, t), lambda b, h: (b, 0, h))],
        out_specs=pl.BlockSpec((1, C, t), lambda b, h: (b, 0, h)),
        compiler_params=comp,
        cost_estimate=pl.CostEstimate(flops=flops, transcendentals=0,
                                      bytes_accessed=bytes_acc),
    )(w_o, ctx3)


def mhsa_block_forward(x, params, *, num_heads, key_dim,
                       use_layer_scale=True, use_residual=True,
                       layer_scale_init=1e-5, bn_eps=1e-5,
                       compute_dtype=jnp.bfloat16):
    # TODO(synk): query_h/w_strides > 1 and kv_strides > 1 downsampling paths
    # (avg-pool / depthwise conv) and the use_multi_query=False nn.MultiheadAttention
    # path are not implemented; strides fixed to 1.  NOTE: value_dim of the reference
    # module is unused because _value_proj outputs key_dim channels (as written).
    N, C, H, W = x.shape
    HW = H * W
    nhk = num_heads * key_dim
    head_dim = key_dim // num_heads
    x3 = x.reshape(N, C, HW).astype(jnp.float32)        # row-major bitcast

    # ---- exact host-side folding (tiny, fused by XLA) ----
    # BatchNorm (inference): xn = x*scale + shift, folded into the 1x1 convs:
    #   (w * scale[None,:]) @ x + (w @ shift)[:, None]
    # 1/sqrt(head_dim) attention scale folded into the q rows (weights AND bias).
    scale = params["bn_gamma"] / jnp.sqrt(params["bn_var"] + bn_eps)
    shift = params["bn_beta"] - params["bn_mean"] * scale
    attn_scale = 1.0 / math.sqrt(head_dim)
    w_qkv = jnp.concatenate([params["w_q"] * attn_scale,
                             params["w_k"], params["w_v"]], axis=0)
    w_qkv_eff = (w_qkv * scale[None, :]).astype(compute_dtype)
    b_qkv = (w_qkv @ shift).reshape(-1, 1).astype(jnp.float32)
    # LayerScale gamma = init * ones(W) -> scalar; output conv has no bias.
    w_o_eff = (params["w_o"] * (layer_scale_init if use_layer_scale else 1.0)
               ).astype(compute_dtype)

    # ---- kernel 1: fused BN + scaled QKV projection (one matmul per tile) ----
    x3_c = x3.astype(compute_dtype)
    q, k, v = qkv_projection(w_qkv_eff, b_qkv, x3_c, nhk, key_dim)

    # Row-major reinterpretations (free bitcasts), exactly the PyTorch .reshape:
    q_r = q.reshape(N, num_heads * HW, key_dim)   # (bs, nh, HW, kd) collapsed
    v_r = v.reshape(N, HW, key_dim)               # (bs, 1, HW, kd)

    # ---- kernel 2: flash-style multi-query attention ----
    ctx = mqa_attention(q_r, k, v_r)              # (N, num_heads*HW, key_dim)
    ctx3 = ctx.reshape(N, nhk, HW)                # == .view(bs, nh*kd, px, px)

    # ---- kernel 3: output projection (+LayerScale folded) + fused residual ----
    shortcut = x3 if use_residual else None
    out = output_projection(w_o_eff, ctx3, shortcut)

    return out.reshape(N, C, H, W)


# --------------------------- pure-JAX reference ----------------------------- #

def reference_forward(x, params, *, num_heads, key_dim, use_layer_scale=True,
                      use_residual=True, layer_scale_init=1e-5):
    N, C, H, W = x.shape
    eps = 1e-5
    xn = (x - params["bn_mean"][None, :, None, None]) \
         / jnp.sqrt(params["bn_var"] + eps)[None, :, None, None]
    xn = xn * params["bn_gamma"][None, :, None, None] \
         + params["bn_beta"][None, :, None, None]

    def conv1x1(w, t):
        return jnp.einsum('oc,nchw->nohw', w, t)

    q = conv1x1(params["w_q"], xn).reshape(N, num_heads, -1, key_dim)
    k = conv1x1(params["w_k"], xn).reshape(N, 1, key_dim, -1)
    v = conv1x1(params["w_v"], xn).reshape(N, 1, -1, key_dim)
    head_dim = key_dim // num_heads
    s = jnp.matmul(q, k) / float(head_dim) ** 0.5
    p = jax.nn.softmax(s, axis=-1)
    ctx = jnp.matmul(p, v).reshape(N, num_heads * key_dim, H, W)
    out = conv1x1(params["w_o"], ctx)
    if use_layer_scale:
        out = out * layer_scale_init
    if use_residual:
        out = out + x
    return out


# ------------------------------- main --------------------------------------- #

if __name__ == "__main__":
    key = jax.random.PRNGKey(0)
    N, C, H, W = 2, 16, 16, 16
    num_heads, key_dim, value_dim = 4, 16, 16

    ks = jax.random.split(key, 9)
    x = jax.random.normal(ks[0], (N, C, H, W), jnp.float32)
    params = {
        "bn_gamma": 1.0 + 0.1 * jax.random.normal(ks[1], (C,), jnp.float32),
        "bn_beta": 0.1 * jax.random.normal(ks[2], (C,), jnp.float32),
        "bn_mean": 0.1 * jax.random.normal(ks[3], (C,), jnp.float32),
        "bn_var": jnp.abs(jax.random.normal(ks[4], (C,), jnp.float32)) + 0.5,
        "w_q": 0.1 * jax.random.normal(ks[5], (num_heads * key_dim, C), jnp.float32),
        "w_k": 0.1 * jax.random.normal(ks[6], (key_dim, C), jnp.float32),
        # NOTE: reference _value_proj also outputs key_dim channels (as written).
        "w_v": 0.1 * jax.random.normal(ks[7], (key_dim, C), jnp.float32),
        "w_o": 0.1 * jax.random.normal(ks[8], (C, num_heads * key_dim), jnp.float32),
    }

    # Check 1: exact module config (bf16 MXU path, LayerScale + residual).
    fwd = jax.jit(functools.partial(mhsa_block_forward,
                                    num_heads=num_heads, key_dim=key_dim))
    out = jax.block_until_ready(fwd(x, params))
    ref = reference_forward(x, params, num_heads=num_heads, key_dim=key_dim)
    np.testing.assert_allclose(np.asarray(out), np.asarray(ref),
                               atol=1e-4, rtol=1e-4)

    # Check 2: attention path in f32 (LayerScale off so the attention output is not
    # attenuated by 1e-5) — tight tolerance validates the online-softmax tiling.
    fwd_f32 = jax.jit(functools.partial(mhsa_block_forward,
                                        num_heads=num_heads, key_dim=key_dim,
                                        use_layer_scale=False,
                                        compute_dtype=jnp.float32))
    out2 = jax.block_until_ready(fwd_f32(x, params))
    ref2 = reference_forward(x, params, num_heads=num_heads, key_dim=key_dim,
                             use_layer_scale=False)
    np.testing.assert_allclose(np.asarray(out2), np.asarray(ref2),
                               atol=1e-3, rtol=1e-3)

    print("KERNEL_OK")
</pallas_src>

<mosaic_0001>
module attributes {stable_mosaic.version = 11 : i64} {
  func.func @_qkv_proj_kernel(%arg0: i32, %arg1: i32, %arg2: memref<96x16xbf16, #tpu.memory_space<vmem>>, %arg3: memref<96x1xf32, #tpu.memory_space<vmem>>, %arg4: memref<1x16x256xbf16, #tpu.memory_space<vmem>>, %arg5: memref<1x64x256xbf16, #tpu.memory_space<vmem>>, %arg6: memref<1x16x256xbf16, #tpu.memory_space<vmem>>, %arg7: memref<1x16x256xbf16, #tpu.memory_space<vmem>>) attributes {dimension_semantics = [#tpu.dimension_semantics<parallel>, #tpu.dimension_semantics<parallel>], iteration_bounds = array<i64: 2, 1>, scalar_prefetch = 0 : i64, scratch_operands = 0 : i64, tpu.core_type = #tpu.core_type<tc>, window_params = [{pipeline_mode = #tpu.pipeline_mode<synchronous>, transform_indices = @transform_0, window_bounds = array<i64: 96, 16>}, {pipeline_mode = #tpu.pipeline_mode<synchronous>, transform_indices = @transform_1, window_bounds = array<i64: 96, 1>}, {transform_indices = @transform_2, window_bounds = array<i64: 1, 16, 256>}, {transform_indices = @transform_3, window_bounds = array<i64: 1, 64, 256>}, {transform_indices = @transform_4, window_bounds = array<i64: 1, 16, 256>}, {transform_indices = @transform_5, window_bounds = array<i64: 1, 16, 256>}]} {
    %c0 = arith.constant 0 : index
    %c0_0 = arith.constant 0 : index
    %0 = vector.load %arg2[%c0, %c0_0] : memref<96x16xbf16, #tpu.memory_space<vmem>>, vector<96x16xbf16>
    %c0_1 = arith.constant 0 : index
    %c0_2 = arith.constant 0 : index
    %c0_3 = arith.constant 0 : index
    %1 = vector.load %arg4[%c0_1, %c0_2, %c0_3] : memref<1x16x256xbf16, #tpu.memory_space<vmem>>, vector<1x16x256xbf16>
    %2 = vector.shape_cast %1 : vector<1x16x256xbf16> to vector<16x256xbf16>
    %cst = arith.constant dense<0.000000e+00> : vector<96x256xf32>
    %3 = tpu.matmul %0, %2, %cst {dimension_numbers = #tpu.dot_dimension_numbers<[1], [0], [0], [1], [0, 0, 1, 1], [], []>} : vector<96x16xbf16>, vector<16x256xbf16>, vector<96x256xf32> -> vector<96x256xf32>
    %c0_4 = arith.constant 0 : index
    %c0_5 = arith.constant 0 : index
    %4 = vector.load %arg3[%c0_4, %c0_5] : memref<96x1xf32, #tpu.memory_space<vmem>>, vector<96x1xf32>
    %5 = vector.broadcast %4 : vector<96x1xf32> to vector<96x256xf32>
    %6 = arith.addf %3, %5 : vector<96x256xf32>
    %7 = vector.extract_strided_slice %6 {offsets = [0, 0], sizes = [64, 256], strides = [1, 1]} : vector<96x256xf32> to vector<64x256xf32>
    %8 = arith.truncf %7 : vector<64x256xf32> to vector<64x256xbf16>
    %c0_6 = arith.constant 0 : index
    %c0_7 = arith.constant 0 : index
    %c0_8 = arith.constant 0 : index
    %9 = vector.load %arg5[%c0_6, %c0_7, %c0_8] : memref<1x64x256xbf16, #tpu.memory_space<vmem>>, vector<1x64x256xbf16>
    %10 = vector.shape_cast %9 : vector<1x64x256xbf16> to vector<64x256xbf16>
    %11 = vector.shape_cast %8 : vector<64x256xbf16> to vector<1x64x256xbf16>
    tpu.vector_store %arg5[%c0_6, %c0_7, %c0_8], %11 {strides = array<i32>} : memref<1x64x256xbf16, #tpu.memory_space<vmem>>, vector<1x64x256xbf16>,
    %12 = vector.extract_strided_slice %6 {offsets = [64, 0], sizes = [16, 256], strides = [1, 1]} : vector<96x256xf32> to vector<16x256xf32>
    %13 = arith.truncf %12 : vector<16x256xf32> to vector<16x256xbf16>
    %c0_9 = arith.constant 0 : index
    %c0_10 = arith.constant 0 : index
    %c0_11 = arith.constant 0 : index
    %14 = vector.load %arg6[%c0_9, %c0_10, %c0_11] : memref<1x16x256xbf16, #tpu.memory_space<vmem>>, vector<1x16x256xbf16>
    %15 = vector.shape_cast %14 : vector<1x16x256xbf16> to vector<16x256xbf16>
    %16 = vector.shape_cast %13 : vector<16x256xbf16> to vector<1x16x256xbf16>
    tpu.vector_store %arg6[%c0_9, %c0_10, %c0_11], %16 {strides = array<i32>} : memref<1x16x256xbf16, #tpu.memory_space<vmem>>, vector<1x16x256xbf16>,
    %17 = vector.extract_strided_slice %6 {offsets = [80, 0], sizes = [16, 256], strides = [1, 1]} : vector<96x256xf32> to vector<16x256xf32>
    %18 = arith.truncf %17 : vector<16x256xf32> to vector<16x256xbf16>
    %c0_12 = arith.constant 0 : index
    %c0_13 = arith.constant 0 : index
    %c0_14 = arith.constant 0 : index
    %19 = vector.load %arg7[%c0_12, %c0_13, %c0_14] : memref<1x16x256xbf16, #tpu.memory_space<vmem>>, vector<1x16x256xbf16>
    %20 = vector.shape_cast %19 : vector<1x16x256xbf16> to vector<16x256xbf16>
    %21 = vector.shape_cast %18 : vector<16x256xbf16> to vector<1x16x256xbf16>
    tpu.vector_store %arg7[%c0_12, %c0_13, %c0_14], %21 {strides = array<i32>} : memref<1x16x256xbf16, #tpu.memory_space<vmem>>, vector<1x16x256xbf16>,
    return
  }
  func.func @transform_0(%arg0: i32, %arg1: i32) -> (i32, i32) {
    %c0_i32 = arith.constant 0 : i32
    %c0_i32_0 = arith.constant 0 : i32
    %c0_i32_1 = arith.constant 0 : i32
    return %c0_i32, %c0_i32_0 : i32, i32
  }
  func.func @transform_1(%arg0: i32, %arg1: i32) -> (i32, i32) {
    %c0_i32 = arith.constant 0 : i32
    %c0_i32_0 = arith.constant 0 : i32
    %c0_i32_1 = arith.constant 0 : i32
    return %c0_i32, %c0_i32_0 : i32, i32
  }
  func.func @transform_2(%arg0: i32, %arg1: i32) -> (i32, i32, i32) {
    %c0_i32 = arith.constant 0 : i32
    %c0_i32_0 = arith.constant 0 : i32
    return %arg0, %c0_i32, %arg1 : i32, i32, i32
  }
  func.func @transform_3(%arg0: i32, %arg1: i32) -> (i32, i32, i32) {
    %c0_i32 = arith.constant 0 : i32
    %c0_i32_0 = arith.constant 0 : i32
    return %arg0, %c0_i32, %arg1 : i32, i32, i32
  }
  func.func @transform_4(%arg0: i32, %arg1: i32) -> (i32, i32, i32) {
    %c0_i32 = arith.constant 0 : i32
    %c0_i32_0 = arith.constant 0 : i32
    return %arg0, %c0_i32, %arg1 : i32, i32, i32
  }
  func.func @transform_5(%arg0: i32, %arg1: i32) -> (i32, i32, i32) {
    %c0_i32 = arith.constant 0 : i32
    %c0_i32_0 = arith.constant 0 : i32
    return %arg0, %c0_i32, %arg1 : i32, i32, i32
  }
}

module attributes {stable_mosaic.version = 11 : i64} {
  func.func @_mqa_flash_kernel(%arg0: i32, %arg1: i32, %arg2: i32, %arg3: memref<1x512x16xbf16, #tpu.memory_space<vmem>>, %arg4: memref<1x16x256xbf16, #tpu.memory_space<vmem>>, %arg5: memref<1x256x16xbf16, #tpu.memory_space<vmem>>, %arg6: memref<1x512x16xbf16, #tpu.memory_space<vmem>>, %arg7: memref<512x1xf32, #tpu.memory_space<vmem>>, %arg8: memref<512x1xf32, #tpu.memory_space<vmem>>, %arg9: memref<512x16xf32, #tpu.memory_space<vmem>>) attributes {dimension_semantics = [#tpu.dimension_semantics<parallel>, #tpu.dimension_semantics<parallel>, #tpu.dimension_semantics<arbitrary>], iteration_bounds = array<i64: 2, 2, 1>, scalar_prefetch = 0 : i64, scratch_operands = 3 : i64, tpu.core_type = #tpu.core_type<tc>, window_params = [{transform_indices = @transform_0, window_bounds = array<i64: 1, 512, 16>}, {transform_indices = @transform_1, window_bounds = array<i64: 1, 16, 256>}, {transform_indices = @transform_2, window_bounds = array<i64: 1, 256, 16>}, {transform_indices = @transform_3, window_bounds = array<i64: 1, 512, 16>}]} {
    %c0_i32 = arith.constant 0 : i32
    %0 = arith.cmpi eq, %arg2, %c0_i32 : i32
    %1 = arith.extui %0 : i1 to i32
    %c0_i32_0 = arith.constant 0 : i32
    %2 = arith.cmpi ne, %1, %c0_i32_0 : i32
    scf.if %2 {
      %cst_28 = arith.constant 0xFF800000 : f32
      %37 = vector.broadcast %cst_28 : f32 to vector<512x1xf32>
      %c0_29 = arith.constant 0 : index
      %c0_30 = arith.constant 0 : index
      %38 = vector.load %arg7[%c0_29, %c0_30] : memref<512x1xf32, #tpu.memory_space<vmem>>, vector<512x1xf32>
      tpu.vector_store %arg7[%c0_29, %c0_30], %37 {strides = array<i32>} : memref<512x1xf32, #tpu.memory_space<vmem>>, vector<512x1xf32>,
      %cst_31 = arith.constant 0.000000e+00 : f32
      %39 = vector.broadcast %cst_31 : f32 to vector<512x1xf32>
      %c0_32 = arith.constant 0 : index
      %c0_33 = arith.constant 0 : index
      %40 = vector.load %arg8[%c0_32, %c0_33] : memref<512x1xf32, #tpu.memory_space<vmem>>, vector<512x1xf32>
      tpu.vector_store %arg8[%c0_32, %c0_33], %39 {strides = array<i32>} : memref<512x1xf32, #tpu.memory_space<vmem>>, vector<512x1xf32>,
      %cst_34 = arith.constant 0.000000e+00 : f32
      %41 = vector.broadcast %cst_34 : f32 to vector<512x16xf32>
      %c0_35 = arith.constant 0 : index
      %c0_36 = arith.constant 0 : index
      %42 = vector.load %arg9[%c0_35, %c0_36] : memref<512x16xf32, #tpu.memory_space<vmem>>, vector<512x16xf32>
      tpu.vector_store %arg9[%c0_35, %c0_36], %41 {strides = array<i32>} : memref<512x16xf32, #tpu.memory_space<vmem>>, vector<512x16xf32>,
    } else {
    }
    %c0 = arith.constant 0 : index
    %c0_1 = arith.constant 0 : index
    %c0_2 = arith.constant 0 : index
    %3 = vector.load %arg3[%c0, %c0_1, %c0_2] : memref<1x512x16xbf16, #tpu.memory_space<vmem>>, vector<1x512x16xbf16>
    %4 = vector.shape_cast %3 : vector<1x512x16xbf16> to vector<512x16xbf16>
    %c0_3 = arith.constant 0 : index
    %c0_4 = arith.constant 0 : index
    %c0_5 = arith.constant 0 : index
    %5 = vector.load %arg4[%c0_3, %c0_4, %c0_5] : memref<1x16x256xbf16, #tpu.memory_space<vmem>>, vector<1x16x256xbf16>
    %6 = vector.shape_cast %5 : vector<1x16x256xbf16> to vector<16x256xbf16>
    %cst = arith.constant dense<0.000000e+00> : vector<512x256xf32>
    %7 = tpu.matmul %4, %6, %cst {dimension_numbers = #tpu.dot_dimension_numbers<[1], [0], [0], [1], [0, 0, 1, 1], [], []>} : vector<512x16xbf16>, vector<16x256xbf16>, vector<512x256xf32> -> vector<512x256xf32>
    %c0_6 = arith.constant 0 : index
    %c0_7 = arith.constant 0 : index
    %8 = vector.load %arg7[%c0_6, %c0_7] : memref<512x1xf32, #tpu.memory_space<vmem>>, vector<512x1xf32>
    %cst_8 = arith.constant dense<0xFF800000> : vector<512xf32>
    %9 = vector.multi_reduction <maximumf>, %7, %cst_8 [1] : vector<512x256xf32> to vector<512xf32>
    %10 = vector.shape_cast %9 : vector<512xf32> to vector<512x1xf32>
    %11 = arith.maximumf %8, %10 : vector<512x1xf32>
    %c0_9 = arith.constant 0 : index
    %c0_10 = arith.constant 0 : index
    %12 = vector.load %arg7[%c0_9, %c0_10] : memref<512x1xf32, #tpu.memory_space<vmem>>, vector<512x1xf32>
    %13 = arith.subf %12, %11 : vector<512x1xf32>
    %14 = math.exp %13 : vector<512x1xf32>
    %15 = vector.broadcast %11 : vector<512x1xf32> to vector<512x256xf32>
    %16 = arith.subf %7, %15 : vector<512x256xf32>
    %17 = math.exp %16 : vector<512x256xf32>
    %c0_11 = arith.constant 0 : index
    %c0_12 = arith.constant 0 : index
    %18 = vector.load %arg8[%c0_11, %c0_12] : memref<512x1xf32, #tpu.memory_space<vmem>>, vector<512x1xf32>
    %19 = arith.mulf %14, %18 : vector<512x1xf32>
    %cst_13 = arith.constant dense<0.000000e+00> : vector<512xf32>
    %20 = vector.multi_reduction <add>, %17, %cst_13 [1] : vector<512x256xf32> to vector<512xf32>
    %21 = vector.shape_cast %20 : vector<512xf32> to vector<512x1xf32>
    %22 = arith.addf %19, %21 : vector<512x1xf32>
    %c0_14 = arith.constant 0 : index
    %c0_15 = arith.constant 0 : index
    %23 = vector.load %arg8[%c0_14, %c0_15] : memref<512x1xf32, #tpu.memory_space<vmem>>, vector<512x1xf32>
    tpu.vector_store %arg8[%c0_14, %c0_15], %22 {strides = array<i32>} : memref<512x1xf32, #tpu.memory_space<vmem>>, vector<512x1xf32>,
    %c0_16 = arith.constant 0 : index
    %c0_17 = arith.constant 0 : index
    %24 = vector.load %arg9[%c0_16, %c0_17] : memref<512x16xf32, #tpu.memory_space<vmem>>, vector<512x16xf32>
    %25 = vector.broadcast %14 : vector<512x1xf32> to vector<512x16xf32>
    %26 = arith.mulf %25, %24 : vector<512x16xf32>
    %27 = arith.truncf %17 : vector<512x256xf32> to vector<512x256xbf16>
    %c0_18 = arith.constant 0 : index
    %c0_19 = arith.constant 0 : index
    %c0_20 = arith.constant 0 : index
    %28 = vector.load %arg5[%c0_18, %c0_19, %c0_20] : memref<1x256x16xbf16, #tpu.memory_space<vmem>>, vector<1x256x16xbf16>
    %29 = vector.shape_cast %28 : vector<1x256x16xbf16> to vector<256x16xbf16>
    %cst_21 = arith.constant dense<0.000000e+00> : vector<512x16xf32>
    %30 = tpu.matmul %27, %29, %cst_21 {dimension_numbers = #tpu.dot_dimension_numbers<[1], [0], [0], [1], [0, 0, 1, 1], [], []>} : vector<512x256xbf16>, vector<256x16xbf16>, vector<512x16xf32> -> vector<512x16xf32>
    %31 = arith.addf %26, %30 : vector<512x16xf32>
    %c0_22 = arith.constant 0 : index
    %c0_23 = arith.constant 0 : index
    %32 = vector.load %arg9[%c0_22, %c0_23] : memref<512x16xf32, #tpu.memory_space<vmem>>, vector<512x16xf32>
    tpu.vector_store %arg9[%c0_22, %c0_23], %31 {strides = array<i32>} : memref<512x16xf32, #tpu.memory_space<vmem>>, vector<512x16xf32>,
    %c0_24 = arith.constant 0 : index
    %c0_25 = arith.constant 0 : index
    %33 = vector.load %arg7[%c0_24, %c0_25] : memref<512x1xf32, #tpu.memory_space<vmem>>, vector<512x1xf32>
    tpu.vector_store %arg7[%c0_24, %c0_25], %11 {strides = array<i32>} : memref<512x1xf32, #tpu.memory_space<vmem>>, vector<512x1xf32>,
    %c0_i32_26 = arith.constant 0 : i32
    %34 = arith.cmpi eq, %arg2, %c0_i32_26 : i32
    %35 = arith.extui %34 : i1 to i32
    %c0_i32_27 = arith.constant 0 : i32
    %36 = arith.cmpi ne, %35, %c0_i32_27 : i32
    scf.if %36 {
      %c0_28 = arith.constant 0 : index
      %c0_29 = arith.constant 0 : index
      %37 = vector.load %arg9[%c0_28, %c0_29] : memref<512x16xf32, #tpu.memory_space<vmem>>, vector<512x16xf32>
      %c0_30 = arith.constant 0 : index
      %c0_31 = arith.constant 0 : index
      %38 = vector.load %arg8[%c0_30, %c0_31] : memref<512x1xf32, #tpu.memory_space<vmem>>, vector<512x1xf32>
      %39 = tpu.reciprocal %38 {approx = true} : vector<512x1xf32> -> vector<512x1xf32>
      %40 = vector.broadcast %39 : vector<512x1xf32> to vector<512x16xf32>
      %41 = arith.mulf %37, %40 : vector<512x16xf32>
      %42 = arith.truncf %41 : vector<512x16xf32> to vector<512x16xbf16>
      %c0_32 = arith.constant 0 : index
      %c0_33 = arith.constant 0 : index
      %c0_34 = arith.constant 0 : index
      %43 = vector.load %arg6[%c0_32, %c0_33, %c0_34] : memref<1x512x16xbf16, #tpu.memory_space<vmem>>, vector<1x512x16xbf16>
      %44 = vector.shape_cast %43 : vector<1x512x16xbf16> to vector<512x16xbf16>
      %45 = vector.shape_cast %42 : vector<512x16xbf16> to vector<1x512x16xbf16>
      tpu.vector_store %arg6[%c0_32, %c0_33, %c0_34], %45 {strides = array<i32>} : memref<1x512x16xbf16, #tpu.memory_space<vmem>>, vector<1x512x16xbf16>,
    } else {
    }
    return
  }
  func.func @transform_0(%arg0: i32, %arg1: i32, %arg2: i32) -> (i32, i32, i32) {
    %c0_i32 = arith.constant 0 : i32
    %c0_i32_0 = arith.constant 0 : i32
    return %arg0, %arg1, %c0_i32 : i32, i32, i32
  }
  func.func @transform_1(%arg0: i32, %arg1: i32, %arg2: i32) -> (i32, i32, i32) {
    %c0_i32 = arith.constant 0 : i32
    %c0_i32_0 = arith.constant 0 : i32
    return %arg0, %c0_i32, %arg2 : i32, i32, i32
  }
  func.func @transform_2(%arg0: i32, %arg1: i32, %arg2: i32) -> (i32, i32, i32) {
    %c0_i32 = arith.constant 0 : i32
    %c0_i32_0 = arith.constant 0 : i32
    return %arg0, %arg2, %c0_i32 : i32, i32, i32
  }
  func.func @transform_3(%arg0: i32, %arg1: i32, %arg2: i32) -> (i32, i32, i32) {
    %c0_i32 = arith.constant 0 : i32
    %c0_i32_0 = arith.constant 0 : i32
    return %arg0, %arg1, %c0_i32 : i32, i32, i32
  }
}

module attributes {stable_mosaic.version = 11 : i64} {
  func.func @_out_proj_kernel(%arg0: i32, %arg1: i32, %arg2: memref<16x64xbf16, #tpu.memory_space<vmem>>, %arg3: memref<1x64x256xbf16, #tpu.memory_space<vmem>>, %arg4: memref<1x16x256xf32, #tpu.memory_space<vmem>>, %arg5: memref<1x16x256xf32, #tpu.memory_space<vmem>>) attributes {dimension_semantics = [#tpu.dimension_semantics<parallel>, #tpu.dimension_semantics<parallel>], iteration_bounds = array<i64: 2, 1>, scalar_prefetch = 0 : i64, scratch_operands = 0 : i64, tpu.core_type = #tpu.core_type<tc>, window_params = [{pipeline_mode = #tpu.pipeline_mode<synchronous>, transform_indices = @transform_0, window_bounds = array<i64: 16, 64>}, {transform_indices = @transform_1, window_bounds = array<i64: 1, 64, 256>}, {transform_indices = @transform_2, window_bounds = array<i64: 1, 16, 256>}, {transform_indices = @transform_3, window_bounds = array<i64: 1, 16, 256>}]} {
    %c0 = arith.constant 0 : index
    %c0_0 = arith.constant 0 : index
    %0 = vector.load %arg2[%c0, %c0_0] : memref<16x64xbf16, #tpu.memory_space<vmem>>, vector<16x64xbf16>
    %c0_1 = arith.constant 0 : index
    %c0_2 = arith.constant 0 : index
    %c0_3 = arith.constant 0 : index
    %1 = vector.load %arg3[%c0_1, %c0_2, %c0_3] : memref<1x64x256xbf16, #tpu.memory_space<vmem>>, vector<1x64x256xbf16>
    %2 = vector.shape_cast %1 : vector<1x64x256xbf16> to vector<64x256xbf16>
    %cst = arith.constant dense<0.000000e+00> : vector<16x256xf32>
    %3 = tpu.matmul %0, %2, %cst {dimension_numbers = #tpu.dot_dimension_numbers<[1], [0], [0], [1], [0, 0, 1, 1], [], []>} : vector<16x64xbf16>, vector<64x256xbf16>, vector<16x256xf32> -> vector<16x256xf32>
    %c0_4 = arith.constant 0 : index
    %c0_5 = arith.constant 0 : index
    %c0_6 = arith.constant 0 : index
    %4 = vector.load %arg4[%c0_4, %c0_5, %c0_6] : memref<1x16x256xf32, #tpu.memory_space<vmem>>, vector<1x16x256xf32>
    %5 = vector.shape_cast %4 : vector<1x16x256xf32> to vector<16x256xf32>
    %6 = arith.addf %3, %5 : vector<16x256xf32>
    %c0_7 = arith.constant 0 : index
    %c0_8 = arith.constant 0 : index
    %c0_9 = arith.constant 0 : index
    %7 = vector.load %arg5[%c0_7, %c0_8, %c0_9] : memref<1x16x256xf32, #tpu.memory_space<vmem>>, vector<1x16x256xf32>
    %8 = vector.shape_cast %7 : vector<1x16x256xf32> to vector<16x256xf32>
    %9 = vector.shape_cast %6 : vector<16x256xf32> to vector<1x16x256xf32>
    tpu.vector_store %arg5[%c0_7, %c0_8, %c0_9], %9 {strides = array<i32>} : memref<1x16x256xf32, #tpu.memory_space<vmem>>, vector<1x16x256xf32>,
    return
  }
  func.func @transform_0(%arg0: i32, %arg1: i32) -> (i32, i32) {
    %c0_i32 = arith.constant 0 : i32
    %c0_i32_0 = arith.constant 0 : i32
    %c0_i32_1 = arith.constant 0 : i32
    return %c0_i32, %c0_i32_0 : i32, i32
  }
  func.func @transform_1(%arg0: i32, %arg1: i32) -> (i32, i32, i32) {
    %c0_i32 = arith.constant 0 : i32
    %c0_i32_0 = arith.constant 0 : i32
    return %arg0, %c0_i32, %arg1 : i32, i32, i32
  }
  func.func @transform_2(%arg0: i32, %arg1: i32) -> (i32, i32, i32) {
    %c0_i32 = arith.constant 0 : i32
    %c0_i32_0 = arith.constant 0 : i32
    return %arg0, %c0_i32, %arg1 : i32, i32, i32
  }
  func.func @transform_3(%arg0: i32, %arg1: i32) -> (i32, i32, i32) {
    %c0_i32 = arith.constant 0 : i32
    %c0_i32_0 = arith.constant 0 : i32
    return %arg0, %c0_i32, %arg1 : i32, i32, i32
  }
}

</mosaic_0001>

<llo_original>
// kernel: mhsa_block_forward.3
$region0: #{mhsa_block_forward.3}
  #allocation0 [shape = 'u32[]', space=smem, size = 0x4, offset = 0x4, fixed_abs, tag = 'smem constant byte address 0x4 - core index']
  #allocation1 [shape = 'u32[144,128]{1,0:T(1,128)}', space=vmem, size = 0x12000, scoped, tag = 'internal scratch']
  %s0 = inlined_call_operand.vmem [shape: bf16[96,16], index: 0, kind: input, shape index: {}]
  %s1 = inlined_call_operand.vmem [shape: f32[96,1], index: 1, kind: input, shape index: {}]
  %s2 = inlined_call_operand.vmem [shape: bf16[2,16,256], index: 2, kind: input, shape index: {}]
  %s3 = inlined_call_operand.vmem [shape: bf16[2,64,256], index: 3, kind: output, shape index: {0}]
  %s4 = inlined_call_operand.vmem [shape: bf16[2,16,256], index: 4, kind: output, shape index: {1}]
  %s5 = inlined_call_operand.vmem [shape: bf16[2,16,256], index: 5, kind: output, shape index: {2}]
  %6 = xla_tuple %s3, %s4, %s5
  %s7 = sld [smem:[#allocation0]]
  $region61: #{mhsa_block_forward.3} parent=0
    _
  %s9 = ssub.s32 1, %s7
  %s10 = scalar_select 0, %s9, %s7
  loop: start=0, step=1, limit=4
  $region2: #{mhsa_block_forward.3} parent=0 // loop_pre_header
    _
  $region3: #{mhsa_block_forward.3} parent=0 // loop_header
    %s12 = sphi 0, %s16
    %p13 = scmp.ge.s32.totalorder %s12, 4
    %s19 = sphi 0, %s31
    %s20 = sphi 0, %s27
    %s21 = sphi 0, %s19
    %s22 = sphi 0, %s20
    %s23 = sphi 0, %s21
    %s24 = sphi 0, %s22
    %s32 = sphi 0, %s32
    %s34 = sphi 0, %s32
    %s35 = sphi 0, %s34
    %s49 = sphi 0, %s35
    %s53 = sphi 0, %s53
    %s55 = sphi 0, %s53
    %s56 = sphi 0, %s55
    %s70 = sphi 0, %s56
    %s78 = sphi 0, %s80
    %s81 = sphi 0, %s78
    %s82 = sphi 0, %s81
    %s98 = sphi 0, %s82
    %s106 = sphi 0, %s108
    %s109 = sphi 0, %s106
    %s110 = sphi 0, %s109
    %s126 = sphi 0, %s110
    %s134 = sphi 0, %s136
    %s137 = sphi 0, %s134
    %s138 = sphi 0, %s137
    %s154 = sphi 0, %s138
    %s162 = sphi 0, %s164
    %s165 = sphi 0, %s162
    %s166 = sphi 0, %s165
    %s182 = sphi 0, %s166
  $region4: #{mhsa_block_forward.3} parent=0 // loop_header_branch
    %15 = sbr.rel (%p13) target = $region8
  $region5: #{mhsa_block_forward.3} parent=0 // loop_body
    %s17 = ssub.s32 %s12, 1
    %s18 = ssub.s32 %s12, 2
    %s25 = sadd.s32 1, %s20
    %p26 = scmp.ge.s32.totalorder %s25, 1
    %s27 = scalar_select %p26, 0, %s25
    %s28 = sadd.s32 1, %s19
    %s29 = scalar_select %p26, %s28, %s19
    %p30 = scmp.ge.s32.totalorder %s29, 2
    %s31 = scalar_select %p30, 0, %s29
    %s33 = sadd.s32 %s32, 1
    %p36 = scmp.eq.s32.totalorder %s12, 1
    %p37 = scmp.ne.s32.totalorder %s32, %s34
    %p38 = scmp.eq.s32.totalorder %s12, 0
    %p39 = por %p37, %p38
    %p40 = scmp.ne.s32.totalorder %s32, %s34
    %p41 = scmp.eq.s32.totalorder %s17, 1
    %p42 = por %p40, %p41
    %p43 = scmp.ne.s32.totalorder %s34, %s35
    %p44 = scmp.eq.s32.totalorder %s17, 0
    %p45 = por %p43, %p44
    %p46 = scmp.ne.s32.totalorder %s34, %s35
    %p47 = scmp.eq.s32.totalorder %s18, 1
    %p48 = por %p46, %p47
    %p50 = scmp.ne.s32.totalorder %s35, %s49
    %p51 = scmp.eq.s32.totalorder %s18, 0
    %p52 = por %p50, %p51
    %s54 = sadd.s32 %s53, 1
    %p57 = scmp.eq.s32.totalorder %s12, 1
    %p58 = scmp.ne.s32.totalorder %s53, %s55
    %p59 = scmp.eq.s32.totalorder %s12, 0
    %p60 = por %p58, %p59
    %p61 = scmp.ne.s32.totalorder %s53, %s55
    %p62 = scmp.eq.s32.totalorder %s17, 1
    %p63 = por %p61, %p62
    %p64 = scmp.ne.s32.totalorder %s55, %s56
    %p65 = scmp.eq.s32.totalorder %s17, 0
    %p66 = por %p64, %p65
    %p67 = scmp.ne.s32.totalorder %s55, %s56
    %p68 = scmp.eq.s32.totalorder %s18, 1
    %p69 = por %p67, %p68
    %p71 = scmp.ne.s32.totalorder %s56, %s70
    %p72 = scmp.eq.s32.totalorder %s18, 0
    %p73 = por %p71, %p72
    %s74 = ssub.s32 %s19, %s31
    %s75 = ssub.s32 %s20, %s27
    %s76 = sor.u32 %s74, %s75
    %p77 = scmp.eq.s32.totalorder %s76, 0
    %s79 = sadd.s32 %s78, 1
    %s80 = scalar_select %p77, %s78, %s79
    %p83 = pneg %p77
    %p84 = scmp.eq.s32.totalorder %s12, 1
    %p85 = por %p83, %p84
    %p86 = scmp.ne.s32.totalorder %s78, %s81
    %p87 = scmp.eq.s32.totalorder %s12, 0
    %p88 = por %p86, %p87
    %p89 = scmp.ne.s32.totalorder %s78, %s81
    %p90 = scmp.eq.s32.totalorder %s17, 1
    %p91 = por %p89, %p90
    %p92 = scmp.ne.s32.totalorder %s81, %s82
    %p93 = scmp.eq.s32.totalorder %s17, 0
    %p94 = por %p92, %p93
    %p95 = scmp.ne.s32.totalorder %s81, %s82
    %p96 = scmp.eq.s32.totalorder %s18, 1
    %p97 = por %p95, %p96
    %p99 = scmp.ne.s32.totalorder %s82, %s98
    %p100 = scmp.eq.s32.totalorder %s18, 0
    %p101 = por %p99, %p100
    %s102 = ssub.s32 %s19, %s31
    %s103 = ssub.s32 %s20, %s27
    %s104 = sor.u32 %s102, %s103
    %p105 = scmp.eq.s32.totalorder %s104, 0
    %s107 = sadd.s32 %s106, 1
    %s108 = scalar_select %p105, %s106, %s107
    %p111 = pneg %p105
    %p112 = scmp.eq.s32.totalorder %s12, 1
    %p113 = por %p111, %p112
    %p114 = scmp.ne.s32.totalorder %s106, %s109
    %p115 = scmp.eq.s32.totalorder %s12, 0
    %p116 = por %p114, %p115
    %p117 = scmp.ne.s32.totalorder %s106, %s109
    %p118 = scmp.eq.s32.totalorder %s17, 1
    %p119 = por %p117, %p118
    %p120 = scmp.ne.s32.totalorder %s109, %s110
    %p121 = scmp.eq.s32.totalorder %s17, 0
    %p122 = por %p120, %p121
    %p123 = scmp.ne.s32.totalorder %s109, %s110
    %p124 = scmp.eq.s32.totalorder %s18, 1
    %p125 = por %p123, %p124
    %p127 = scmp.ne.s32.totalorder %s110, %s126
    %p128 = scmp.eq.s32.totalorder %s18, 0
    %p129 = por %p127, %p128
    %s130 = ssub.s32 %s19, %s31
    %s131 = ssub.s32 %s20, %s27
    %s132 = sor.u32 %s130, %s131
    %p133 = scmp.eq.s32.totalorder %s132, 0
    %s135 = sadd.s32 %s134, 1
    %s136 = scalar_select %p133, %s134, %s135
    %p139 = pneg %p133
    %p140 = scmp.eq.s32.totalorder %s12, 1
    %p141 = por %p139, %p140
    %p142 = scmp.ne.s32.totalorder %s134, %s137
    %p143 = scmp.eq.s32.totalorder %s12, 0
    %p144 = por %p142, %p143
    %p145 = scmp.ne.s32.totalorder %s134, %s137
    %p146 = scmp.eq.s32.totalorder %s17, 1
    %p147 = por %p145, %p146
    %p148 = scmp.ne.s32.totalorder %s137, %s138
    %p149 = scmp.eq.s32.totalorder %s17, 0
    %p150 = por %p148, %p149
    %p151 = scmp.ne.s32.totalorder %s137, %s138
    %p152 = scmp.eq.s32.totalorder %s18, 1
    %p153 = por %p151, %p152
    %p155 = scmp.ne.s32.totalorder %s138, %s154
    %p156 = scmp.eq.s32.totalorder %s18, 0
    %p157 = por %p155, %p156
    %s158 = ssub.s32 %s19, %s31
    %s159 = ssub.s32 %s20, %s27
    %s160 = sor.u32 %s158, %s159
    %p161 = scmp.eq.s32.totalorder %s160, 0
    %s163 = sadd.s32 %s162, 1
    %s164 = scalar_select %p161, %s162, %s163
    %p167 = pneg %p161
    %p168 = scmp.eq.s32.totalorder %s12, 1
    %p169 = por %p167, %p168
    %p170 = scmp.ne.s32.totalorder %s162, %s165
    %p171 = scmp.eq.s32.totalorder %s12, 0
    %p172 = por %p170, %p171
    %p173 = scmp.ne.s32.totalorder %s162, %s165
    %p174 = scmp.eq.s32.totalorder %s17, 1
    %p175 = por %p173, %p174
    %p176 = scmp.ne.s32.totalorder %s165, %s166
    %p177 = scmp.eq.s32.totalorder %s17, 0
    %p178 = por %p176, %p177
    %p179 = scmp.ne.s32.totalorder %s165, %s166
    %p180 = scmp.eq.s32.totalorder %s18, 1
    %p181 = por %p179, %p180
    %p183 = scmp.ne.s32.totalorder %s166, %s182
    %p184 = scmp.eq.s32.totalorder %s18, 0
    %p185 = por %p183, %p184
    %p186 = scmp.le.s32.totalorder 1, %s12
    %p187 = scmp.lt.s32.totalorder %s12, 3
    %p188 = pnand %p186, %p187
    %p189 = pneg %p188
    // Predicated region
    $region9: #{mhsa_block_forward.3} parent=5 // pred_check
      _
    $region10: #{mhsa_block_forward.3} parent=5 // pred_check_branch
      %191 = sbr.rel (%p188) target = $region12
    $region11: #{mhsa_block_forward.3} parent=5 // pred_region
      %s192 = ssub.s32 %s12, 1
      // Predicated region
      $region13: #{mhsa_block_forward.3} parent=11 // pred_check
        %p193 = pneg %p45
      $region14: #{mhsa_block_forward.3} parent=11 // pred_check_branch
        %195 = sbr.rel (%p193) target = $region16
      $region15: #{mhsa_block_forward.3} parent=11 // pred_region
        _
      $region16: #{mhsa_block_forward.3} parent=11 // pred_fallthru
        _
      // Predicated region
      $region17: #{mhsa_block_forward.3} parent=11 // pred_check
        %p196 = pneg %p66
      $region18: #{mhsa_block_forward.3} parent=11 // pred_check_branch
        %198 = sbr.rel (%p196) target = $region20
      $region19: #{mhsa_block_forward.3} parent=11 // pred_region
        _
      $region20: #{mhsa_block_forward.3} parent=11 // pred_fallthru
        _
    $region12: #{mhsa_block_forward.3} parent=5 // pred_fallthru
      _
    %p199 = scmp.lt.s32.totalorder %s12, 2
    // Predicated region
    $region21: #{mhsa_block_forward.3} parent=5 // pred_check
      %p200 = pneg %p199
    $region22: #{mhsa_block_forward.3} parent=5 // pred_check_branch
      %202 = sbr.rel (%p200) target = $region24
    $region23: #{mhsa_block_forward.3} parent=5 // pred_region
      // Predicated region
      $region25: #{mhsa_block_forward.3} parent=23 // pred_check
        %p203 = pneg %p88
      $region26: #{mhsa_block_forward.3} parent=23 // pred_check_branch
        %205 = sbr.rel (%p203) target = $region28
      $region27: #{mhsa_block_forward.3} parent=23 // pred_region
        %s206 = smul.u32 2, %s20
        %p207 = scmp.lt.s32.totalorder %s19, 1
        %s208 = scalar_select %p207, %s19, 1
        %p209 = scmp.lt.s32.totalorder %s206, 1
        %s210 = scalar_select %p209, %s206, 1
        %s211 = smul.addr %s208, 4
        %s212 = sadd.s32 %s210, %s211
        %s213 = smul.addr %s212, 4
        %s214 = scalar_lea.vmem %s2, %s213
        %s215 = smul.u32 2, %s20
      $region28: #{mhsa_block_forward.3} parent=23 // pred_fallthru
        _
    $region24: #{mhsa_block_forward.3} parent=5 // pred_fallthru
      _
    %p216 = scmp.le.s32.totalorder 1, %s12
    %p217 = scmp.lt.s32.totalorder %s12, 3
    %p218 = pnand %p216, %p217
    %p219 = pneg %p218
    // Predicated region
    $region29: #{mhsa_block_forward.3} parent=5 // pred_check
      _
    $region30: #{mhsa_block_forward.3} parent=5 // pred_check_branch
      %221 = sbr.rel (%p218) target = $region32
    $region31: #{mhsa_block_forward.3} parent=5 // pred_region
      %s222 = ssub.s32 %s12, 1
      %p223 = pneg %p45
      %p224 = pneg %p42
      %p225 = pneg %p66
      %p226 = pneg %p63
      %s227 = smul.u32 2, %s22
      %p228 = scmp.lt.s32.totalorder %s21, 1
      %s229 = scalar_select %p228, %s21, 1
      %p230 = scmp.lt.s32.totalorder %s227, 1
      %s231 = scalar_select %p230, %s227, 1
      %s232 = smul.addr %s229, 4
      %s233 = sadd.s32 %s231, %s232
      %s234 = smul.addr %s233, 4
      %s235 = scalar_lea.vmem %s2, %s234
      %p236 = pneg %p94
      %p237 = pneg %p91
      %p238 = pneg %p122
      %p239 = pneg %p119
      %s240 = smul.u32 2, %s22
      %p241 = scmp.lt.s32.totalorder %s21, 1
      %s242 = scalar_select %p241, %s21, 1
      %p243 = scmp.lt.s32.totalorder %s240, 1
      %s244 = scalar_select %p243, %s240, 1
      %s245 = smul.addr %s242, 16
      %s246 = sadd.s32 %s244, %s245
      %s247 = smul.addr %s246, 4
      %s248 = scalar_lea.vmem %s3, %s247
      %p249 = pneg %p150
      %p250 = pneg %p147
      %s251 = smul.u32 2, %s22
      %p252 = scmp.lt.s32.totalorder %s21, 1
      %s253 = scalar_select %p252, %s21, 1
      %p254 = scmp.lt.s32.totalorder %s251, 1
      %s255 = scalar_select %p254, %s251, 1
      %s256 = smul.addr %s253, 4
      %s257 = sadd.s32 %s255, %s256
      %s258 = smul.addr %s257, 4
      %s259 = scalar_lea.vmem %s4, %s258
      %p260 = pneg %p178
      %p261 = pneg %p175
      %s262 = smul.u32 2, %s22
      %p263 = scmp.lt.s32.totalorder %s21, 1
      %s264 = scalar_select %p263, %s21, 1
      %p265 = scmp.lt.s32.totalorder %s262, 1
      %s266 = scalar_select %p265, %s262, 1
      %s267 = smul.addr %s264, 4
      %s268 = sadd.s32 %s266, %s267
      %s269 = smul.addr %s268, 4
      %s270 = scalar_lea.vmem %s5, %s269
      %s271 = smul.u32 2, %s22
      %p272 = scmp.lt.s32.totalorder %s21, 1
      %s273 = scalar_select %p272, %s21, 1
      %p274 = scmp.lt.s32.totalorder %s271, 1
      %s275 = scalar_select %p274, %s271, 1
      %s276 = smul.addr %s273, 4
      %s277 = sadd.s32 %s275, %s276
      %s278 = smul.addr %s277, 4
      %s279 = scalar_lea.vmem %s2, %s278
      %s280 = smul.u32 2, %s22
      %s281 = smul.u32 2, %s22
      %p282 = scmp.lt.s32.totalorder %s21, 1
      %s283 = scalar_select %p282, %s21, 1
      %p284 = scmp.lt.s32.totalorder %s281, 1
      %s285 = scalar_select %p284, %s281, 1
      %s286 = smul.addr %s283, 16
      %s287 = sadd.s32 %s285, %s286
      %s288 = smul.addr %s287, 4
      %s289 = scalar_lea.vmem %s3, %s288
      %s290 = smul.u32 2, %s22
      %s291 = smul.u32 2, %s22
      %p292 = scmp.lt.s32.totalorder %s21, 1
      %s293 = scalar_select %p292, %s21, 1
      %p294 = scmp.lt.s32.totalorder %s291, 1
      %s295 = scalar_select %p294, %s291, 1
      %s296 = smul.addr %s293, 4
      %s297 = sadd.s32 %s295, %s296
      %s298 = smul.addr %s297, 4
      %s299 = scalar_lea.vmem %s4, %s298
      %s300 = smul.u32 2, %s22
      %s301 = smul.u32 2, %s22
      %p302 = scmp.lt.s32.totalorder %s21, 1
      %s303 = scalar_select %p302, %s21, 1
      %p304 = scmp.lt.s32.totalorder %s301, 1
      %s305 = scalar_select %p304, %s301, 1
      %s306 = smul.addr %s303, 4
      %s307 = sadd.s32 %s305, %s306
      %s308 = smul.addr %s307, 4
      %s309 = scalar_lea.vmem %s5, %s308
      %s310 = smul.u32 2, %s22
      %v312 = vld [vmem:[%s0] sm:$0xf]
      %v313 = vld [vmem:[%s0 + $0x4] sm:$0xf]
      %v314 = vld [vmem:[%s0 + $0x8] sm:$0xf]
      %v315 = vld [vmem:[%s0 + $0xc] sm:$0xf]
      %v316 = vld [vmem:[%s0 + $0x10] sm:$0xf]
      %v317 = vld [vmem:[%s0 + $0x14] sm:$0xf]
      %v318 = vld [vmem:[%s0 + $0x18] sm:$0xf]
      %v319 = vld [vmem:[%s0 + $0x1c] sm:$0xf]
      %v320 = vld [vmem:[%s0 + $0x20] sm:$0xf]
      %v321 = vld [vmem:[%s0 + $0x24] sm:$0xf]
      %v322 = vld [vmem:[%s0 + $0x28] sm:$0xf]
      %v323 = vld [vmem:[%s0 + $0x2c] sm:$0xf]
      %v324 = vld [vmem:[%s279] sm:$0xff]
      %v325 = vld [vmem:[%s279 + $0x8] sm:$0xff]
      %v326 = vld [vmem:[%s1] sm:$0xff]
      %v327 = vld [vmem:[%s1 + $0x8] sm:$0xff]
      %v328 = vld [vmem:[%s1 + $0x10] sm:$0xff]
      %v329 = vld [vmem:[%s1 + $0x18] sm:$0xff]
      %v330 = vld [vmem:[%s1 + $0x20] sm:$0xff]
      %v331 = vld [vmem:[%s1 + $0x28] sm:$0xff]
      %v332 = vld [vmem:[%s1 + $0x30] sm:$0xff]
      %v333 = vld [vmem:[%s1 + $0x38] sm:$0xff]
      %v334 = vld [vmem:[%s1 + $0x40] sm:$0xff]
      %v335 = vld [vmem:[%s1 + $0x48] sm:$0xff]
      %v336 = vld [vmem:[%s1 + $0x50] sm:$0xff]
      %v337 = vld [vmem:[%s1 + $0x58] sm:$0xff]
      %339 = vset.pattern.permute.xlu0 0
      %340 = vperm.xlu0 %339, %v326
      %v341 = vpop.permute.xlu0 %340
      %344 = vset.pattern.permute.xlu0 0
      %345 = vperm.xlu0 %344, %v327
      %v346 = vpop.permute.xlu0 %345
      %349 = vset.pattern.permute.xlu0 0
      %350 = vperm.xlu0 %349, %v328
      %v351 = vpop.permute.xlu0 %350
      %354 = vset.pattern.permute.xlu0 0
      %355 = vperm.xlu0 %354, %v329
      %v356 = vpop.permute.xlu0 %355
      %359 = vset.pattern.permute.xlu0 0
      %360 = vperm.xlu0 %359, %v330
      %v361 = vpop.permute.xlu0 %360
      %364 = vset.pattern.permute.xlu0 0
      %365 = vperm.xlu0 %364, %v331
      %v366 = vpop.permute.xlu0 %365
      %369 = vset.pattern.permute.xlu0 0
      %370 = vperm.xlu0 %369, %v332
      %v371 = vpop.permute.xlu0 %370
      %374 = vset.pattern.permute.xlu0 0
      %375 = vperm.xlu0 %374, %v333
      %v376 = vpop.permute.xlu0 %375
      %379 = vset.pattern.permute.xlu0 0
      %380 = vperm.xlu0 %379, %v334
      %v381 = vpop.permute.xlu0 %380
      %384 = vset.pattern.permute.xlu0 0
      %385 = vperm.xlu0 %384, %v335
      %v386 = vpop.permute.xlu0 %385
      %389 = vset.pattern.permute.xlu0 0
      %390 = vperm.xlu0 %389, %v336
      %v391 = vpop.permute.xlu0 %390
      %394 = vset.pattern.permute.xlu0 0
      %395 = vperm.xlu0 %394, %v337
      %v396 = vpop.permute.xlu0 %395
      %v410 = vunpack.c.l.b16 %v312
      %v411 = vunpack.c.l.b16 %v313
      %v412 = vunpack.c.l.b16 %v314
      %v413 = vunpack.c.l.b16 %v315
      %v414 = vunpack.c.l.b16 %v316
      %v415 = vunpack.c.l.b16 %v317
      %v416 = vunpack.c.l.b16 %v318
      %v417 = vunpack.c.l.b16 %v319
      %v418 = vunpack.c.l.b16 %v320
      %v419 = vunpack.c.l.b16 %v321
      %v420 = vunpack.c.l.b16 %v322
      %v421 = vunpack.c.l.b16 %v323
      %v422 = vpack.c.b16 %v411, %v410
      %v423 = vpack.c.b16 %v413, %v412
      %v424 = vpack.c.b16 %v415, %v414
      %v425 = vpack.c.b16 %v417, %v416
      %v426 = vpack.c.b16 %v419, %v418
      %v427 = vpack.c.b16 %v421, %v420
      %v430 = vunpack.c.l.b16 %v324
      %v431 = vunpack.c.h.b16 %v324
      %v432 = vunpack.c.l.b16 %v325
      %v433 = vunpack.c.h.b16 %v325
      %v434 = vpack.c.b16 %v432, %v430
      %v435 = vpack.c.b16 %v433, %v431
      %vm438 = vcmask 130048
      %v440 = vsel %vm438, %v422, 0
      %v443 = vsel %vm438, %v423, 0
      %v446 = vsel %vm438, %v424, 0
      %v449 = vsel %vm438, %v425, 0
      %v452 = vsel %vm438, %v426, 0
      %v455 = vsel %vm438, %v427, 0
      %457 = vmatprep.subr.bf16.mxu0 %v435
      %458 = vmatpush1.bf16.msra.mxu0 %v434
      %459 = vmatprep.subr.bf16.mxu0 0
      %460 = vmatpush1.bf16.msra.mxu0 0
      %461 = vmatprep.subr.bf16.mxu0 0
      %462 = vmatpush1.bf16.msra.mxu0 0
      %463 = vmatprep.subr.bf16.mxu0 0
      %464 = vmatpush1.bf16.msra.mxu0 0
      %465 = vmatprep.subr.bf16.mxu0 0
      %466 = vmatpush1.bf16.msra.mxu0 0
      %467 = vmatprep.subr.bf16.mxu0 0
      %468 = vmatpush1.bf16.msra.mxu0 0
      %469 = vmatprep.subr.bf16.mxu0 0
      %470 = vmatpush1.bf16.msra.mxu0 0
      %471 = vmatprep.subr.bf16.mxu0 0
      %472 = vmatpush1.bf16.msra.mxu0 0
      %473 = vmatprep.subr.bf16.mxu0 0
      %474 = vmatpush1.bf16.msra.mxu0 0
      %475 = vmatprep.subr.bf16.mxu0 0
      %476 = vmatpush1.bf16.msra.mxu0 0
      %477 = vmatprep.subr.bf16.mxu0 0
      %478 = vmatpush1.bf16.msra.mxu0 0
      %479 = vmatprep.subr.bf16.mxu0 0
      %480 = vmatpush1.bf16.msra.mxu0 0
      %481 = vmatprep.subr.bf16.mxu0 0
      %482 = vmatpush1.bf16.msra.mxu0 0
      %483 = vmatprep.subr.bf16.mxu0 0
      %484 = vmatpush1.bf16.msra.mxu0 0
      %485 = vmatprep.subr.bf16.mxu0 0
      %486 = vmatpush1.bf16.msra.mxu0 0
      %487 = vmatprep.subr.bf16.mxu0 0
      %488 = vmatpush1.bf16.msra.mxu0 0
      %489 = vmatprep.mubr.bf16.mxu0 0
      %490 = vmatmul.mubr.bf16.gmra.mrb[0].mxu0 %v440
      %v491 = vpop.f32.mrb[0].mxu0
      %v492 = vadd.f32 %v341, %v491
      %v493 = vpop.f32.mrb[0].mxu0
      %v494 = vadd.f32 %v341, %v493
      %v495 = vpop.f32.mrb[0].mxu0
      %v496 = vadd.f32 %v346, %v495
      %v497 = vpop.f32.mrb[0].mxu0
      %v498 = vadd.f32 %v346, %v497
      %499 = vmatprep.mubr.bf16.mxu0 0
      %500 = vmatmul.mubr.bf16.gmra.mrb[0].mxu0 %v443
      %v501 = vpop.f32.mrb[0].mxu0
      %v502 = vadd.f32 %v351, %v501
      %v503 = vpop.f32.mrb[0].mxu0
      %v504 = vadd.f32 %v351, %v503
      %v505 = vpop.f32.mrb[0].mxu0
      %v506 = vadd.f32 %v356, %v505
      %v507 = vpop.f32.mrb[0].mxu0
      %v508 = vadd.f32 %v356, %v507
      %509 = vmatprep.mubr.bf16.mxu0 0
      %510 = vmatmul.mubr.bf16.gmra.mrb[0].mxu0 %v446
      %v511 = vpop.f32.mrb[0].mxu0
      %v512 = vadd.f32 %v361, %v511
      %v513 = vpop.f32.mrb[0].mxu0
      %v514 = vadd.f32 %v361, %v513
      %v515 = vpop.f32.mrb[0].mxu0
      %v516 = vadd.f32 %v366, %v515
      %v517 = vpop.f32.mrb[0].mxu0
      %v518 = vadd.f32 %v366, %v517
      %519 = vmatprep.mubr.bf16.mxu0 0
      %520 = vmatmul.mubr.bf16.gmra.mrb[0].mxu0 %v449
      %v521 = vpop.f32.mrb[0].mxu0
      %v522 = vadd.f32 %v371, %v521
      %v523 = vpop.f32.mrb[0].mxu0
      %v524 = vadd.f32 %v371, %v523
      %v525 = vpop.f32.mrb[0].mxu0
      %v526 = vadd.f32 %v376, %v525
      %v527 = vpop.f32.mrb[0].mxu0
      %v528 = vadd.f32 %v376, %v527
      %529 = vmatprep.mubr.bf16.mxu0 0
      %530 = vmatmul.mubr.bf16.gmra.mrb[0].mxu0 %v452
      %v531 = vpop.f32.mrb[0].mxu0
      %v532 = vadd.f32 %v381, %v531
      %v533 = vpop.f32.mrb[0].mxu0
      %v534 = vadd.f32 %v381, %v533
      %v535 = vpop.f32.mrb[0].mxu0
      %v536 = vadd.f32 %v386, %v535
      %v537 = vpop.f32.mrb[0].mxu0
      %v538 = vadd.f32 %v386, %v537
      %539 = vmatprep.mubr.bf16.mxu0 0
      %540 = vmatmul.mubr.bf16.gmra.mrb[0].mxu0 %v455
      %v541 = vpop.f32.mrb[0].mxu0
      %v542 = vadd.f32 %v391, %v541
      %v543 = vpop.f32.mrb[0].mxu0
      %v544 = vadd.f32 %v391, %v543
      %v545 = vpop.f32.mrb[0].mxu0
      %v546 = vadd.f32 %v396, %v545
      %v547 = vpop.f32.mrb[0].mxu0
      %v548 = vadd.f32 %v396, %v547
      %549 = vdwg.mxu0
      %v550 = vpack.c.bf16 %v496, %v492
      %v551 = vpack.c.bf16 %v498, %v494
      %v552 = vpack.c.bf16 %v506, %v502
      %v553 = vpack.c.bf16 %v508, %v504
      %v554 = vpack.c.bf16 %v516, %v512
      %v555 = vpack.c.bf16 %v518, %v514
      %v556 = vpack.c.bf16 %v526, %v522
      %v557 = vpack.c.bf16 %v528, %v524
      %v566 = vunpack.c.l.b16 %v550
      %v567 = vunpack.c.l.b16 %v551
      %v568 = vunpack.c.h.b16 %v550
      %v569 = vunpack.c.h.b16 %v551
      %v570 = vunpack.c.l.b16 %v552
      %v571 = vunpack.c.l.b16 %v553
      %v572 = vunpack.c.h.b16 %v552
      %v573 = vunpack.c.h.b16 %v553
      %v574 = vunpack.c.l.b16 %v554
      %v575 = vunpack.c.l.b16 %v555
      %v576 = vunpack.c.h.b16 %v554
      %v577 = vunpack.c.h.b16 %v555
      %v578 = vunpack.c.l.b16 %v556
      %v579 = vunpack.c.l.b16 %v557
      %v580 = vunpack.c.h.b16 %v556
      %v581 = vunpack.c.h.b16 %v557
      %v582 = vpack.c.b16 %v567, %v566
      %v583 = vpack.c.b16 %v569, %v568
      %v584 = vpack.c.b16 %v571, %v570
      %v585 = vpack.c.b16 %v573, %v572
      %v586 = vpack.c.b16 %v575, %v574
      %v587 = vpack.c.b16 %v577, %v576
      %v588 = vpack.c.b16 %v579, %v578
      %v589 = vpack.c.b16 %v581, %v580
      %598 = vst [vmem:[%s289] sm:$0xff] %v582
      %599 = vst [vmem:[%s289 + $0x8] sm:$0xff] %v583
      %600 = vst [vmem:[%s289 + $0x10] sm:$0xff] %v584
      %601 = vst [vmem:[%s289 + $0x18] sm:$0xff] %v585
      %602 = vst [vmem:[%s289 + $0x20] sm:$0xff] %v586
      %603 = vst [vmem:[%s289 + $0x28] sm:$0xff] %v587
      %604 = vst [vmem:[%s289 + $0x30] sm:$0xff] %v588
      %605 = vst [vmem:[%s289 + $0x38] sm:$0xff] %v589
      %v606 = vpack.c.bf16 %v536, %v532
      %v607 = vpack.c.bf16 %v538, %v534
      %v610 = vunpack.c.l.b16 %v606
      %v611 = vunpack.c.l.b16 %v607
      %v612 = vunpack.c.h.b16 %v606
      %v613 = vunpack.c.h.b16 %v607
      %v614 = vpack.c.b16 %v611, %v610
      %v615 = vpack.c.b16 %v613, %v612
      %618 = vst [vmem:[%s299] sm:$0xff] %v614
      %619 = vst [vmem:[%s299 + $0x8] sm:$0xff] %v615
      %v620 = vpack.c.bf16 %v546, %v542
      %v621 = vpack.c.bf16 %v548, %v544
      %v624 = vunpack.c.l.b16 %v620
      %v625 = vunpack.c.l.b16 %v621
      %v626 = vunpack.c.h.b16 %v620
      %v627 = vunpack.c.h.b16 %v621
      %v628 = vpack.c.b16 %v625, %v624
      %v629 = vpack.c.b16 %v627, %v626
      %632 = vst [vmem:[%s309] sm:$0xff] %v628
      %633 = vst [vmem:[%s309 + $0x8] sm:$0xff] %v629
      %s634 = smul.u32 2, %s22
      %p635 = scmp.lt.s32.totalorder %s21, 1
      %s636 = scalar_select %p635, %s21, 1
      %p637 = scmp.lt.s32.totalorder %s634, 1
      %s638 = scalar_select %p637, %s634, 1
      %s639 = smul.addr %s636, 16
      %s640 = sadd.s32 %s638, %s639
      %s641 = smul.addr %s640, 4
      %s642 = scalar_lea.vmem %s3, %s641
      %s643 = smul.u32 2, %s22
      %p644 = scmp.lt.s32.totalorder %s21, 1
      %s645 = scalar_select %p644, %s21, 1
      %p646 = scmp.lt.s32.totalorder %s643, 1
      %s647 = scalar_select %p646, %s643, 1
      %s648 = smul.addr %s645, 4
      %s649 = sadd.s32 %s647, %s648
      %s650 = smul.addr %s649, 4
      %s651 = scalar_lea.vmem %s4, %s650
      %s652 = smul.u32 2, %s22
      %p653 = scmp.lt.s32.totalorder %s21, 1
      %s654 = scalar_select %p653, %s21, 1
      %p655 = scmp.lt.s32.totalorder %s652, 1
      %s656 = scalar_select %p655, %s652, 1
      %s657 = smul.addr %s654, 4
      %s658 = sadd.s32 %s656, %s657
      %s659 = smul.addr %s658, 4
      %s660 = scalar_lea.vmem %s5, %s659
      // Predicated region
      $region33: #{mhsa_block_forward.3} parent=31 // pred_check
        %p661 = pneg %p119
      $region34: #{mhsa_block_forward.3} parent=31 // pred_check_branch
        %663 = sbr.rel (%p661) target = $region36
      $region35: #{mhsa_block_forward.3} parent=31 // pred_region
        %s664 = smul.u32 2, %s22
      $region36: #{mhsa_block_forward.3} parent=31 // pred_fallthru
        _
      // Predicated region
      $region37: #{mhsa_block_forward.3} parent=31 // pred_check
        %p665 = pneg %p147
      $region38: #{mhsa_block_forward.3} parent=31 // pred_check_branch
        %667 = sbr.rel (%p665) target = $region40
      $region39: #{mhsa_block_forward.3} parent=31 // pred_region
        %s668 = smul.u32 2, %s22
      $region40: #{mhsa_block_forward.3} parent=31 // pred_fallthru
        _
      // Predicated region
      $region41: #{mhsa_block_forward.3} parent=31 // pred_check
        %p669 = pneg %p175
      $region42: #{mhsa_block_forward.3} parent=31 // pred_check_branch
        %671 = sbr.rel (%p669) target = $region44
      $region43: #{mhsa_block_forward.3} parent=31 // pred_region
        %s672 = smul.u32 2, %s22
      $region44: #{mhsa_block_forward.3} parent=31 // pred_fallthru
        _
    $region32: #{mhsa_block_forward.3} parent=5 // pred_fallthru
      _
    %p673 = scmp.le.s32.totalorder 2, %s12
    // Predicated region
    $region45: #{mhsa_block_forward.3} parent=5 // pred_check
      %p674 = pneg %p673
    $region46: #{mhsa_block_forward.3} parent=5 // pred_check_branch
      %676 = sbr.rel (%p674) target = $region48
    $region47: #{mhsa_block_forward.3} parent=5 // pred_region
      %s677 = ssub.s32 %s12, 2
      // Predicated region
      $region49: #{mhsa_block_forward.3} parent=47 // pred_check
        %p678 = pneg %p125
      $region50: #{mhsa_block_forward.3} parent=47 // pred_check_branch
        %680 = sbr.rel (%p678) target = $region52
      $region51: #{mhsa_block_forward.3} parent=47 // pred_region
        %s681 = smul.u32 2, %s24
        %p682 = scmp.lt.s32.totalorder %s23, 1
        %s683 = scalar_select %p682, %s23, 1
        %p684 = scmp.lt.s32.totalorder %s681, 1
        %s685 = scalar_select %p684, %s681, 1
        %s686 = smul.addr %s683, 16
        %s687 = sadd.s32 %s685, %s686
        %s688 = smul.addr %s687, 4
        %s689 = scalar_lea.vmem %s3, %s688
      $region52: #{mhsa_block_forward.3} parent=47 // pred_fallthru
        _
      // Predicated region
      $region53: #{mhsa_block_forward.3} parent=47 // pred_check
        %p690 = pneg %p153
      $region54: #{mhsa_block_forward.3} parent=47 // pred_check_branch
        %692 = sbr.rel (%p690) target = $region56
      $region55: #{mhsa_block_forward.3} parent=47 // pred_region
        %s693 = smul.u32 2, %s24
        %p694 = scmp.lt.s32.totalorder %s23, 1
        %s695 = scalar_select %p694, %s23, 1
        %p696 = scmp.lt.s32.totalorder %s693, 1
        %s697 = scalar_select %p696, %s693, 1
        %s698 = smul.addr %s695, 4
        %s699 = sadd.s32 %s697, %s698
        %s700 = smul.addr %s699, 4
        %s701 = scalar_lea.vmem %s4, %s700
      $region56: #{mhsa_block_forward.3} parent=47 // pred_fallthru
        _
      // Predicated region
      $region57: #{mhsa_block_forward.3} parent=47 // pred_check
        %p702 = pneg %p181
      $region58: #{mhsa_block_forward.3} parent=47 // pred_check_branch
        %704 = sbr.rel (%p702) target = $region60
      $region59: #{mhsa_block_forward.3} parent=47 // pred_region
        %s705 = smul.u32 2, %s24
        %p706 = scmp.lt.s32.totalorder %s23, 1
        %s707 = scalar_select %p706, %s23, 1
        %p708 = scmp.lt.s32.totalorder %s705, 1
        %s709 = scalar_select %p708, %s705, 1
        %s710 = smul.addr %s707, 4
        %s711 = sadd.s32 %s709, %s710
        %s712 = smul.addr %s711, 4
        %s713 = scalar_lea.vmem %s5, %s712
      $region60: #{mhsa_block_forward.3} parent=47 // pred_fallthru
        _
    $region48: #{mhsa_block_forward.3} parent=5 // pred_fallthru
      _
  $region6: #{mhsa_block_forward.3} parent=0 // loop_footer
    %s16 = sadd.s32 1, %s12
  $region7: #{mhsa_block_forward.3} parent=0 // loop_footer_branch
    %11 = sbr.rel target = $region3
  $region8: #{mhsa_block_forward.3} parent=0 // loop_exit
    _

// kernel: mhsa_block_forward.5
$region0: #{mhsa_block_forward.5}
  #allocation0 [shape = 'u32[]', space=smem, size = 0x4, offset = 0x4, fixed_abs, tag = 'smem constant byte address 0x4 - core index']
  #allocation1 [shape = 'u32[144,128]{1,0:T(1,128)}', space=vmem, size = 0x12000, scoped, tag = 'internal scratch']
  %s0 = inlined_call_operand.vmem [shape: bf16[16,64], index: 0, kind: input, shape index: {}]
  %s1 = inlined_call_operand.vmem [shape: bf16[2,64,256], index: 1, kind: input, shape index: {}]
  %s2 = inlined_call_operand.vmem [shape: f32[2,16,256], index: 2, kind: input, shape index: {}, may-alias: {2,3}]
  %s3 = inlined_call_operand.vmem [shape: f32[2,16,256], index: 3, kind: output, shape index: {}, may-alias: {2,3}]
  %s4 = sld [smem:[#allocation0]]
  $region45: #{mhsa_block_forward.5} parent=0
    _
  %s6 = ssub.s32 1, %s4
  %s7 = scalar_select 0, %s6, %s4
  loop: start=0, step=1, limit=4
  $region2: #{mhsa_block_forward.5} parent=0 // loop_pre_header
    _
  $region3: #{mhsa_block_forward.5} parent=0 // loop_header
    %s9 = sphi 0, %s13
    %p10 = scmp.ge.s32.totalorder %s9, 4
    %s16 = sphi 0, %s28
    %s17 = sphi 0, %s24
    %s18 = sphi 0, %s16
    %s19 = sphi 0, %s17
    %s20 = sphi 0, %s18
    %s21 = sphi 0, %s19
    %s29 = sphi 0, %s29
    %s31 = sphi 0, %s29
    %s32 = sphi 0, %s31
    %s46 = sphi 0, %s32
    %s54 = sphi 0, %s56
    %s57 = sphi 0, %s54
    %s58 = sphi 0, %s57
    %s74 = sphi 0, %s58
    %s82 = sphi 0, %s84
    %s85 = sphi 0, %s82
    %s86 = sphi 0, %s85
    %s102 = sphi 0, %s86
    %s110 = sphi 0, %s112
    %s113 = sphi 0, %s110
    %s114 = sphi 0, %s113
    %s130 = sphi 0, %s114
  $region4: #{mhsa_block_forward.5} parent=0 // loop_header_branch
    %12 = sbr.rel (%p10) target = $region8
  $region5: #{mhsa_block_forward.5} parent=0 // loop_body
    %s14 = ssub.s32 %s9, 1
    %s15 = ssub.s32 %s9, 2
    %s22 = sadd.s32 1, %s17
    %p23 = scmp.ge.s32.totalorder %s22, 1
    %s24 = scalar_select %p23, 0, %s22
    %s25 = sadd.s32 1, %s16
    %s26 = scalar_select %p23, %s25, %s16
    %p27 = scmp.ge.s32.totalorder %s26, 2
    %s28 = scalar_select %p27, 0, %s26
    %s30 = sadd.s32 %s29, 1
    %p33 = scmp.eq.s32.totalorder %s9, 1
    %p34 = scmp.ne.s32.totalorder %s29, %s31
    %p35 = scmp.eq.s32.totalorder %s9, 0
    %p36 = por %p34, %p35
    %p37 = scmp.ne.s32.totalorder %s29, %s31
    %p38 = scmp.eq.s32.totalorder %s14, 1
    %p39 = por %p37, %p38
    %p40 = scmp.ne.s32.totalorder %s31, %s32
    %p41 = scmp.eq.s32.totalorder %s14, 0
    %p42 = por %p40, %p41
    %p43 = scmp.ne.s32.totalorder %s31, %s32
    %p44 = scmp.eq.s32.totalorder %s15, 1
    %p45 = por %p43, %p44
    %p47 = scmp.ne.s32.totalorder %s32, %s46
    %p48 = scmp.eq.s32.totalorder %s15, 0
    %p49 = por %p47, %p48
    %s50 = ssub.s32 %s16, %s28
    %s51 = ssub.s32 %s17, %s24
    %s52 = sor.u32 %s50, %s51
    %p53 = scmp.eq.s32.totalorder %s52, 0
    %s55 = sadd.s32 %s54, 1
    %s56 = scalar_select %p53, %s54, %s55
    %p59 = pneg %p53
    %p60 = scmp.eq.s32.totalorder %s9, 1
    %p61 = por %p59, %p60
    %p62 = scmp.ne.s32.totalorder %s54, %s57
    %p63 = scmp.eq.s32.totalorder %s9, 0
    %p64 = por %p62, %p63
    %p65 = scmp.ne.s32.totalorder %s54, %s57
    %p66 = scmp.eq.s32.totalorder %s14, 1
    %p67 = por %p65, %p66
    %p68 = scmp.ne.s32.totalorder %s57, %s58
    %p69 = scmp.eq.s32.totalorder %s14, 0
    %p70 = por %p68, %p69
    %p71 = scmp.ne.s32.totalorder %s57, %s58
    %p72 = scmp.eq.s32.totalorder %s15, 1
    %p73 = por %p71, %p72
    %p75 = scmp.ne.s32.totalorder %s58, %s74
    %p76 = scmp.eq.s32.totalorder %s15, 0
    %p77 = por %p75, %p76
    %s78 = ssub.s32 %s16, %s28
    %s79 = ssub.s32 %s17, %s24
    %s80 = sor.u32 %s78, %s79
    %p81 = scmp.eq.s32.totalorder %s80, 0
    %s83 = sadd.s32 %s82, 1
    %s84 = scalar_select %p81, %s82, %s83
    %p87 = pneg %p81
    %p88 = scmp.eq.s32.totalorder %s9, 1
    %p89 = por %p87, %p88
    %p90 = scmp.ne.s32.totalorder %s82, %s85
    %p91 = scmp.eq.s32.totalorder %s9, 0
    %p92 = por %p90, %p91
    %p93 = scmp.ne.s32.totalorder %s82, %s85
    %p94 = scmp.eq.s32.totalorder %s14, 1
    %p95 = por %p93, %p94
    %p96 = scmp.ne.s32.totalorder %s85, %s86
    %p97 = scmp.eq.s32.totalorder %s14, 0
    %p98 = por %p96, %p97
    %p99 = scmp.ne.s32.totalorder %s85, %s86
    %p100 = scmp.eq.s32.totalorder %s15, 1
    %p101 = por %p99, %p100
    %p103 = scmp.ne.s32.totalorder %s86, %s102
    %p104 = scmp.eq.s32.totalorder %s15, 0
    %p105 = por %p103, %p104
    %s106 = ssub.s32 %s16, %s28
    %s107 = ssub.s32 %s17, %s24
    %s108 = sor.u32 %s106, %s107
    %p109 = scmp.eq.s32.totalorder %s108, 0
    %s111 = sadd.s32 %s110, 1
    %s112 = scalar_select %p109, %s110, %s111
    %p115 = pneg %p109
    %p116 = scmp.eq.s32.totalorder %s9, 1
    %p117 = por %p115, %p116
    %p118 = scmp.ne.s32.totalorder %s110, %s113
    %p119 = scmp.eq.s32.totalorder %s9, 0
    %p120 = por %p118, %p119
    %p121 = scmp.ne.s32.totalorder %s110, %s113
    %p122 = scmp.eq.s32.totalorder %s14, 1
    %p123 = por %p121, %p122
    %p124 = scmp.ne.s32.totalorder %s113, %s114
    %p125 = scmp.eq.s32.totalorder %s14, 0
    %p126 = por %p124, %p125
    %p127 = scmp.ne.s32.totalorder %s113, %s114
    %p128 = scmp.eq.s32.totalorder %s15, 1
    %p129 = por %p127, %p128
    %p131 = scmp.ne.s32.totalorder %s114, %s130
    %p132 = scmp.eq.s32.totalorder %s15, 0
    %p133 = por %p131, %p132
    %p134 = scmp.le.s32.totalorder 1, %s9
    %p135 = scmp.lt.s32.totalorder %s9, 3
    %p136 = pnand %p134, %p135
    %p137 = pneg %p136
    // Predicated region
    $region9: #{mhsa_block_forward.5} parent=5 // pred_check
      _
    $region10: #{mhsa_block_forward.5} parent=5 // pred_check_branch
      %139 = sbr.rel (%p136) target = $region12
    $region11: #{mhsa_block_forward.5} parent=5 // pred_region
      %s140 = ssub.s32 %s9, 1
      // Predicated region
      $region13: #{mhsa_block_forward.5} parent=11 // pred_check
        %p141 = pneg %p42
      $region14: #{mhsa_block_forward.5} parent=11 // pred_check_branch
        %143 = sbr.rel (%p141) target = $region16
      $region15: #{mhsa_block_forward.5} parent=11 // pred_region
        _
      $region16: #{mhsa_block_forward.5} parent=11 // pred_fallthru
        _
    $region12: #{mhsa_block_forward.5} parent=5 // pred_fallthru
      _
    %p144 = scmp.lt.s32.totalorder %s9, 2
    // Predicated region
    $region17: #{mhsa_block_forward.5} parent=5 // pred_check
      %p145 = pneg %p144
    $region18: #{mhsa_block_forward.5} parent=5 // pred_check_branch
      %147 = sbr.rel (%p145) target = $region20
    $region19: #{mhsa_block_forward.5} parent=5 // pred_region
      // Predicated region
      $region21: #{mhsa_block_forward.5} parent=19 // pred_check
        %p148 = pneg %p64
      $region22: #{mhsa_block_forward.5} parent=19 // pred_check_branch
        %150 = sbr.rel (%p148) target = $region24
      $region23: #{mhsa_block_forward.5} parent=19 // pred_region
        %s151 = smul.u32 2, %s17
        %p152 = scmp.lt.s32.totalorder %s16, 1
        %s153 = scalar_select %p152, %s16, 1
        %p154 = scmp.lt.s32.totalorder %s151, 1
        %s155 = scalar_select %p154, %s151, 1
        %s156 = smul.addr %s153, 16
        %s157 = sadd.s32 %s155, %s156
        %s158 = smul.addr %s157, 4
        %s159 = scalar_lea.vmem %s1, %s158
        %s160 = smul.u32 2, %s17
      $region24: #{mhsa_block_forward.5} parent=19 // pred_fallthru
        _
      // Predicated region
      $region25: #{mhsa_block_forward.5} parent=19 // pred_check
        %p161 = pneg %p92
      $region26: #{mhsa_block_forward.5} parent=19 // pred_check_branch
        %163 = sbr.rel (%p161) target = $region28
      $region27: #{mhsa_block_forward.5} parent=19 // pred_region
        %s164 = smul.u32 2, %s17
        %p165 = scmp.lt.s32.totalorder %s16, 1
        %s166 = scalar_select %p165, %s16, 1
        %p167 = scmp.lt.s32.totalorder %s164, 1
        %s168 = scalar_select %p167, %s164, 1
        %s169 = smul.addr %s166, 4
        %s170 = sadd.s32 %s168, %s169
        %s171 = smul.addr %s170, 8
        %s172 = scalar_lea.vmem %s2, %s171
        %s173 = smul.u32 2, %s17
      $region28: #{mhsa_block_forward.5} parent=19 // pred_fallthru
        _
    $region20: #{mhsa_block_forward.5} parent=5 // pred_fallthru
      _
    %p174 = scmp.le.s32.totalorder 1, %s9
    %p175 = scmp.lt.s32.totalorder %s9, 3
    %p176 = pnand %p174, %p175
    %p177 = pneg %p176
    // Predicated region
    $region29: #{mhsa_block_forward.5} parent=5 // pred_check
      _
    $region30: #{mhsa_block_forward.5} parent=5 // pred_check_branch
      %179 = sbr.rel (%p176) target = $region32
    $region31: #{mhsa_block_forward.5} parent=5 // pred_region
      %s180 = ssub.s32 %s9, 1
      %p181 = pneg %p42
      %p182 = pneg %p39
      %s183 = smul.u32 2, %s19
      %p184 = scmp.lt.s32.totalorder %s18, 1
      %s185 = scalar_select %p184, %s18, 1
      %p186 = scmp.lt.s32.totalorder %s183, 1
      %s187 = scalar_select %p186, %s183, 1
      %s188 = smul.addr %s185, 16
      %s189 = sadd.s32 %s187, %s188
      %s190 = smul.addr %s189, 4
      %s191 = scalar_lea.vmem %s1, %s190
      %p192 = pneg %p70
      %p193 = pneg %p67
      %s194 = smul.u32 2, %s19
      %p195 = scmp.lt.s32.totalorder %s18, 1
      %s196 = scalar_select %p195, %s18, 1
      %p197 = scmp.lt.s32.totalorder %s194, 1
      %s198 = scalar_select %p197, %s194, 1
      %s199 = smul.addr %s196, 4
      %s200 = sadd.s32 %s198, %s199
      %s201 = smul.addr %s200, 8
      %s202 = scalar_lea.vmem %s2, %s201
      %p203 = pneg %p98
      %p204 = pneg %p95
      %p205 = pneg %p126
      %p206 = pneg %p123
      %s207 = smul.u32 2, %s19
      %p208 = scmp.lt.s32.totalorder %s18, 1
      %s209 = scalar_select %p208, %s18, 1
      %p210 = scmp.lt.s32.totalorder %s207, 1
      %s211 = scalar_select %p210, %s207, 1
      %s212 = smul.addr %s209, 4
      %s213 = sadd.s32 %s211, %s212
      %s214 = smul.addr %s213, 8
      %s215 = scalar_lea.vmem %s3, %s214
      %s216 = smul.u32 2, %s19
      %p217 = scmp.lt.s32.totalorder %s18, 1
      %s218 = scalar_select %p217, %s18, 1
      %p219 = scmp.lt.s32.totalorder %s216, 1
      %s220 = scalar_select %p219, %s216, 1
      %s221 = smul.addr %s218, 16
      %s222 = sadd.s32 %s220, %s221
      %s223 = smul.addr %s222, 4
      %s224 = scalar_lea.vmem %s1, %s223
      %s225 = smul.u32 2, %s19
      %s226 = smul.u32 2, %s19
      %p227 = scmp.lt.s32.totalorder %s18, 1
      %s228 = scalar_select %p227, %s18, 1
      %p229 = scmp.lt.s32.totalorder %s226, 1
      %s230 = scalar_select %p229, %s226, 1
      %s231 = smul.addr %s228, 4
      %s232 = sadd.s32 %s230, %s231
      %s233 = smul.addr %s232, 8
      %s234 = scalar_lea.vmem %s2, %s233
      %s235 = smul.u32 2, %s19
      %s236 = smul.u32 2, %s19
      %p237 = scmp.lt.s32.totalorder %s18, 1
      %s238 = scalar_select %p237, %s18, 1
      %p239 = scmp.lt.s32.totalorder %s236, 1
      %s240 = scalar_select %p239, %s236, 1
      %s241 = smul.addr %s238, 4
      %s242 = sadd.s32 %s240, %s241
      %s243 = smul.addr %s242, 8
      %s244 = scalar_lea.vmem %s3, %s243
      %s245 = smul.u32 2, %s19
      %v247 = vld [vmem:[%s0] sm:$0xf]
      %v248 = vld [vmem:[%s0 + $0x4] sm:$0xf]
      %v249 = vld [vmem:[%s224] sm:$0xff]
      %v250 = vld [vmem:[%s224 + $0x8] sm:$0xff]
      %v251 = vld [vmem:[%s224 + $0x10] sm:$0xff]
      %v252 = vld [vmem:[%s224 + $0x18] sm:$0xff]
      %v253 = vld [vmem:[%s224 + $0x20] sm:$0xff]
      %v254 = vld [vmem:[%s224 + $0x28] sm:$0xff]
      %v255 = vld [vmem:[%s224 + $0x30] sm:$0xff]
      %v256 = vld [vmem:[%s224 + $0x38] sm:$0xff]
      %v257 = vld [vmem:[%s234] sm:$0xff]
      %v258 = vld [vmem:[%s234 + $0x8] sm:$0xff]
      %v259 = vld [vmem:[%s234 + $0x10] sm:$0xff]
      %v260 = vld [vmem:[%s234 + $0x18] sm:$0xff]
      %v263 = vunpack.c.l.b16 %v247
      %v264 = vunpack.c.l.b16 %v248
      %v265 = vpack.c.b16 %v264, %v263
      %v274 = vunpack.c.l.b16 %v249
      %v275 = vunpack.c.h.b16 %v249
      %v276 = vunpack.c.l.b16 %v250
      %v277 = vunpack.c.h.b16 %v250
      %v278 = vunpack.c.l.b16 %v251
      %v279 = vunpack.c.h.b16 %v251
      %v280 = vunpack.c.l.b16 %v252
      %v281 = vunpack.c.h.b16 %v252
      %v282 = vunpack.c.l.b16 %v253
      %v283 = vunpack.c.h.b16 %v253
      %v284 = vunpack.c.l.b16 %v254
      %v285 = vunpack.c.h.b16 %v254
      %v286 = vunpack.c.l.b16 %v255
      %v287 = vunpack.c.h.b16 %v255
      %v288 = vunpack.c.l.b16 %v256
      %v289 = vunpack.c.h.b16 %v256
      %v290 = vpack.c.b16 %v276, %v274
      %v291 = vpack.c.b16 %v277, %v275
      %v292 = vpack.c.b16 %v280, %v278
      %v293 = vpack.c.b16 %v281, %v279
      %v294 = vpack.c.b16 %v284, %v282
      %v295 = vpack.c.b16 %v285, %v283
      %v296 = vpack.c.b16 %v288, %v286
      %v297 = vpack.c.b16 %v289, %v287
      %vm306 = vcmask 523264
      %v308 = vsel %vm306, %v265, 0
      %310 = vmatprep.subr.bf16.mxu0 %v291
      %311 = vmatpush1.bf16.msra.mxu0 %v290
      %312 = vmatprep.subr.bf16.mxu0 %v293
      %313 = vmatpush1.bf16.msra.mxu0 %v292
      %314 = vmatprep.subr.bf16.mxu0 %v295
      %315 = vmatpush1.bf16.msra.mxu0 %v294
      %316 = vmatprep.subr.bf16.mxu0 %v297
      %317 = vmatpush1.bf16.msra.mxu0 %v296
      %318 = vmatprep.subr.bf16.mxu0 0
      %319 = vmatpush1.bf16.msra.mxu0 0
      %320 = vmatprep.subr.bf16.mxu0 0
      %321 = vmatpush1.bf16.msra.mxu0 0
      %322 = vmatprep.subr.bf16.mxu0 0
      %323 = vmatpush1.bf16.msra.mxu0 0
      %324 = vmatprep.subr.bf16.mxu0 0
      %325 = vmatpush1.bf16.msra.mxu0 0
      %326 = vmatprep.subr.bf16.mxu0 0
      %327 = vmatpush1.bf16.msra.mxu0 0
      %328 = vmatprep.subr.bf16.mxu0 0
      %329 = vmatpush1.bf16.msra.mxu0 0
      %330 = vmatprep.subr.bf16.mxu0 0
      %331 = vmatpush1.bf16.msra.mxu0 0
      %332 = vmatprep.subr.bf16.mxu0 0
      %333 = vmatpush1.bf16.msra.mxu0 0
      %334 = vmatprep.subr.bf16.mxu0 0
      %335 = vmatpush1.bf16.msra.mxu0 0
      %336 = vmatprep.subr.bf16.mxu0 0
      %337 = vmatpush1.bf16.msra.mxu0 0
      %338 = vmatprep.subr.bf16.mxu0 0
      %339 = vmatpush1.bf16.msra.mxu0 0
      %340 = vmatprep.subr.bf16.mxu0 0
      %341 = vmatpush1.bf16.msra.mxu0 0
      %342 = vmatprep.mubr.bf16.mxu0 0
      %343 = vmatmul.mubr.bf16.gmra.mrb[0].mxu0 %v308
      %v344 = vpop.f32.mrb[0].mxu0
      %v345 = vadd.f32 %v257, %v344
      %v346 = vpop.f32.mrb[0].mxu0
      %v347 = vadd.f32 %v258, %v346
      %v348 = vpop.f32.mrb[0].mxu0
      %v349 = vadd.f32 %v259, %v348
      %v350 = vpop.f32.mrb[0].mxu0
      %v351 = vadd.f32 %v260, %v350
      %352 = vdwg.mxu0
      %353 = vst [vmem:[%s244] sm:$0xff] %v345
      %354 = vst [vmem:[%s244 + $0x8] sm:$0xff] %v347
      %355 = vst [vmem:[%s244 + $0x10] sm:$0xff] %v349
      %356 = vst [vmem:[%s244 + $0x18] sm:$0xff] %v351
      %s357 = smul.u32 2, %s19
      %p358 = scmp.lt.s32.totalorder %s18, 1
      %s359 = scalar_select %p358, %s18, 1
      %p360 = scmp.lt.s32.totalorder %s357, 1
      %s361 = scalar_select %p360, %s357, 1
      %s362 = smul.addr %s359, 4
      %s363 = sadd.s32 %s361, %s362
      %s364 = smul.addr %s363, 8
      %s365 = scalar_lea.vmem %s3, %s364
      // Predicated region
      $region33: #{mhsa_block_forward.5} parent=31 // pred_check
        %p366 = pneg %p123
      $region34: #{mhsa_block_forward.5} parent=31 // pred_check_branch
        %368 = sbr.rel (%p366) target = $region36
      $region35: #{mhsa_block_forward.5} parent=31 // pred_region
        %s369 = smul.u32 2, %s19
      $region36: #{mhsa_block_forward.5} parent=31 // pred_fallthru
        _
    $region32: #{mhsa_block_forward.5} parent=5 // pred_fallthru
      _
    %p370 = scmp.le.s32.totalorder 2, %s9
    // Predicated region
    $region37: #{mhsa_block_forward.5} parent=5 // pred_check
      %p371 = pneg %p370
    $region38: #{mhsa_block_forward.5} parent=5 // pred_check_branch
      %373 = sbr.rel (%p371) target = $region40
    $region39: #{mhsa_block_forward.5} parent=5 // pred_region
      %s374 = ssub.s32 %s9, 2
      // Predicated region
      $region41: #{mhsa_block_forward.5} parent=39 // pred_check
        %p375 = pneg %p129
      $region42: #{mhsa_block_forward.5} parent=39 // pred_check_branch
        %377 = sbr.rel (%p375) target = $region44
      $region43: #{mhsa_block_forward.5} parent=39 // pred_region
        %s378 = smul.u32 2, %s21
        %p379 = scmp.lt.s32.totalorder %s20, 1
        %s380 = scalar_select %p379, %s20, 1
        %p381 = scmp.lt.s32.totalorder %s378, 1
        %s382 = scalar_select %p381, %s378, 1
        %s383 = smul.addr %s380, 4
        %s384 = sadd.s32 %s382, %s383
        %s385 = smul.addr %s384, 8
        %s386 = scalar_lea.vmem %s3, %s385
      $region44: #{mhsa_block_forward.5} parent=39 // pred_fallthru
        _
    $region40: #{mhsa_block_forward.5} parent=5 // pred_fallthru
      _
  $region6: #{mhsa_block_forward.5} parent=0 // loop_footer
    %s13 = sadd.s32 1, %s9
  $region7: #{mhsa_block_forward.5} parent=0 // loop_footer_branch
    %8 = sbr.rel target = $region3
  $region8: #{mhsa_block_forward.5} parent=0 // loop_exit
    _

// kernel: mhsa_block_forward.4
$region0: #{mhsa_block_forward.4}
  #allocation0 [shape = 'u32[]', space=smem, size = 0x4, offset = 0x4, fixed_abs, tag = 'smem constant byte address 0x4 - core index']
  #allocation1 [shape = 'u32[144,128]{1,0:T(1,128)}', space=vmem, size = 0x12000, scoped, tag = 'internal scratch']
  #allocation2 [shape = 'f32[512,1]{1,0:T(8,128)}', space=vmem, size = 0x40000, scoped, tag = 'scratch operand']
  #allocation3 [shape = 'f32[512,1]{1,0:T(8,128)}', space=vmem, size = 0x40000, scoped, tag = 'scratch operand']
  #allocation4 [shape = 'f32[512,16]{1,0:T(8,128)}', space=vmem, size = 0x40000, scoped, tag = 'scratch operand']
  %s0 = inlined_call_operand.vmem [shape: bf16[2,1024,16], index: 0, kind: input, shape index: {}]
  %s1 = inlined_call_operand.vmem [shape: bf16[2,16,256], index: 1, kind: input, shape index: {}]
  %s2 = inlined_call_operand.vmem [shape: bf16[2,256,16], index: 2, kind: input, shape index: {}]
  %s3 = inlined_call_operand.vmem [shape: bf16[2,1024,16], index: 3, kind: output, shape index: {}]
  %s4 = sld [smem:[#allocation0]]
  $region53: #{mhsa_block_forward.4} parent=0
    _
  %s6 = ssub.s32 1, %s4
  %s7 = scalar_select 0, %s6, %s4
  loop: start=0, step=1, limit=6
  $region2: #{mhsa_block_forward.4} parent=0 // loop_pre_header
    _
  $region3: #{mhsa_block_forward.4} parent=0 // loop_header
    %s9 = sphi 0, %s13
    %p10 = scmp.ge.s32.totalorder %s9, 6
    %s16 = sphi 0, %s35
    %s17 = sphi 0, %s31
    %s18 = sphi 0, %s27
    %s19 = sphi 0, %s16
    %s20 = sphi 0, %s17
    %s21 = sphi 0, %s18
    %s22 = sphi 0, %s19
    %s23 = sphi 0, %s20
    %s24 = sphi 0, %s21
    %s40 = sphi 0, %s42
    %s43 = sphi 0, %s40
    %s44 = sphi 0, %s43
    %s60 = sphi 0, %s44
    %s68 = sphi 0, %s70
    %s71 = sphi 0, %s68
    %s72 = sphi 0, %s71
    %s88 = sphi 0, %s72
    %s96 = sphi 0, %s98
    %s99 = sphi 0, %s96
    %s100 = sphi 0, %s99
    %s116 = sphi 0, %s100
    %s124 = sphi 0, %s126
    %s127 = sphi 0, %s124
    %s128 = sphi 0, %s127
    %s144 = sphi 0, %s128
  $region4: #{mhsa_block_forward.4} parent=0 // loop_header_branch
    %12 = sbr.rel (%p10) target = $region8
  $region5: #{mhsa_block_forward.4} parent=0 // loop_body
    %s14 = ssub.s32 %s9, 1
    %s15 = ssub.s32 %s9, 2
    %s25 = sadd.s32 1, %s18
    %p26 = scmp.ge.s32.totalorder %s25, 1
    %s27 = scalar_select %p26, 0, %s25
    %s28 = sadd.s32 1, %s17
    %s29 = scalar_select %p26, %s28, %s17
    %p30 = scmp.ge.s32.totalorder %s29, 2
    %s31 = scalar_select %p30, 0, %s29
    %s32 = sadd.s32 1, %s16
    %s33 = scalar_select %p30, %s32, %s16
    %p34 = scmp.ge.s32.totalorder %s33, 2
    %s35 = scalar_select %p34, 0, %s33
    %s36 = ssub.s32 %s16, %s35
    %s37 = ssub.s32 %s17, %s31
    %s38 = sor.u32 %s36, %s37
    %p39 = scmp.eq.s32.totalorder %s38, 0
    %s41 = sadd.s32 %s40, 1
    %s42 = scalar_select %p39, %s40, %s41
    %p45 = pneg %p39
    %p46 = scmp.eq.s32.totalorder %s9, 3
    %p47 = por %p45, %p46
    %p48 = scmp.ne.s32.totalorder %s40, %s43
    %p49 = scmp.eq.s32.totalorder %s9, 0
    %p50 = por %p48, %p49
    %p51 = scmp.ne.s32.totalorder %s40, %s43
    %p52 = scmp.eq.s32.totalorder %s14, 3
    %p53 = por %p51, %p52
    %p54 = scmp.ne.s32.totalorder %s43, %s44
    %p55 = scmp.eq.s32.totalorder %s14, 0
    %p56 = por %p54, %p55
    %p57 = scmp.ne.s32.totalorder %s43, %s44
    %p58 = scmp.eq.s32.totalorder %s15, 3
    %p59 = por %p57, %p58
    %p61 = scmp.ne.s32.totalorder %s44, %s60
    %p62 = scmp.eq.s32.totalorder %s15, 0
    %p63 = por %p61, %p62
    %s64 = ssub.s32 %s16, %s35
    %s65 = ssub.s32 %s18, %s27
    %s66 = sor.u32 %s64, %s65
    %p67 = scmp.eq.s32.totalorder %s66, 0
    %s69 = sadd.s32 %s68, 1
    %s70 = scalar_select %p67, %s68, %s69
    %p73 = pneg %p67
    %p74 = scmp.eq.s32.totalorder %s9, 3
    %p75 = por %p73, %p74
    %p76 = scmp.ne.s32.totalorder %s68, %s71
    %p77 = scmp.eq.s32.totalorder %s9, 0
    %p78 = por %p76, %p77
    %p79 = scmp.ne.s32.totalorder %s68, %s71
    %p80 = scmp.eq.s32.totalorder %s14, 3
    %p81 = por %p79, %p80
    %p82 = scmp.ne.s32.totalorder %s71, %s72
    %p83 = scmp.eq.s32.totalorder %s14, 0
    %p84 = por %p82, %p83
    %p85 = scmp.ne.s32.totalorder %s71, %s72
    %p86 = scmp.eq.s32.totalorder %s15, 3
    %p87 = por %p85, %p86
    %p89 = scmp.ne.s32.totalorder %s72, %s88
    %p90 = scmp.eq.s32.totalorder %s15, 0
    %p91 = por %p89, %p90
    %s92 = ssub.s32 %s16, %s35
    %s93 = ssub.s32 %s18, %s27
    %s94 = sor.u32 %s92, %s93
    %p95 = scmp.eq.s32.totalorder %s94, 0
    %s97 = sadd.s32 %s96, 1
    %s98 = scalar_select %p95, %s96, %s97
    %p101 = pneg %p95
    %p102 = scmp.eq.s32.totalorder %s9, 3
    %p103 = por %p101, %p102
    %p104 = scmp.ne.s32.totalorder %s96, %s99
    %p105 = scmp.eq.s32.totalorder %s9, 0
    %p106 = por %p104, %p105
    %p107 = scmp.ne.s32.totalorder %s96, %s99
    %p108 = scmp.eq.s32.totalorder %s14, 3
    %p109 = por %p107, %p108
    %p110 = scmp.ne.s32.totalorder %s99, %s100
    %p111 = scmp.eq.s32.totalorder %s14, 0
    %p112 = por %p110, %p111
    %p113 = scmp.ne.s32.totalorder %s99, %s100
    %p114 = scmp.eq.s32.totalorder %s15, 3
    %p115 = por %p113, %p114
    %p117 = scmp.ne.s32.totalorder %s100, %s116
    %p118 = scmp.eq.s32.totalorder %s15, 0
    %p119 = por %p117, %p118
    %s120 = ssub.s32 %s16, %s35
    %s121 = ssub.s32 %s17, %s31
    %s122 = sor.u32 %s120, %s121
    %p123 = scmp.eq.s32.totalorder %s122, 0
    %s125 = sadd.s32 %s124, 1
    %s126 = scalar_select %p123, %s124, %s125
    %p129 = pneg %p123
    %p130 = scmp.eq.s32.totalorder %s9, 3
    %p131 = por %p129, %p130
    %p132 = scmp.ne.s32.totalorder %s124, %s127
    %p133 = scmp.eq.s32.totalorder %s9, 0
    %p134 = por %p132, %p133
    %p135 = scmp.ne.s32.totalorder %s124, %s127
    %p136 = scmp.eq.s32.totalorder %s14, 3
    %p137 = por %p135, %p136
    %p138 = scmp.ne.s32.totalorder %s127, %s128
    %p139 = scmp.eq.s32.totalorder %s14, 0
    %p140 = por %p138, %p139
    %p141 = scmp.ne.s32.totalorder %s127, %s128
    %p142 = scmp.eq.s32.totalorder %s15, 3
    %p143 = por %p141, %p142
    %p145 = scmp.ne.s32.totalorder %s128, %s144
    %p146 = scmp.eq.s32.totalorder %s15, 0
    %p147 = por %p145, %p146
    %p148 = scmp.le.s32.totalorder 1, %s9
    %p149 = scmp.lt.s32.totalorder %s9, 5
    %p150 = pnand %p148, %p149
    %p151 = pneg %p150
    // Predicated region
    $region9: #{mhsa_block_forward.4} parent=5 // pred_check
      _
    $region10: #{mhsa_block_forward.4} parent=5 // pred_check_branch
      %153 = sbr.rel (%p150) target = $region12
    $region11: #{mhsa_block_forward.4} parent=5 // pred_region
      %s154 = ssub.s32 %s9, 1
    $region12: #{mhsa_block_forward.4} parent=5 // pred_fallthru
      _
    %p155 = scmp.lt.s32.totalorder %s9, 4
    // Predicated region
    $region13: #{mhsa_block_forward.4} parent=5 // pred_check
      %p156 = pneg %p155
    $region14: #{mhsa_block_forward.4} parent=5 // pred_check_branch
      %158 = sbr.rel (%p156) target = $region16
    $region15: #{mhsa_block_forward.4} parent=5 // pred_region
      // Predicated region
      $region17: #{mhsa_block_forward.4} parent=15 // pred_check
        %p159 = pneg %p50
      $region18: #{mhsa_block_forward.4} parent=15 // pred_check_branch
        %161 = sbr.rel (%p159) target = $region20
      $region19: #{mhsa_block_forward.4} parent=15 // pred_region
        %s162 = smul.u32 64, %s17
        %p163 = scmp.lt.s32.totalorder %s16, 1
        %s164 = scalar_select %p163, %s16, 1
        %p165 = scmp.lt.s32.totalorder %s162, 127
        %s166 = scalar_select %p165, %s162, 127
        %s167 = smul.addr %s164, 128
        %s168 = sadd.s32 %s166, %s167
        %s169 = smul.addr %s168, 4
        %s170 = scalar_lea.vmem %s0, %s169
        %s171 = smul.u32 64, %s17
      $region20: #{mhsa_block_forward.4} parent=15 // pred_fallthru
        _
      // Predicated region
      $region21: #{mhsa_block_forward.4} parent=15 // pred_check
        %p172 = pneg %p78
      $region22: #{mhsa_block_forward.4} parent=15 // pred_check_branch
        %174 = sbr.rel (%p172) target = $region24
      $region23: #{mhsa_block_forward.4} parent=15 // pred_region
        %s175 = smul.u32 2, %s18
        %p176 = scmp.lt.s32.totalorder %s16, 1
        %s177 = scalar_select %p176, %s16, 1
        %p178 = scmp.lt.s32.totalorder %s175, 1
        %s179 = scalar_select %p178, %s175, 1
        %s180 = smul.addr %s177, 4
        %s181 = sadd.s32 %s179, %s180
        %s182 = smul.addr %s181, 4
        %s183 = scalar_lea.vmem %s1, %s182
        %s184 = smul.u32 2, %s18
      $region24: #{mhsa_block_forward.4} parent=15 // pred_fallthru
        _
      // Predicated region
      $region25: #{mhsa_block_forward.4} parent=15 // pred_check
        %p185 = pneg %p106
      $region26: #{mhsa_block_forward.4} parent=15 // pred_check_branch
        %187 = sbr.rel (%p185) target = $region28
      $region27: #{mhsa_block_forward.4} parent=15 // pred_region
        %s188 = smul.u32 32, %s18
        %p189 = scmp.lt.s32.totalorder %s16, 1
        %s190 = scalar_select %p189, %s16, 1
        %p191 = scmp.lt.s32.totalorder %s188, 31
        %s192 = scalar_select %p191, %s188, 31
        %s193 = smul.addr %s190, 32
        %s194 = sadd.s32 %s192, %s193
        %s195 = smul.addr %s194, 4
        %s196 = scalar_lea.vmem %s2, %s195
        %s197 = smul.u32 32, %s18
      $region28: #{mhsa_block_forward.4} parent=15 // pred_fallthru
        _
    $region16: #{mhsa_block_forward.4} parent=5 // pred_fallthru
      _
    %p198 = scmp.le.s32.totalorder 1, %s9
    %p199 = scmp.lt.s32.totalorder %s9, 5
    %p200 = pnand %p198, %p199
    %p201 = pneg %p200
    // Predicated region
    $region29: #{mhsa_block_forward.4} parent=5 // pred_check
      _
    $region30: #{mhsa_block_forward.4} parent=5 // pred_check_branch
      %203 = sbr.rel (%p200) target = $region32
    $region31: #{mhsa_block_forward.4} parent=5 // pred_region
      %s204 = ssub.s32 %s9, 1
      %s205 = smul.u32 64, %s20
      %p206 = scmp.lt.s32.totalorder %s19, 1
      %s207 = scalar_select %p206, %s19, 1
      %p208 = scmp.lt.s32.totalorder %s205, 127
      %s209 = scalar_select %p208, %s205, 127
      %s210 = smul.addr %s207, 128
      %s211 = sadd.s32 %s209, %s210
      %s212 = smul.addr %s211, 4
      %s213 = scalar_lea.vmem %s0, %s212
      %p214 = pneg %p56
      %p215 = pneg %p53
      %s216 = smul.u32 2, %s21
      %p217 = scmp.lt.s32.totalorder %s19, 1
      %s218 = scalar_select %p217, %s19, 1
      %p219 = scmp.lt.s32.totalorder %s216, 1
      %s220 = scalar_select %p219, %s216, 1
      %s221 = smul.addr %s218, 4
      %s222 = sadd.s32 %s220, %s221
      %s223 = smul.addr %s222, 4
      %s224 = scalar_lea.vmem %s1, %s223
      %p225 = pneg %p84
      %p226 = pneg %p81
      %s227 = smul.u32 32, %s21
      %p228 = scmp.lt.s32.totalorder %s19, 1
      %s229 = scalar_select %p228, %s19, 1
      %p230 = scmp.lt.s32.totalorder %s227, 31
      %s231 = scalar_select %p230, %s227, 31
      %s232 = smul.addr %s229, 32
      %s233 = sadd.s32 %s231, %s232
      %s234 = smul.addr %s233, 4
      %s235 = scalar_lea.vmem %s2, %s234
      %p236 = pneg %p112
      %p237 = pneg %p109
      %p238 = pneg %p140
      %p239 = pneg %p137
      %s240 = smul.u32 64, %s20
      %p241 = scmp.lt.s32.totalorder %s19, 1
      %s242 = scalar_select %p241, %s19, 1
      %p243 = scmp.lt.s32.totalorder %s240, 127
      %s244 = scalar_select %p243, %s240, 127
      %s245 = smul.addr %s242, 128
      %s246 = sadd.s32 %s244, %s245
      %s247 = smul.addr %s246, 4
      %s248 = scalar_lea.vmem %s3, %s247
      %s249 = smul.u32 64, %s20
      %p250 = scmp.lt.s32.totalorder %s19, 1
      %s251 = scalar_select %p250, %s19, 1
      %p252 = scmp.lt.s32.totalorder %s249, 127
      %s253 = scalar_select %p252, %s249, 127
      %s254 = smul.addr %s251, 128
      %s255 = sadd.s32 %s253, %s254
      %s256 = smul.addr %s255, 4
      %s257 = scalar_lea.vmem %s0, %s256
      %s258 = smul.u32 64, %s20
      %s259 = smul.u32 2, %s21
      %p260 = scmp.lt.s32.totalorder %s19, 1
      %s261 = scalar_select %p260, %s19, 1
      %p262 = scmp.lt.s32.totalorder %s259, 1
      %s263 = scalar_select %p262, %s259, 1
      %s264 = smul.addr %s261, 4
      %s265 = sadd.s32 %s263, %s264
      %s266 = smul.addr %s265, 4
      %s267 = scalar_lea.vmem %s1, %s266
      %s268 = smul.u32 2, %s21
      %s269 = smul.u32 32, %s21
      %p270 = scmp.lt.s32.totalorder %s19, 1
      %s271 = scalar_select %p270, %s19, 1
      %p272 = scmp.lt.s32.totalorder %s269, 31
      %s273 = scalar_select %p272, %s269, 31
      %s274 = smul.addr %s271, 32
      %s275 = sadd.s32 %s273, %s274
      %s276 = smul.addr %s275, 4
      %s277 = scalar_lea.vmem %s2, %s276
      %s278 = smul.u32 32, %s21
      %s279 = smul.u32 64, %s20
      %p280 = scmp.lt.s32.totalorder %s19, 1
      %s281 = scalar_select %p280, %s19, 1
      %p282 = scmp.lt.s32.totalorder %s279, 127
      %s283 = scalar_select %p282, %s279, 127
      %s284 = smul.addr %s281, 128
      %s285 = sadd.s32 %s283, %s284
      %s286 = smul.addr %s285, 4
      %s287 = scalar_lea.vmem %s3, %s286
      %s288 = smul.u32 64, %s20
      %p290 = scmp.eq.s32.totalorder %s21, 0
      // Predicated region
      $region33: #{mhsa_block_forward.4} parent=31 // pred_check
        %p291 = pneg %p290
      $region34: #{mhsa_block_forward.4} parent=31 // pred_check_branch
        %293 = sbr.rel (%p291) target = $region36
      $region35: #{mhsa_block_forward.4} parent=31 // pred_region
        %vm294 = vcmask 7168
        %295 = vst.msk [vmem:[#allocation2] sm:$0xff] %vm294, -inf
        %296 = vst.msk [vmem:[#allocation2 + $0x8] sm:$0xff] %vm294, -inf
        %297 = vst.msk [vmem:[#allocation2 + $0x10] sm:$0xff] %vm294, -inf
        %298 = vst.msk [vmem:[#allocation2 + $0x18] sm:$0xff] %vm294, -inf
        %299 = vst.msk [vmem:[#allocation2 + $0x20] sm:$0xff] %vm294, -inf
        %300 = vst.msk [vmem:[#allocation2 + $0x28] sm:$0xff] %vm294, -inf
        %301 = vst.msk [vmem:[#allocation2 + $0x30] sm:$0xff] %vm294, -inf
        %302 = vst.msk [vmem:[#allocation2 + $0x38] sm:$0xff] %vm294, -inf
        %303 = vst.msk [vmem:[#allocation2 + $0x40] sm:$0xff] %vm294, -inf
        %304 = vst.msk [vmem:[#allocation2 + $0x48] sm:$0xff] %vm294, -inf
        %305 = vst.msk [vmem:[#allocation2 + $0x50] sm:$0xff] %vm294, -inf
        %306 = vst.msk [vmem:[#allocation2 + $0x58] sm:$0xff] %vm294, -inf
        %307 = vst.msk [vmem:[#allocation2 + $0x60] sm:$0xff] %vm294, -inf
        %308 = vst.msk [vmem:[#allocation2 + $0x68] sm:$0xff] %vm294, -inf
        %309 = vst.msk [vmem:[#allocation2 + $0x70] sm:$0xff] %vm294, -inf
        %310 = vst.msk [vmem:[#allocation2 + $0x78] sm:$0xff] %vm294, -inf
        %311 = vst.msk [vmem:[#allocation2 + $0x80] sm:$0xff] %vm294, -inf
        %312 = vst.msk [vmem:[#allocation2 + $0x88] sm:$0xff] %vm294, -inf
        %313 = vst.msk [vmem:[#allocation2 + $0x90] sm:$0xff] %vm294, -inf
        %314 = vst.msk [vmem:[#allocation2 + $0x98] sm:$0xff] %vm294, -inf
        %315 = vst.msk [vmem:[#allocation2 + $0xa0] sm:$0xff] %vm294, -inf
        %316 = vst.msk [vmem:[#allocation2 + $0xa8] sm:$0xff] %vm294, -inf
        %317 = vst.msk [vmem:[#allocation2 + $0xb0] sm:$0xff] %vm294, -inf
        %318 = vst.msk [vmem:[#allocation2 + $0xb8] sm:$0xff] %vm294, -inf
        %319 = vst.msk [vmem:[#allocation2 + $0xc0] sm:$0xff] %vm294, -inf
        %320 = vst.msk [vmem:[#allocation2 + $0xc8] sm:$0xff] %vm294, -inf
        %321 = vst.msk [vmem:[#allocation2 + $0xd0] sm:$0xff] %vm294, -inf
        %322 = vst.msk [vmem:[#allocation2 + $0xd8] sm:$0xff] %vm294, -inf
        %323 = vst.msk [vmem:[#allocation2 + $0xe0] sm:$0xff] %vm294, -inf
        %324 = vst.msk [vmem:[#allocation2 + $0xe8] sm:$0xff] %vm294, -inf
        %325 = vst.msk [vmem:[#allocation2 + $0xf0] sm:$0xff] %vm294, -inf
        %326 = vst.msk [vmem:[#allocation2 + $0xf8] sm:$0xff] %vm294, -inf
        %327 = vst.msk [vmem:[#allocation2 + $0x100] sm:$0xff] %vm294, -inf
        %328 = vst.msk [vmem:[#allocation2 + $0x108] sm:$0xff] %vm294, -inf
        %329 = vst.msk [vmem:[#allocation2 + $0x110] sm:$0xff] %vm294, -inf
        %330 = vst.msk [vmem:[#allocation2 + $0x118] sm:$0xff] %vm294, -inf
        %331 = vst.msk [vmem:[#allocation2 + $0x120] sm:$0xff] %vm294, -inf
        %332 = vst.msk [vmem:[#allocation2 + $0x128] sm:$0xff] %vm294, -inf
        %333 = vst.msk [vmem:[#allocation2 + $0x130] sm:$0xff] %vm294, -inf
        %334 = vst.msk [vmem:[#allocation2 + $0x138] sm:$0xff] %vm294, -inf
        %335 = vst.msk [vmem:[#allocation2 + $0x140] sm:$0xff] %vm294, -inf
        %336 = vst.msk [vmem:[#allocation2 + $0x148] sm:$0xff] %vm294, -inf
        %337 = vst.msk [vmem:[#allocation2 + $0x150] sm:$0xff] %vm294, -inf
        %338 = vst.msk [vmem:[#allocation2 + $0x158] sm:$0xff] %vm294, -inf
        %339 = vst.msk [vmem:[#allocation2 + $0x160] sm:$0xff] %vm294, -inf
        %340 = vst.msk [vmem:[#allocation2 + $0x168] sm:$0xff] %vm294, -inf
        %341 = vst.msk [vmem:[#allocation2 + $0x170] sm:$0xff] %vm294, -inf
        %342 = vst.msk [vmem:[#allocation2 + $0x178] sm:$0xff] %vm294, -inf
        %343 = vst.msk [vmem:[#allocation2 + $0x180] sm:$0xff] %vm294, -inf
        %344 = vst.msk [vmem:[#allocation2 + $0x188] sm:$0xff] %vm294, -inf
        %345 = vst.msk [vmem:[#allocation2 + $0x190] sm:$0xff] %vm294, -inf
        %346 = vst.msk [vmem:[#allocation2 + $0x198] sm:$0xff] %vm294, -inf
        %347 = vst.msk [vmem:[#allocation2 + $0x1a0] sm:$0xff] %vm294, -inf
        %348 = vst.msk [vmem:[#allocation2 + $0x1a8] sm:$0xff] %vm294, -inf
        %349 = vst.msk [vmem:[#allocation2 + $0x1b0] sm:$0xff] %vm294, -inf
        %350 = vst.msk [vmem:[#allocation2 + $0x1b8] sm:$0xff] %vm294, -inf
        %351 = vst.msk [vmem:[#allocation2 + $0x1c0] sm:$0xff] %vm294, -inf
        %352 = vst.msk [vmem:[#allocation2 + $0x1c8] sm:$0xff] %vm294, -inf
        %353 = vst.msk [vmem:[#allocation2 + $0x1d0] sm:$0xff] %vm294, -inf
        %354 = vst.msk [vmem:[#allocation2 + $0x1d8] sm:$0xff] %vm294, -inf
        %355 = vst.msk [vmem:[#allocation2 + $0x1e0] sm:$0xff] %vm294, -inf
        %356 = vst.msk [vmem:[#allocation2 + $0x1e8] sm:$0xff] %vm294, -inf
        %357 = vst.msk [vmem:[#allocation2 + $0x1f0] sm:$0xff] %vm294, -inf
        %358 = vst.msk [vmem:[#allocation2 + $0x1f8] sm:$0xff] %vm294, -inf
        %359 = vst.msk [vmem:[#allocation3] sm:$0xff] %vm294, 0.0
        %360 = vst.msk [vmem:[#allocation3 + $0x8] sm:$0xff] %vm294, 0.0
        %361 = vst.msk [vmem:[#allocation3 + $0x10] sm:$0xff] %vm294, 0.0
        %362 = vst.msk [vmem:[#allocation3 + $0x18] sm:$0xff] %vm294, 0.0
        %363 = vst.msk [vmem:[#allocation3 + $0x20] sm:$0xff] %vm294, 0.0
        %364 = vst.msk [vmem:[#allocation3 + $0x28] sm:$0xff] %vm294, 0.0
        %365 = vst.msk [vmem:[#allocation3 + $0x30] sm:$0xff] %vm294, 0.0
        %366 = vst.msk [vmem:[#allocation3 + $0x38] sm:$0xff] %vm294, 0.0
        %367 = vst.msk [vmem:[#allocation3 + $0x40] sm:$0xff] %vm294, 0.0
        %368 = vst.msk [vmem:[#allocation3 + $0x48] sm:$0xff] %vm294, 0.0
        %369 = vst.msk [vmem:[#allocation3 + $0x50] sm:$0xff] %vm294, 0.0
        %370 = vst.msk [vmem:[#allocation3 + $0x58] sm:$0xff] %vm294, 0.0
        %371 = vst.msk [vmem:[#allocation3 + $0x60] sm:$0xff] %vm294, 0.0
        %372 = vst.msk [vmem:[#allocation3 + $0x68] sm:$0xff] %vm294, 0.0
        %373 = vst.msk [vmem:[#allocation3 + $0x70] sm:$0xff] %vm294, 0.0
        %374 = vst.msk [vmem:[#allocation3 + $0x78] sm:$0xff] %vm294, 0.0
        %375 = vst.msk [vmem:[#allocation3 + $0x80] sm:$0xff] %vm294, 0.0
        %376 = vst.msk [vmem:[#allocation3 + $0x88] sm:$0xff] %vm294, 0.0
        %377 = vst.msk [vmem:[#allocation3 + $0x90] sm:$0xff] %vm294, 0.0
        %378 = vst.msk [vmem:[#allocation3 + $0x98] sm:$0xff] %vm294, 0.0
        %379 = vst.msk [vmem:[#allocation3 + $0xa0] sm:$0xff] %vm294, 0.0
        %380 = vst.msk [vmem:[#allocation3 + $0xa8] sm:$0xff] %vm294, 0.0
        %381 = vst.msk [vmem:[#allocation3 + $0xb0] sm:$0xff] %vm294, 0.0
        %382 = vst.msk [vmem:[#allocation3 + $0xb8] sm:$0xff] %vm294, 0.0
        %383 = vst.msk [vmem:[#allocation3 + $0xc0] sm:$0xff] %vm294, 0.0
        %384 = vst.msk [vmem:[#allocation3 + $0xc8] sm:$0xff] %vm294, 0.0
        %385 = vst.msk [vmem:[#allocation3 + $0xd0] sm:$0xff] %vm294, 0.0
        %386 = vst.msk [vmem:[#allocation3 + $0xd8] sm:$0xff] %vm294, 0.0
        %387 = vst.msk [vmem:[#allocation3 + $0xe0] sm:$0xff] %vm294, 0.0
        %388 = vst.msk [vmem:[#allocation3 + $0xe8] sm:$0xff] %vm294, 0.0
        %389 = vst.msk [vmem:[#allocation3 + $0xf0] sm:$0xff] %vm294, 0.0
        %390 = vst.msk [vmem:[#allocation3 + $0xf8] sm:$0xff] %vm294, 0.0
        %391 = vst.msk [vmem:[#allocation3 + $0x100] sm:$0xff] %vm294, 0.0
        %392 = vst.msk [vmem:[#allocation3 + $0x108] sm:$0xff] %vm294, 0.0
        %393 = vst.msk [vmem:[#allocation3 + $0x110] sm:$0xff] %vm294, 0.0
        %394 = vst.msk [vmem:[#allocation3 + $0x118] sm:$0xff] %vm294, 0.0
        %395 = vst.msk [vmem:[#allocation3 + $0x120] sm:$0xff] %vm294, 0.0
        %396 = vst.msk [vmem:[#allocation3 + $0x128] sm:$0xff] %vm294, 0.0
        %397 = vst.msk [vmem:[#allocation3 + $0x130] sm:$0xff] %vm294, 0.0
        %398 = vst.msk [vmem:[#allocation3 + $0x138] sm:$0xff] %vm294, 0.0
        %399 = vst.msk [vmem:[#allocation3 + $0x140] sm:$0xff] %vm294, 0.0
        %400 = vst.msk [vmem:[#allocation3 + $0x148] sm:$0xff] %vm294, 0.0
        %401 = vst.msk [vmem:[#allocation3 + $0x150] sm:$0xff] %vm294, 0.0
        %402 = vst.msk [vmem:[#allocation3 + $0x158] sm:$0xff] %vm294, 0.0
        %403 = vst.msk [vmem:[#allocation3 + $0x160] sm:$0xff] %vm294, 0.0
        %404 = vst.msk [vmem:[#allocation3 + $0x168] sm:$0xff] %vm294, 0.0
        %405 = vst.msk [vmem:[#allocation3 + $0x170] sm:$0xff] %vm294, 0.0
        %406 = vst.msk [vmem:[#allocation3 + $0x178] sm:$0xff] %vm294, 0.0
        %407 = vst.msk [vmem:[#allocation3 + $0x180] sm:$0xff] %vm294, 0.0
        %408 = vst.msk [vmem:[#allocation3 + $0x188] sm:$0xff] %vm294, 0.0
        %409 = vst.msk [vmem:[#allocation3 + $0x190] sm:$0xff] %vm294, 0.0
        %410 = vst.msk [vmem:[#allocation3 + $0x198] sm:$0xff] %vm294, 0.0
        %411 = vst.msk [vmem:[#allocation3 + $0x1a0] sm:$0xff] %vm294, 0.0
        %412 = vst.msk [vmem:[#allocation3 + $0x1a8] sm:$0xff] %vm294, 0.0
        %413 = vst.msk [vmem:[#allocation3 + $0x1b0] sm:$0xff] %vm294, 0.0
        %414 = vst.msk [vmem:[#allocation3 + $0x1b8] sm:$0xff] %vm294, 0.0
        %415 = vst.msk [vmem:[#allocation3 + $0x1c0] sm:$0xff] %vm294, 0.0
        %416 = vst.msk [vmem:[#allocation3 + $0x1c8] sm:$0xff] %vm294, 0.0
        %417 = vst.msk [vmem:[#allocation3 + $0x1d0] sm:$0xff] %vm294, 0.0
        %418 = vst.msk [vmem:[#allocation3 + $0x1d8] sm:$0xff] %vm294, 0.0
        %419 = vst.msk [vmem:[#allocation3 + $0x1e0] sm:$0xff] %vm294, 0.0
        %420 = vst.msk [vmem:[#allocation3 + $0x1e8] sm:$0xff] %vm294, 0.0
        %421 = vst.msk [vmem:[#allocation3 + $0x1f0] sm:$0xff] %vm294, 0.0
        %422 = vst.msk [vmem:[#allocation3 + $0x1f8] sm:$0xff] %vm294, 0.0
        %vm423 = vcmask 130048
        %424 = vst.msk [vmem:[#allocation4] sm:$0xff] %vm423, 0.0
        %425 = vst.msk [vmem:[#allocation4 + $0x8] sm:$0xff] %vm423, 0.0
        %426 = vst.msk [vmem:[#allocation4 + $0x10] sm:$0xff] %vm423, 0.0
        %427 = vst.msk [vmem:[#allocation4 + $0x18] sm:$0xff] %vm423, 0.0
        %428 = vst.msk [vmem:[#allocation4 + $0x20] sm:$0xff] %vm423, 0.0
        %429 = vst.msk [vmem:[#allocation4 + $0x28] sm:$0xff] %vm423, 0.0
        %430 = vst.msk [vmem:[#allocation4 + $0x30] sm:$0xff] %vm423, 0.0
        %431 = vst.msk [vmem:[#allocation4 + $0x38] sm:$0xff] %vm423, 0.0
        %432 = vst.msk [vmem:[#allocation4 + $0x40] sm:$0xff] %vm423, 0.0
        %433 = vst.msk [vmem:[#allocation4 + $0x48] sm:$0xff] %vm423, 0.0
        %434 = vst.msk [vmem:[#allocation4 + $0x50] sm:$0xff] %vm423, 0.0
        %435 = vst.msk [vmem:[#allocation4 + $0x58] sm:$0xff] %vm423, 0.0
        %436 = vst.msk [vmem:[#allocation4 + $0x60] sm:$0xff] %vm423, 0.0
        %437 = vst.msk [vmem:[#allocation4 + $0x68] sm:$0xff] %vm423, 0.0
        %438 = vst.msk [vmem:[#allocation4 + $0x70] sm:$0xff] %vm423, 0.0
        %439 = vst.msk [vmem:[#allocation4 + $0x78] sm:$0xff] %vm423, 0.0
        %440 = vst.msk [vmem:[#allocation4 + $0x80] sm:$0xff] %vm423, 0.0
        %441 = vst.msk [vmem:[#allocation4 + $0x88] sm:$0xff] %vm423, 0.0
        %442 = vst.msk [vmem:[#allocation4 + $0x90] sm:$0xff] %vm423, 0.0
        %443 = vst.msk [vmem:[#allocation4 + $0x98] sm:$0xff] %vm423, 0.0
        %444 = vst.msk [vmem:[#allocation4 + $0xa0] sm:$0xff] %vm423, 0.0
        %445 = vst.msk [vmem:[#allocation4 + $0xa8] sm:$0xff] %vm423, 0.0
        %446 = vst.msk [vmem:[#allocation4 + $0xb0] sm:$0xff] %vm423, 0.0
        %447 = vst.msk [vmem:[#allocation4 + $0xb8] sm:$0xff] %vm423, 0.0
        %448 = vst.msk [vmem:[#allocation4 + $0xc0] sm:$0xff] %vm423, 0.0
        %449 = vst.msk [vmem:[#allocation4 + $0xc8] sm:$0xff] %vm423, 0.0
        %450 = vst.msk [vmem:[#allocation4 + $0xd0] sm:$0xff] %vm423, 0.0
        %451 = vst.msk [vmem:[#allocation4 + $0xd8] sm:$0xff] %vm423, 0.0
        %452 = vst.msk [vmem:[#allocation4 + $0xe0] sm:$0xff] %vm423, 0.0
        %453 = vst.msk [vmem:[#allocation4 + $0xe8] sm:$0xff] %vm423, 0.0
        %454 = vst.msk [vmem:[#allocation4 + $0xf0] sm:$0xff] %vm423, 0.0
        %455 = vst.msk [vmem:[#allocation4 + $0xf8] sm:$0xff] %vm423, 0.0
        %456 = vst.msk [vmem:[#allocation4 + $0x100] sm:$0xff] %vm423, 0.0
        %457 = vst.msk [vmem:[#allocation4 + $0x108] sm:$0xff] %vm423, 0.0
        %458 = vst.msk [vmem:[#allocation4 + $0x110] sm:$0xff] %vm423, 0.0
        %459 = vst.msk [vmem:[#allocation4 + $0x118] sm:$0xff] %vm423, 0.0
        %460 = vst.msk [vmem:[#allocation4 + $0x120] sm:$0xff] %vm423, 0.0
        %461 = vst.msk [vmem:[#allocation4 + $0x128] sm:$0xff] %vm423, 0.0
        %462 = vst.msk [vmem:[#allocation4 + $0x130] sm:$0xff] %vm423, 0.0
        %463 = vst.msk [vmem:[#allocation4 + $0x138] sm:$0xff] %vm423, 0.0
        %464 = vst.msk [vmem:[#allocation4 + $0x140] sm:$0xff] %vm423, 0.0
        %465 = vst.msk [vmem:[#allocation4 + $0x148] sm:$0xff] %vm423, 0.0
        %466 = vst.msk [vmem:[#allocation4 + $0x150] sm:$0xff] %vm423, 0.0
        %467 = vst.msk [vmem:[#allocation4 + $0x158] sm:$0xff] %vm423, 0.0
        %468 = vst.msk [vmem:[#allocation4 + $0x160] sm:$0xff] %vm423, 0.0
        %469 = vst.msk [vmem:[#allocation4 + $0x168] sm:$0xff] %vm423, 0.0
        %470 = vst.msk [vmem:[#allocation4 + $0x170] sm:$0xff] %vm423, 0.0
        %471 = vst.msk [vmem:[#allocation4 + $0x178] sm:$0xff] %vm423, 0.0
        %472 = vst.msk [vmem:[#allocation4 + $0x180] sm:$0xff] %vm423, 0.0
        %473 = vst.msk [vmem:[#allocation4 + $0x188] sm:$0xff] %vm423, 0.0
        %474 = vst.msk [vmem:[#allocation4 + $0x190] sm:$0xff] %vm423, 0.0
        %475 = vst.msk [vmem:[#allocation4 + $0x198] sm:$0xff] %vm423, 0.0
        %476 = vst.msk [vmem:[#allocation4 + $0x1a0] sm:$0xff] %vm423, 0.0
        %477 = vst.msk [vmem:[#allocation4 + $0x1a8] sm:$0xff] %vm423, 0.0
        %478 = vst.msk [vmem:[#allocation4 + $0x1b0] sm:$0xff] %vm423, 0.0
        %479 = vst.msk [vmem:[#allocation4 + $0x1b8] sm:$0xff] %vm423, 0.0
        %480 = vst.msk [vmem:[#allocation4 + $0x1c0] sm:$0xff] %vm423, 0.0
        %481 = vst.msk [vmem:[#allocation4 + $0x1c8] sm:$0xff] %vm423, 0.0
        %482 = vst.msk [vmem:[#allocation4 + $0x1d0] sm:$0xff] %vm423, 0.0
        %483 = vst.msk [vmem:[#allocation4 + $0x1d8] sm:$0xff] %vm423, 0.0
        %484 = vst.msk [vmem:[#allocation4 + $0x1e0] sm:$0xff] %vm423, 0.0
        %485 = vst.msk [vmem:[#allocation4 + $0x1e8] sm:$0xff] %vm423, 0.0
        %486 = vst.msk [vmem:[#allocation4 + $0x1f0] sm:$0xff] %vm423, 0.0
        %487 = vst.msk [vmem:[#allocation4 + $0x1f8] sm:$0xff] %vm423, 0.0
      $region36: #{mhsa_block_forward.4} parent=31 // pred_fallthru
        _
      %v488 = vld [vmem:[%s257] sm:$0xf]
      %v489 = vld [vmem:[%s257 + $0x4] sm:$0xf]
      %v490 = vld [vmem:[%s257 + $0x8] sm:$0xf]
      %v491 = vld [vmem:[%s257 + $0xc] sm:$0xf]
      %v492 = vld [vmem:[%s257 + $0x10] sm:$0xf]
      %v493 = vld [vmem:[%s257 + $0x14] sm:$0xf]
      %v494 = vld [vmem:[%s257 + $0x18] sm:$0xf]
      %v495 = vld [vmem:[%s257 + $0x1c] sm:$0xf]
      %v496 = vld [vmem:[%s257 + $0x20] sm:$0xf]
      %v497 = vld [vmem:[%s257 + $0x24] sm:$0xf]
      %v498 = vld [vmem:[%s257 + $0x28] sm:$0xf]
      %v499 = vld [vmem:[%s257 + $0x2c] sm:$0xf]
      %v500 = vld [vmem:[%s257 + $0x30] sm:$0xf]
      %v501 = vld [vmem:[%s257 + $0x34] sm:$0xf]
      %v502 = vld [vmem:[%s257 + $0x38] sm:$0xf]
      %v503 = vld [vmem:[%s257 + $0x3c] sm:$0xf]
      %v504 = vld [vmem:[%s257 + $0x40] sm:$0xf]
      %v505 = vld [vmem:[%s257 + $0x44] sm:$0xf]
      %v506 = vld [vmem:[%s257 + $0x48] sm:$0xf]
      %v507 = vld [vmem:[%s257 + $0x4c] sm:$0xf]
      %v508 = vld [vmem:[%s257 + $0x50] sm:$0xf]
      %v509 = vld [vmem:[%s257 + $0x54] sm:$0xf]
      %v510 = vld [vmem:[%s257 + $0x58] sm:$0xf]
      %v511 = vld [vmem:[%s257 + $0x5c] sm:$0xf]
      %v512 = vld [vmem:[%s257 + $0x60] sm:$0xf]
      %v513 = vld [vmem:[%s257 + $0x64] sm:$0xf]
      %v514 = vld [vmem:[%s257 + $0x68] sm:$0xf]
      %v515 = vld [vmem:[%s257 + $0x6c] sm:$0xf]
      %v516 = vld [vmem:[%s257 + $0x70] sm:$0xf]
      %v517 = vld [vmem:[%s257 + $0x74] sm:$0xf]
      %v518 = vld [vmem:[%s257 + $0x78] sm:$0xf]
      %v519 = vld [vmem:[%s257 + $0x7c] sm:$0xf]
      %v520 = vld [vmem:[%s257 + $0x80] sm:$0xf]
      %v521 = vld [vmem:[%s257 + $0x84] sm:$0xf]
      %v522 = vld [vmem:[%s257 + $0x88] sm:$0xf]
      %v523 = vld [vmem:[%s257 + $0x8c] sm:$0xf]
      %v524 = vld [vmem:[%s257 + $0x90] sm:$0xf]
      %v525 = vld [vmem:[%s257 + $0x94] sm:$0xf]
      %v526 = vld [vmem:[%s257 + $0x98] sm:$0xf]
      %v527 = vld [vmem:[%s257 + $0x9c] sm:$0xf]
      %v528 = vld [vmem:[%s257 + $0xa0] sm:$0xf]
      %v529 = vld [vmem:[%s257 + $0xa4] sm:$0xf]
      %v530 = vld [vmem:[%s257 + $0xa8] sm:$0xf]
      %v531 = vld [vmem:[%s257 + $0xac] sm:$0xf]
      %v532 = vld [vmem:[%s257 + $0xb0] sm:$0xf]
      %v533 = vld [vmem:[%s257 + $0xb4] sm:$0xf]
      %v534 = vld [vmem:[%s257 + $0xb8] sm:$0xf]
      %v535 = vld [vmem:[%s257 + $0xbc] sm:$0xf]
      %v536 = vld [vmem:[%s257 + $0xc0] sm:$0xf]
      %v537 = vld [vmem:[%s257 + $0xc4] sm:$0xf]
      %v538 = vld [vmem:[%s257 + $0xc8] sm:$0xf]
      %v539 = vld [vmem:[%s257 + $0xcc] sm:$0xf]
      %v540 = vld [vmem:[%s257 + $0xd0] sm:$0xf]
      %v541 = vld [vmem:[%s257 + $0xd4] sm:$0xf]
      %v542 = vld [vmem:[%s257 + $0xd8] sm:$0xf]
      %v543 = vld [vmem:[%s257 + $0xdc] sm:$0xf]
      %v544 = vld [vmem:[%s257 + $0xe0] sm:$0xf]
      %v545 = vld [vmem:[%s257 + $0xe4] sm:$0xf]
      %v546 = vld [vmem:[%s257 + $0xe8] sm:$0xf]
      %v547 = vld [vmem:[%s257 + $0xec] sm:$0xf]
      %v548 = vld [vmem:[%s257 + $0xf0] sm:$0xf]
      %v549 = vld [vmem:[%s257 + $0xf4] sm:$0xf]
      %v550 = vld [vmem:[%s257 + $0xf8] sm:$0xf]
      %v551 = vld [vmem:[%s257 + $0xfc] sm:$0xf]
      %v552 = vld [vmem:[%s267] sm:$0xff]
      %v553 = vld [vmem:[%s267 + $0x8] sm:$0xff]
      %v618 = vunpack.c.l.b16 %v488
      %v619 = vunpack.c.l.b16 %v489
      %v620 = vunpack.c.l.b16 %v490
      %v621 = vunpack.c.l.b16 %v491
      %v622 = vunpack.c.l.b16 %v492
      %v623 = vunpack.c.l.b16 %v493
      %v624 = vunpack.c.l.b16 %v494
      %v625 = vunpack.c.l.b16 %v495
      %v626 = vunpack.c.l.b16 %v496
      %v627 = vunpack.c.l.b16 %v497
      %v628 = vunpack.c.l.b16 %v498
      %v629 = vunpack.c.l.b16 %v499
      %v630 = vunpack.c.l.b16 %v500
      %v631 = vunpack.c.l.b16 %v501
      %v632 = vunpack.c.l.b16 %v502
      %v633 = vunpack.c.l.b16 %v503
      %v634 = vunpack.c.l.b16 %v504
      %v635 = vunpack.c.l.b16 %v505
      %v636 = vunpack.c.l.b16 %v506
      %v637 = vunpack.c.l.b16 %v507
      %v638 = vunpack.c.l.b16 %v508
      %v639 = vunpack.c.l.b16 %v509
      %v640 = vunpack.c.l.b16 %v510
      %v641 = vunpack.c.l.b16 %v511
      %v642 = vunpack.c.l.b16 %v512
      %v643 = vunpack.c.l.b16 %v513
      %v644 = vunpack.c.l.b16 %v514
      %v645 = vunpack.c.l.b16 %v515
      %v646 = vunpack.c.l.b16 %v516
      %v647 = vunpack.c.l.b16 %v517
      %v648 = vunpack.c.l.b16 %v518
      %v649 = vunpack.c.l.b16 %v519
      %v650 = vunpack.c.l.b16 %v520
      %v651 = vunpack.c.l.b16 %v521
      %v652 = vunpack.c.l.b16 %v522
      %v653 = vunpack.c.l.b16 %v523
      %v654 = vunpack.c.l.b16 %v524
      %v655 = vunpack.c.l.b16 %v525
      %v656 = vunpack.c.l.b16 %v526
      %v657 = vunpack.c.l.b16 %v527
      %v658 = vunpack.c.l.b16 %v528
      %v659 = vunpack.c.l.b16 %v529
      %v660 = vunpack.c.l.b16 %v530
      %v661 = vunpack.c.l.b16 %v531
      %v662 = vunpack.c.l.b16 %v532
      %v663 = vunpack.c.l.b16 %v533
      %v664 = vunpack.c.l.b16 %v534
      %v665 = vunpack.c.l.b16 %v535
      %v666 = vunpack.c.l.b16 %v536
      %v667 = vunpack.c.l.b16 %v537
      %v668 = vunpack.c.l.b16 %v538
      %v669 = vunpack.c.l.b16 %v539
      %v670 = vunpack.c.l.b16 %v540
      %v671 = vunpack.c.l.b16 %v541
      %v672 = vunpack.c.l.b16 %v542
      %v673 = vunpack.c.l.b16 %v543
      %v674 = vunpack.c.l.b16 %v544
      %v675 = vunpack.c.l.b16 %v545
      %v676 = vunpack.c.l.b16 %v546
      %v677 = vunpack.c.l.b16 %v547
      %v678 = vunpack.c.l.b16 %v548
      %v679 = vunpack.c.l.b16 %v549
      %v680 = vunpack.c.l.b16 %v550
      %v681 = vunpack.c.l.b16 %v551
      %v682 = vpack.c.b16 %v619, %v618
      %v683 = vpack.c.b16 %v621, %v620
      %v684 = vpack.c.b16 %v623, %v622
      %v685 = vpack.c.b16 %v625, %v624
      %v686 = vpack.c.b16 %v627, %v626
      %v687 = vpack.c.b16 %v629, %v628
      %v688 = vpack.c.b16 %v631, %v630
      %v689 = vpack.c.b16 %v633, %v632
      %v690 = vpack.c.b16 %v635, %v634
      %v691 = vpack.c.b16 %v637, %v636
      %v692 = vpack.c.b16 %v639, %v638
      %v693 = vpack.c.b16 %v641, %v640
      %v694 = vpack.c.b16 %v643, %v642
      %v695 = vpack.c.b16 %v645, %v644
      %v696 = vpack.c.b16 %v647, %v646
      %v697 = vpack.c.b16 %v649, %v648
      %v698 = vpack.c.b16 %v651, %v650
      %v699 = vpack.c.b16 %v653, %v652
      %v700 = vpack.c.b16 %v655, %v654
      %v701 = vpack.c.b16 %v657, %v656
      %v702 = vpack.c.b16 %v659, %v658
      %v703 = vpack.c.b16 %v661, %v660
      %v704 = vpack.c.b16 %v663, %v662
      %v705 = vpack.c.b16 %v665, %v664
      %v706 = vpack.c.b16 %v667, %v666
      %v707 = vpack.c.b16 %v669, %v668
      %v708 = vpack.c.b16 %v671, %v670
      %v709 = vpack.c.b16 %v673, %v672
      %v710 = vpack.c.b16 %v675, %v674
      %v711 = vpack.c.b16 %v677, %v676
      %v712 = vpack.c.b16 %v679, %v678
      %v713 = vpack.c.b16 %v681, %v680
      %v716 = vunpack.c.l.b16 %v552
      %v717 = vunpack.c.h.b16 %v552
      %v718 = vunpack.c.l.b16 %v553
      %v719 = vunpack.c.h.b16 %v553
      %v720 = vpack.c.b16 %v718, %v716
      %v721 = vpack.c.b16 %v719, %v717
      %vm724 = vcmask 130048
      %v726 = vsel %vm724, %v682, 0
      %v729 = vsel %vm724, %v683, 0
      %v732 = vsel %vm724, %v684, 0
      %v735 = vsel %vm724, %v685, 0
      %v738 = vsel %vm724, %v686, 0
      %v741 = vsel %vm724, %v687, 0
      %v744 = vsel %vm724, %v688, 0
      %v747 = vsel %vm724, %v689, 0
      %v750 = vsel %vm724, %v690, 0
      %v753 = vsel %vm724, %v691, 0
      %v756 = vsel %vm724, %v692, 0
      %v759 = vsel %vm724, %v693, 0
      %v762 = vsel %vm724, %v694, 0
      %v765 = vsel %vm724, %v695, 0
      %v768 = vsel %vm724, %v696, 0
      %v771 = vsel %vm724, %v697, 0
      %v774 = vsel %vm724, %v698, 0
      %v777 = vsel %vm724, %v699, 0
      %v780 = vsel %vm724, %v700, 0
      %v783 = vsel %vm724, %v701, 0
      %v786 = vsel %vm724, %v702, 0
      %v789 = vsel %vm724, %v703, 0
      %v792 = vsel %vm724, %v704, 0
      %v795 = vsel %vm724, %v705, 0
      %v798 = vsel %vm724, %v706, 0
      %v801 = vsel %vm724, %v707, 0
      %v804 = vsel %vm724, %v708, 0
      %v807 = vsel %vm724, %v709, 0
      %v810 = vsel %vm724, %v710, 0
      %v813 = vsel %vm724, %v711, 0
      %v816 = vsel %vm724, %v712, 0
      %v819 = vsel %vm724, %v713, 0
      %821 = vmatprep.subr.bf16.mxu0 %v721
      %822 = vmatpush1.bf16.msra.mxu0 %v720
      %823 = vmatprep.subr.bf16.mxu0 0
      %824 = vmatpush1.bf16.msra.mxu0 0
      %825 = vmatprep.subr.bf16.mxu0 0
      %826 = vmatpush1.bf16.msra.mxu0 0
      %827 = vmatprep.subr.bf16.mxu0 0
      %828 = vmatpush1.bf16.msra.mxu0 0
      %829 = vmatprep.subr.bf16.mxu0 0
      %830 = vmatpush1.bf16.msra.mxu0 0
      %831 = vmatprep.subr.bf16.mxu0 0
      %832 = vmatpush1.bf16.msra.mxu0 0
      %833 = vmatprep.subr.bf16.mxu0 0
      %834 = vmatpush1.bf16.msra.mxu0 0
      %835 = vmatprep.subr.bf16.mxu0 0
      %836 = vmatpush1.bf16.msra.mxu0 0
      %837 = vmatprep.subr.bf16.mxu0 0
      %838 = vmatpush1.bf16.msra.mxu0 0
      %839 = vmatprep.subr.bf16.mxu0 0
      %840 = vmatpush1.bf16.msra.mxu0 0
      %841 = vmatprep.subr.bf16.mxu0 0
      %842 = vmatpush1.bf16.msra.mxu0 0
      %843 = vmatprep.subr.bf16.mxu0 0
      %844 = vmatpush1.bf16.msra.mxu0 0
      %845 = vmatprep.subr.bf16.mxu0 0
      %846 = vmatpush1.bf16.msra.mxu0 0
      %847 = vmatprep.subr.bf16.mxu0 0
      %848 = vmatpush1.bf16.msra.mxu0 0
      %849 = vmatprep.subr.bf16.mxu0 0
      %850 = vmatpush1.bf16.msra.mxu0 0
      %851 = vmatprep.subr.bf16.mxu0 0
      %852 = vmatpush1.bf16.msra.mxu0 0
      %853 = vmatprep.mubr.bf16.mxu0 0
      %854 = vmatmul.mubr.bf16.gmra.mrb[0].mxu0 %v726
      %v855 = vpop.f32.mrb[0].mxu0
      %v856 = vadd.f32 0.0, %v855
      %v857 = vpop.f32.mrb[0].mxu0
      %v858 = vadd.f32 0.0, %v857
      %v859 = vpop.f32.mrb[0].mxu0
      %v860 = vadd.f32 0.0, %v859
      %v861 = vpop.f32.mrb[0].mxu0
      %v862 = vadd.f32 0.0, %v861
      %863 = vmatprep.mubr.bf16.mxu0 0
      %864 = vmatmul.mubr.bf16.gmra.mrb[0].mxu0 %v729
      %v865 = vpop.f32.mrb[0].mxu0
      %v866 = vadd.f32 0.0, %v865
      %v867 = vpop.f32.mrb[0].mxu0
      %v868 = vadd.f32 0.0, %v867
      %v869 = vpop.f32.mrb[0].mxu0
      %v870 = vadd.f32 0.0, %v869
      %v871 = vpop.f32.mrb[0].mxu0
      %v872 = vadd.f32 0.0, %v871
      %873 = vmatprep.mubr.bf16.mxu0 0
      %874 = vmatmul.mubr.bf16.gmra.mrb[0].mxu0 %v732
      %v875 = vpop.f32.mrb[0].mxu0
      %v876 = vadd.f32 0.0, %v875
      %v877 = vpop.f32.mrb[0].mxu0
      %v878 = vadd.f32 0.0, %v877
      %v879 = vpop.f32.mrb[0].mxu0
      %v880 = vadd.f32 0.0, %v879
      %v881 = vpop.f32.mrb[0].mxu0
      %v882 = vadd.f32 0.0, %v881
      %883 = vmatprep.mubr.bf16.mxu0 0
      %884 = vmatmul.mubr.bf16.gmra.mrb[0].mxu0 %v735
      %v885 = vpop.f32.mrb[0].mxu0
      %v886 = vadd.f32 0.0, %v885
      %v887 = vpop.f32.mrb[0].mxu0
      %v888 = vadd.f32 0.0, %v887
      %v889 = vpop.f32.mrb[0].mxu0
      %v890 = vadd.f32 0.0, %v889
      %v891 = vpop.f32.mrb[0].mxu0
      %v892 = vadd.f32 0.0, %v891
      %893 = vmatprep.mubr.bf16.mxu0 0
      %894 = vmatmul.mubr.bf16.gmra.mrb[0].mxu0 %v738
      %v895 = vpop.f32.mrb[0].mxu0
      %v896 = vadd.f32 0.0, %v895
      %v897 = vpop.f32.mrb[0].mxu0
      %v898 = vadd.f32 0.0, %v897
      %v899 = vpop.f32.mrb[0].mxu0
      %v900 = vadd.f32 0.0, %v899
      %v901 = vpop.f32.mrb[0].mxu0
      %v902 = vadd.f32 0.0, %v901
      %903 = vmatprep.mubr.bf16.mxu0 0
      %904 = vmatmul.mubr.bf16.gmra.mrb[0].mxu0 %v741
      %v905 = vpop.f32.mrb[0].mxu0
      %v906 = vadd.f32 0.0, %v905
      %v907 = vpop.f32.mrb[0].mxu0
      %v908 = vadd.f32 0.0, %v907
      %v909 = vpop.f32.mrb[0].mxu0
      %v910 = vadd.f32 0.0, %v909
      %v911 = vpop.f32.mrb[0].mxu0
      %v912 = vadd.f32 0.0, %v911
      %913 = vmatprep.mubr.bf16.mxu0 0
      %914 = vmatmul.mubr.bf16.gmra.mrb[0].mxu0 %v744
      %v915 = vpop.f32.mrb[0].mxu0
      %v916 = vadd.f32 0.0, %v915
      %v917 = vpop.f32.mrb[0].mxu0
      %v918 = vadd.f32 0.0, %v917
      %v919 = vpop.f32.mrb[0].mxu0
      %v920 = vadd.f32 0.0, %v919
      %v921 = vpop.f32.mrb[0].mxu0
      %v922 = vadd.f32 0.0, %v921
      %923 = vmatprep.mubr.bf16.mxu0 0
      %924 = vmatmul.mubr.bf16.gmra.mrb[0].mxu0 %v747
      %v925 = vpop.f32.mrb[0].mxu0
      %v926 = vadd.f32 0.0, %v925
      %v927 = vpop.f32.mrb[0].mxu0
      %v928 = vadd.f32 0.0, %v927
      %v929 = vpop.f32.mrb[0].mxu0
      %v930 = vadd.f32 0.0, %v929
      %v931 = vpop.f32.mrb[0].mxu0
      %v932 = vadd.f32 0.0, %v931
      %933 = vmatprep.mubr.bf16.mxu0 0
      %934 = vmatmul.mubr.bf16.gmra.mrb[0].mxu0 %v750
      %v935 = vpop.f32.mrb[0].mxu0
      %v936 = vadd.f32 0.0, %v935
      %v937 = vpop.f32.mrb[0].mxu0
      %v938 = vadd.f32 0.0, %v937
      %v939 = vpop.f32.mrb[0].mxu0
      %v940 = vadd.f32 0.0, %v939
      %v941 = vpop.f32.mrb[0].mxu0
      %v942 = vadd.f32 0.0, %v941
      %943 = vmatprep.mubr.bf16.mxu0 0
      %944 = vmatmul.mubr.bf16.gmra.mrb[0].mxu0 %v753
      %v945 = vpop.f32.mrb[0].mxu0
      %v946 = vadd.f32 0.0, %v945
      %v947 = vpop.f32.mrb[0].mxu0
      %v948 = vadd.f32 0.0, %v947
      %v949 = vpop.f32.mrb[0].mxu0
      %v950 = vadd.f32 0.0, %v949
      %v951 = vpop.f32.mrb[0].mxu0
      %v952 = vadd.f32 0.0, %v951
      %953 = vmatprep.mubr.bf16.mxu0 0
      %954 = vmatmul.mubr.bf16.gmra.mrb[0].mxu0 %v756
      %v955 = vpop.f32.mrb[0].mxu0
      %v956 = vadd.f32 0.0, %v955
      %v957 = vpop.f32.mrb[0].mxu0
      %v958 = vadd.f32 0.0, %v957
      %v959 = vpop.f32.mrb[0].mxu0
      %v960 = vadd.f32 0.0, %v959
      %v961 = vpop.f32.mrb[0].mxu0
      %v962 = vadd.f32 0.0, %v961
      %963 = vmatprep.mubr.bf16.mxu0 0
      %964 = vmatmul.mubr.bf16.gmra.mrb[0].mxu0 %v759
      %v965 = vpop.f32.mrb[0].mxu0
      %v966 = vadd.f32 0.0, %v965
      %v967 = vpop.f32.mrb[0].mxu0
      %v968 = vadd.f32 0.0, %v967
      %v969 = vpop.f32.mrb[0].mxu0
      %v970 = vadd.f32 0.0, %v969
      %v971 = vpop.f32.mrb[0].mxu0
      %v972 = vadd.f32 0.0, %v971
      %973 = vmatprep.mubr.bf16.mxu0 0
      %974 = vmatmul.mubr.bf16.gmra.mrb[0].mxu0 %v762
      %v975 = vpop.f32.mrb[0].mxu0
      %v976 = vadd.f32 0.0, %v975
      %v977 = vpop.f32.mrb[0].mxu0
      %v978 = vadd.f32 0.0, %v977
      %v979 = vpop.f32.mrb[0].mxu0
      %v980 = vadd.f32 0.0, %v979
      %v981 = vpop.f32.mrb[0].mxu0
      %v982 = vadd.f32 0.0, %v981
      %983 = vmatprep.mubr.bf16.mxu0 0
      %984 = vmatmul.mubr.bf16.gmra.mrb[0].mxu0 %v765
      %v985 = vpop.f32.mrb[0].mxu0
      %v986 = vadd.f32 0.0, %v985
      %v987 = vpop.f32.mrb[0].mxu0
      %v988 = vadd.f32 0.0, %v987
      %v989 = vpop.f32.mrb[0].mxu0
      %v990 = vadd.f32 0.0, %v989
      %v991 = vpop.f32.mrb[0].mxu0
      %v992 = vadd.f32 0.0, %v991
      %993 = vmatprep.mubr.bf16.mxu0 0
      %994 = vmatmul.mubr.bf16.gmra.mrb[0].mxu0 %v768
      %v995 = vpop.f32.mrb[0].mxu0
      %v996 = vadd.f32 0.0, %v995
      %v997 = vpop.f32.mrb[0].mxu0
      %v998 = vadd.f32 0.0, %v997
      %v999 = vpop.f32.mrb[0].mxu0
      %v1000 = vadd.f32 0.0, %v999
      %v1001 = vpop.f32.mrb[0].mxu0
      %v1002 = vadd.f32 0.0, %v1001
      %1003 = vmatprep.mubr.bf16.mxu0 0
      %1004 = vmatmul.mubr.bf16.gmra.mrb[0].mxu0 %v771
      %v1005 = vpop.f32.mrb[0].mxu0
      %v1006 = vadd.f32 0.0, %v1005
      %v1007 = vpop.f32.mrb[0].mxu0
      %v1008 = vadd.f32 0.0, %v1007
      %v1009 = vpop.f32.mrb[0].mxu0
      %v1010 = vadd.f32 0.0, %v1009
      %v1011 = vpop.f32.mrb[0].mxu0
      %v1012 = vadd.f32 0.0, %v1011
      %1013 = vmatprep.mubr.bf16.mxu0 0
      %1014 = vmatmul.mubr.bf16.gmra.mrb[0].mxu0 %v774
      %v1015 = vpop.f32.mrb[0].mxu0
      %v1016 = vadd.f32 0.0, %v1015
      %v1017 = vpop.f32.mrb[0].mxu0
      %v1018 = vadd.f32 0.0, %v1017
      %v1019 = vpop.f32.mrb[0].mxu0
      %v1020 = vadd.f32 0.0, %v1019
      %v1021 = vpop.f32.mrb[0].mxu0
      %v1022 = vadd.f32 0.0, %v1021
      %1023 = vmatprep.mubr.bf16.mxu0 0
      %1024 = vmatmul.mubr.bf16.gmra.mrb[0].mxu0 %v777
      %v1025 = vpop.f32.mrb[0].mxu0
      %v1026 = vadd.f32 0.0, %v1025
      %v1027 = vpop.f32.mrb[0].mxu0
      %v1028 = vadd.f32 0.0, %v1027
      %v1029 = vpop.f32.mrb[0].mxu0
      %v1030 = vadd.f32 0.0, %v1029
      %v1031 = vpop.f32.mrb[0].mxu0
      %v1032 = vadd.f32 0.0, %v1031
      %1033 = vmatprep.mubr.bf16.mxu0 0
      %1034 = vmatmul.mubr.bf16.gmra.mrb[0].mxu0 %v780
      %v1035 = vpop.f32.mrb[0].mxu0
      %v1036 = vadd.f32 0.0, %v1035
      %v1037 = vpop.f32.mrb[0].mxu0
      %v1038 = vadd.f32 0.0, %v1037
      %v1039 = vpop.f32.mrb[0].mxu0
      %v1040 = vadd.f32 0.0, %v1039
      %v1041 = vpop.f32.mrb[0].mxu0
      %v1042 = vadd.f32 0.0, %v1041
      %1043 = vmatprep.mubr.bf16.mxu0 0
      %1044 = vmatmul.mubr.bf16.gmra.mrb[0].mxu0 %v783
      %v1045 = vpop.f32.mrb[0].mxu0
      %v1046 = vadd.f32 0.0, %v1045
      %v1047 = vpop.f32.mrb[0].mxu0
      %v1048 = vadd.f32 0.0, %v1047
      %v1049 = vpop.f32.mrb[0].mxu0
      %v1050 = vadd.f32 0.0, %v1049
      %v1051 = vpop.f32.mrb[0].mxu0
      %v1052 = vadd.f32 0.0, %v1051
      %1053 = vmatprep.mubr.bf16.mxu0 0
      %1054 = vmatmul.mubr.bf16.gmra.mrb[0].mxu0 %v786
      %v1055 = vpop.f32.mrb[0].mxu0
      %v1056 = vadd.f32 0.0, %v1055
      %v1057 = vpop.f32.mrb[0].mxu0
      %v1058 = vadd.f32 0.0, %v1057
      %v1059 = vpop.f32.mrb[0].mxu0
      %v1060 = vadd.f32 0.0, %v1059
      %v1061 = vpop.f32.mrb[0].mxu0
      %v1062 = vadd.f32 0.0, %v1061
      %1063 = vmatprep.mubr.bf16.mxu0 0
      %1064 = vmatmul.mubr.bf16.gmra.mrb[0].mxu0 %v789
      %v1065 = vpop.f32.mrb[0].mxu0
      %v1066 = vadd.f32 0.0, %v1065
      %v1067 = vpop.f32.mrb[0].mxu0
      %v1068 = vadd.f32 0.0, %v1067
      %v1069 = vpop.f32.mrb[0].mxu0
      %v1070 = vadd.f32 0.0, %v1069
      %v1071 = vpop.f32.mrb[0].mxu0
      %v1072 = vadd.f32 0.0, %v1071
      %1073 = vmatprep.mubr.bf16.mxu0 0
      %1074 = vmatmul.mubr.bf16.gmra.mrb[0].mxu0 %v792
      %v1075 = vpop.f32.mrb[0].mxu0
      %v1076 = vadd.f32 0.0, %v1075
      %v1077 = vpop.f32.mrb[0].mxu0
      %v1078 = vadd.f32 0.0, %v1077
      %v1079 = vpop.f32.mrb[0].mxu0
      %v1080 = vadd.f32 0.0, %v1079
      %v1081 = vpop.f32.mrb[0].mxu0
      %v1082 = vadd.f32 0.0, %v1081
      %1083 = vmatprep.mubr.bf16.mxu0 0
      %1084 = vmatmul.mubr.bf16.gmra.mrb[0].mxu0 %v795
      %v1085 = vpop.f32.mrb[0].mxu0
      %v1086 = vadd.f32 0.0, %v1085
      %v1087 = vpop.f32.mrb[0].mxu0
      %v1088 = vadd.f32 0.0, %v1087
      %v1089 = vpop.f32.mrb[0].mxu0
      %v1090 = vadd.f32 0.0, %v1089
      %v1091 = vpop.f32.mrb[0].mxu0
      %v1092 = vadd.f32 0.0, %v1091
      %1093 = vmatprep.mubr.bf16.mxu0 0
      %1094 = vmatmul.mubr.bf16.gmra.mrb[0].mxu0 %v798
      %v1095 = vpop.f32.mrb[0].mxu0
      %v1096 = vadd.f32 0.0, %v1095
      %v1097 = vpop.f32.mrb[0].mxu0
      %v1098 = vadd.f32 0.0, %v1097
      %v1099 = vpop.f32.mrb[0].mxu0
      %v1100 = vadd.f32 0.0, %v1099
      %v1101 = vpop.f32.mrb[0].mxu0
      %v1102 = vadd.f32 0.0, %v1101
      %1103 = vmatprep.mubr.bf16.mxu0 0
      %1104 = vmatmul.mubr.bf16.gmra.mrb[0].mxu0 %v801
      %v1105 = vpop.f32.mrb[0].mxu0
      %v1106 = vadd.f32 0.0, %v1105
      %v1107 = vpop.f32.mrb[0].mxu0
      %v1108 = vadd.f32 0.0, %v1107
      %v1109 = vpop.f32.mrb[0].mxu0
      %v1110 = vadd.f32 0.0, %v1109
      %v1111 = vpop.f32.mrb[0].mxu0
      %v1112 = vadd.f32 0.0, %v1111
      %1113 = vmatprep.mubr.bf16.mxu0 0
      %1114 = vmatmul.mubr.bf16.gmra.mrb[0].mxu0 %v804
      %v1115 = vpop.f32.mrb[0].mxu0
      %v1116 = vadd.f32 0.0, %v1115
      %v1117 = vpop.f32.mrb[0].mxu0
      %v1118 = vadd.f32 0.0, %v1117
      %v1119 = vpop.f32.mrb[0].mxu0
      %v1120 = vadd.f32 0.0, %v1119
      %v1121 = vpop.f32.mrb[0].mxu0
      %v1122 = vadd.f32 0.0, %v1121
      %1123 = vmatprep.mubr.bf16.mxu0 0
      %1124 = vmatmul.mubr.bf16.gmra.mrb[0].mxu0 %v807
      %v1125 = vpop.f32.mrb[0].mxu0
      %v1126 = vadd.f32 0.0, %v1125
      %v1127 = vpop.f32.mrb[0].mxu0
      %v1128 = vadd.f32 0.0, %v1127
      %v1129 = vpop.f32.mrb[0].mxu0
      %v1130 = vadd.f32 0.0, %v1129
      %v1131 = vpop.f32.mrb[0].mxu0
      %v1132 = vadd.f32 0.0, %v1131
      %1133 = vmatprep.mubr.bf16.mxu0 0
      %1134 = vmatmul.mubr.bf16.gmra.mrb[0].mxu0 %v810
      %v1135 = vpop.f32.mrb[0].mxu0
      %v1136 = vadd.f32 0.0, %v1135
      %v1137 = vpop.f32.mrb[0].mxu0
      %v1138 = vadd.f32 0.0, %v1137
      %v1139 = vpop.f32.mrb[0].mxu0
      %v1140 = vadd.f32 0.0, %v1139
      %v1141 = vpop.f32.mrb[0].mxu0
      %v1142 = vadd.f32 0.0, %v1141
      %1143 = vmatprep.mubr.bf16.mxu0 0
      %1144 = vmatmul.mubr.bf16.gmra.mrb[0].mxu0 %v813
      %v1145 = vpop.f32.mrb[0].mxu0
      %v1146 = vadd.f32 0.0, %v1145
      %v1147 = vpop.f32.mrb[0].mxu0
      %v1148 = vadd.f32 0.0, %v1147
      %v1149 = vpop.f32.mrb[0].mxu0
      %v1150 = vadd.f32 0.0, %v1149
      %v1151 = vpop.f32.mrb[0].mxu0
      %v1152 = vadd.f32 0.0, %v1151
      %1153 = vmatprep.mubr.bf16.mxu0 0
      %1154 = vmatmul.mubr.bf16.gmra.mrb[0].mxu0 %v816
      %v1155 = vpop.f32.mrb[0].mxu0
      %v1156 = vadd.f32 0.0, %v1155
      %v1157 = vpop.f32.mrb[0].mxu0
      %v1158 = vadd.f32 0.0, %v1157
      %v1159 = vpop.f32.mrb[0].mxu0
      %v1160 = vadd.f32 0.0, %v1159
      %v1161 = vpop.f32.mrb[0].mxu0
      %v1162 = vadd.f32 0.0, %v1161
      %1163 = vmatprep.mubr.bf16.mxu0 0
      %1164 = vmatmul.mubr.bf16.gmra.mrb[0].mxu0 %v819
      %v1165 = vpop.f32.mrb[0].mxu0
      %v1166 = vadd.f32 0.0, %v1165
      %v1167 = vpop.f32.mrb[0].mxu0
      %v1168 = vadd.f32 0.0, %v1167
      %v1169 = vpop.f32.mrb[0].mxu0
      %v1170 = vadd.f32 0.0, %v1169
      %v1171 = vpop.f32.mrb[0].mxu0
      %v1172 = vadd.f32 0.0, %v1171
      %1173 = vdwg.mxu0
      %v1174 = vld [vmem:[#allocation2] sm:$0xff]
      %v1175 = vld [vmem:[#allocation2 + $0x8] sm:$0xff]
      %v1176 = vld [vmem:[#allocation2 + $0x10] sm:$0xff]
      %v1177 = vld [vmem:[#allocation2 + $0x18] sm:$0xff]
      %v1178 = vld [vmem:[#allocation2 + $0x20] sm:$0xff]
      %v1179 = vld [vmem:[#allocation2 + $0x28] sm:$0xff]
      %v1180 = vld [vmem:[#allocation2 + $0x30] sm:$0xff]
      %v1181 = vld [vmem:[#allocation2 + $0x38] sm:$0xff]
      %v1182 = vld [vmem:[#allocation2 + $0x40] sm:$0xff]
      %v1183 = vld [vmem:[#allocation2 + $0x48] sm:$0xff]
      %v1184 = vld [vmem:[#allocation2 + $0x50] sm:$0xff]
      %v1185 = vld [vmem:[#allocation2 + $0x58] sm:$0xff]
      %v1186 = vld [vmem:[#allocation2 + $0x60] sm:$0xff]
      %v1187 = vld [vmem:[#allocation2 + $0x68] sm:$0xff]
      %v1188 = vld [vmem:[#allocation2 + $0x70] sm:$0xff]
      %v1189 = vld [vmem:[#allocation2 + $0x78] sm:$0xff]
      %v1190 = vld [vmem:[#allocation2 + $0x80] sm:$0xff]
      %v1191 = vld [vmem:[#allocation2 + $0x88] sm:$0xff]
      %v1192 = vld [vmem:[#allocation2 + $0x90] sm:$0xff]
      %v1193 = vld [vmem:[#allocation2 + $0x98] sm:$0xff]
      %v1194 = vld [vmem:[#allocation2 + $0xa0] sm:$0xff]
      %v1195 = vld [vmem:[#allocation2 + $0xa8] sm:$0xff]
      %v1196 = vld [vmem:[#allocation2 + $0xb0] sm:$0xff]
      %v1197 = vld [vmem:[#allocation2 + $0xb8] sm:$0xff]
      %v1198 = vld [vmem:[#allocation2 + $0xc0] sm:$0xff]
      %v1199 = vld [vmem:[#allocation2 + $0xc8] sm:$0xff]
      %v1200 = vld [vmem:[#allocation2 + $0xd0] sm:$0xff]
      %v1201 = vld [vmem:[#allocation2 + $0xd8] sm:$0xff]
      %v1202 = vld [vmem:[#allocation2 + $0xe0] sm:$0xff]
      %v1203 = vld [vmem:[#allocation2 + $0xe8] sm:$0xff]
      %v1204 = vld [vmem:[#allocation2 + $0xf0] sm:$0xff]
      %v1205 = vld [vmem:[#allocation2 + $0xf8] sm:$0xff]
      %v1206 = vld [vmem:[#allocation2 + $0x100] sm:$0xff]
      %v1207 = vld [vmem:[#allocation2 + $0x108] sm:$0xff]
      %v1208 = vld [vmem:[#allocation2 + $0x110] sm:$0xff]
      %v1209 = vld [vmem:[#allocation2 + $0x118] sm:$0xff]
      %v1210 = vld [vmem:[#allocation2 + $0x120] sm:$0xff]
      %v1211 = vld [vmem:[#allocation2 + $0x128] sm:$0xff]
      %v1212 = vld [vmem:[#allocation2 + $0x130] sm:$0xff]
      %v1213 = vld [vmem:[#allocation2 + $0x138] sm:$0xff]
      %v1214 = vld [vmem:[#allocation2 + $0x140] sm:$0xff]
      %v1215 = vld [vmem:[#allocation2 + $0x148] sm:$0xff]
      %v1216 = vld [vmem:[#allocation2 + $0x150] sm:$0xff]
      %v1217 = vld [vmem:[#allocation2 + $0x158] sm:$0xff]
      %v1218 = vld [vmem:[#allocation2 + $0x160] sm:$0xff]
      %v1219 = vld [vmem:[#allocation2 + $0x168] sm:$0xff]
      %v1220 = vld [vmem:[#allocation2 + $0x170] sm:$0xff]
      %v1221 = vld [vmem:[#allocation2 + $0x178] sm:$0xff]
      %v1222 = vld [vmem:[#allocation2 + $0x180] sm:$0xff]
      %v1223 = vld [vmem:[#allocation2 + $0x188] sm:$0xff]
      %v1224 = vld [vmem:[#allocation2 + $0x190] sm:$0xff]
      %v1225 = vld [vmem:[#allocation2 + $0x198] sm:$0xff]
      %v1226 = vld [vmem:[#allocation2 + $0x1a0] sm:$0xff]
      %v1227 = vld [vmem:[#allocation2 + $0x1a8] sm:$0xff]
      %v1228 = vld [vmem:[#allocation2 + $0x1b0] sm:$0xff]
      %v1229 = vld [vmem:[#allocation2 + $0x1b8] sm:$0xff]
      %v1230 = vld [vmem:[#allocation2 + $0x1c0] sm:$0xff]
      %v1231 = vld [vmem:[#allocation2 + $0x1c8] sm:$0xff]
      %v1232 = vld [vmem:[#allocation2 + $0x1d0] sm:$0xff]
      %v1233 = vld [vmem:[#allocation2 + $0x1d8] sm:$0xff]
      %v1234 = vld [vmem:[#allocation2 + $0x1e0] sm:$0xff]
      %v1235 = vld [vmem:[#allocation2 + $0x1e8] sm:$0xff]
      %v1236 = vld [vmem:[#allocation2 + $0x1f0] sm:$0xff]
      %v1237 = vld [vmem:[#allocation2 + $0x1f8] sm:$0xff]
      %v1238 = vmax.f32 %v856, %v858
      %1239 = vmax.xlane.f32.xlu0 %v1238
      %v1240 = vpop.xlane.xlu0 %1239
      %v1241 = vmax.f32 %v860, %v862
      %1242 = vmax.xlane.f32.xlu0 %v1241
      %v1243 = vpop.xlane.xlu0 %1242
      %v1244 = vmax.f32 %v866, %v868
      %1245 = vmax.xlane.f32.xlu0 %v1244
      %v1246 = vpop.xlane.xlu0 %1245
      %v1247 = vmax.f32 %v870, %v872
      %1248 = vmax.xlane.f32.xlu0 %v1247
      %v1249 = vpop.xlane.xlu0 %1248
      %v1250 = vmax.f32 %v876, %v878
      %1251 = vmax.xlane.f32.xlu0 %v1250
      %v1252 = vpop.xlane.xlu0 %1251
      %v1253 = vmax.f32 %v880, %v882
      %1254 = vmax.xlane.f32.xlu0 %v1253
      %v1255 = vpop.xlane.xlu0 %1254
      %v1256 = vmax.f32 %v886, %v888
      %1257 = vmax.xlane.f32.xlu0 %v1256
      %v1258 = vpop.xlane.xlu0 %1257
      %v1259 = vmax.f32 %v890, %v892
      %1260 = vmax.xlane.f32.xlu0 %v1259
      %v1261 = vpop.xlane.xlu0 %1260
      %v1262 = vmax.f32 %v896, %v898
      %1263 = vmax.xlane.f32.xlu0 %v1262
      %v1264 = vpop.xlane.xlu0 %1263
      %v1265 = vmax.f32 %v900, %v902
      %1266 = vmax.xlane.f32.xlu0 %v1265
      %v1267 = vpop.xlane.xlu0 %1266
      %v1268 = vmax.f32 %v906, %v908
      %1269 = vmax.xlane.f32.xlu0 %v1268
      %v1270 = vpop.xlane.xlu0 %1269
      %v1271 = vmax.f32 %v910, %v912
      %1272 = vmax.xlane.f32.xlu0 %v1271
      %v1273 = vpop.xlane.xlu0 %1272
      %v1274 = vmax.f32 %v916, %v918
      %1275 = vmax.xlane.f32.xlu0 %v1274
      %v1276 = vpop.xlane.xlu0 %1275
      %v1277 = vmax.f32 %v920, %v922
      %1278 = vmax.xlane.f32.xlu0 %v1277
      %v1279 = vpop.xlane.xlu0 %1278
      %v1280 = vmax.f32 %v926, %v928
      %1281 = vmax.xlane.f32.xlu0 %v1280
      %v1282 = vpop.xlane.xlu0 %1281
      %v1283 = vmax.f32 %v930, %v932
      %1284 = vmax.xlane.f32.xlu0 %v1283
      %v1285 = vpop.xlane.xlu0 %1284
      %v1286 = vmax.f32 %v936, %v938
      %1287 = vmax.xlane.f32.xlu0 %v1286
      %v1288 = vpop.xlane.xlu0 %1287
      %v1289 = vmax.f32 %v940, %v942
      %1290 = vmax.xlane.f32.xlu0 %v1289
      %v1291 = vpop.xlane.xlu0 %1290
      %v1292 = vmax.f32 %v946, %v948
      %1293 = vmax.xlane.f32.xlu0 %v1292
      %v1294 = vpop.xlane.xlu0 %1293
      %v1295 = vmax.f32 %v950, %v952
      %1296 = vmax.xlane.f32.xlu0 %v1295
      %v1297 = vpop.xlane.xlu0 %1296
      %v1298 = vmax.f32 %v956, %v958
      %1299 = vmax.xlane.f32.xlu0 %v1298
      %v1300 = vpop.xlane.xlu0 %1299
      %v1301 = vmax.f32 %v960, %v962
      %1302 = vmax.xlane.f32.xlu0 %v1301
      %v1303 = vpop.xlane.xlu0 %1302
      %v1304 = vmax.f32 %v966, %v968
      %1305 = vmax.xlane.f32.xlu0 %v1304
      %v1306 = vpop.xlane.xlu0 %1305
      %v1307 = vmax.f32 %v970, %v972
      %1308 = vmax.xlane.f32.xlu0 %v1307
      %v1309 = vpop.xlane.xlu0 %1308
      %v1310 = vmax.f32 %v976, %v978
      %1311 = vmax.xlane.f32.xlu0 %v1310
      %v1312 = vpop.xlane.xlu0 %1311
      %v1313 = vmax.f32 %v980, %v982
      %1314 = vmax.xlane.f32.xlu0 %v1313
      %v1315 = vpop.xlane.xlu0 %1314
      %v1316 = vmax.f32 %v986, %v988
      %1317 = vmax.xlane.f32.xlu0 %v1316
      %v1318 = vpop.xlane.xlu0 %1317
      %v1319 = vmax.f32 %v990, %v992
      %1320 = vmax.xlane.f32.xlu0 %v1319
      %v1321 = vpop.xlane.xlu0 %1320
      %v1322 = vmax.f32 %v996, %v998
      %1323 = vmax.xlane.f32.xlu0 %v1322
      %v1324 = vpop.xlane.xlu0 %1323
      %v1325 = vmax.f32 %v1000, %v1002
      %1326 = vmax.xlane.f32.xlu0 %v1325
      %v1327 = vpop.xlane.xlu0 %1326
      %v1328 = vmax.f32 %v1006, %v1008
      %1329 = vmax.xlane.f32.xlu0 %v1328
      %v1330 = vpop.xlane.xlu0 %1329
      %v1331 = vmax.f32 %v1010, %v1012
      %1332 = vmax.xlane.f32.xlu0 %v1331
      %v1333 = vpop.xlane.xlu0 %1332
      %v1334 = vmax.f32 %v1016, %v1018
      %1335 = vmax.xlane.f32.xlu0 %v1334
      %v1336 = vpop.xlane.xlu0 %1335
      %v1337 = vmax.f32 %v1020, %v1022
      %1338 = vmax.xlane.f32.xlu0 %v1337
      %v1339 = vpop.xlane.xlu0 %1338
      %v1340 = vmax.f32 %v1026, %v1028
      %1341 = vmax.xlane.f32.xlu0 %v1340
      %v1342 = vpop.xlane.xlu0 %1341
      %v1343 = vmax.f32 %v1030, %v1032
      %1344 = vmax.xlane.f32.xlu0 %v1343
      %v1345 = vpop.xlane.xlu0 %1344
      %v1346 = vmax.f32 %v1036, %v1038
      %1347 = vmax.xlane.f32.xlu0 %v1346
      %v1348 = vpop.xlane.xlu0 %1347
      %v1349 = vmax.f32 %v1040, %v1042
      %1350 = vmax.xlane.f32.xlu0 %v1349
      %v1351 = vpop.xlane.xlu0 %1350
      %v1352 = vmax.f32 %v1046, %v1048
      %1353 = vmax.xlane.f32.xlu0 %v1352
      %v1354 = vpop.xlane.xlu0 %1353
      %v1355 = vmax.f32 %v1050, %v1052
      %1356 = vmax.xlane.f32.xlu0 %v1355
      %v1357 = vpop.xlane.xlu0 %1356
      %v1358 = vmax.f32 %v1056, %v1058
      %1359 = vmax.xlane.f32.xlu0 %v1358
      %v1360 = vpop.xlane.xlu0 %1359
      %v1361 = vmax.f32 %v1060, %v1062
      %1362 = vmax.xlane.f32.xlu0 %v1361
      %v1363 = vpop.xlane.xlu0 %1362
      %v1364 = vmax.f32 %v1066, %v1068
      %1365 = vmax.xlane.f32.xlu0 %v1364
      %v1366 = vpop.xlane.xlu0 %1365
      %v1367 = vmax.f32 %v1070, %v1072
      %1368 = vmax.xlane.f32.xlu0 %v1367
      %v1369 = vpop.xlane.xlu0 %1368
      %v1370 = vmax.f32 %v1076, %v1078
      %1371 = vmax.xlane.f32.xlu0 %v1370
      %v1372 = vpop.xlane.xlu0 %1371
      %v1373 = vmax.f32 %v1080, %v1082
      %1374 = vmax.xlane.f32.xlu0 %v1373
      %v1375 = vpop.xlane.xlu0 %1374
      %v1376 = vmax.f32 %v1086, %v1088
      %1377 = vmax.xlane.f32.xlu0 %v1376
      %v1378 = vpop.xlane.xlu0 %1377
      %v1379 = vmax.f32 %v1090, %v1092
      %1380 = vmax.xlane.f32.xlu0 %v1379
      %v1381 = vpop.xlane.xlu0 %1380
      %v1382 = vmax.f32 %v1096, %v1098
      %1383 = vmax.xlane.f32.xlu0 %v1382
      %v1384 = vpop.xlane.xlu0 %1383
      %v1385 = vmax.f32 %v1100, %v1102
      %1386 = vmax.xlane.f32.xlu0 %v1385
      %v1387 = vpop.xlane.xlu0 %1386
      %v1388 = vmax.f32 %v1106, %v1108
      %1389 = vmax.xlane.f32.xlu0 %v1388
      %v1390 = vpop.xlane.xlu0 %1389
      %v1391 = vmax.f32 %v1110, %v1112
      %1392 = vmax.xlane.f32.xlu0 %v1391
      %v1393 = vpop.xlane.xlu0 %1392
      %v1394 = vmax.f32 %v1116, %v1118
      %1395 = vmax.xlane.f32.xlu0 %v1394
      %v1396 = vpop.xlane.xlu0 %1395
      %v1397 = vmax.f32 %v1120, %v1122
      %1398 = vmax.xlane.f32.xlu0 %v1397
      %v1399 = vpop.xlane.xlu0 %1398
      %v1400 = vmax.f32 %v1126, %v1128
      %1401 = vmax.xlane.f32.xlu0 %v1400
      %v1402 = vpop.xlane.xlu0 %1401
      %v1403 = vmax.f32 %v1130, %v1132
      %1404 = vmax.xlane.f32.xlu0 %v1403
      %v1405 = vpop.xlane.xlu0 %1404
      %v1406 = vmax.f32 %v1136, %v1138
      %1407 = vmax.xlane.f32.xlu0 %v1406
      %v1408 = vpop.xlane.xlu0 %1407
      %v1409 = vmax.f32 %v1140, %v1142
      %1410 = vmax.xlane.f32.xlu0 %v1409
      %v1411 = vpop.xlane.xlu0 %1410
      %v1412 = vmax.f32 %v1146, %v1148
      %1413 = vmax.xlane.f32.xlu0 %v1412
      %v1414 = vpop.xlane.xlu0 %1413
      %v1415 = vmax.f32 %v1150, %v1152
      %1416 = vmax.xlane.f32.xlu0 %v1415
      %v1417 = vpop.xlane.xlu0 %1416
      %v1418 = vmax.f32 %v1156, %v1158
      %1419 = vmax.xlane.f32.xlu0 %v1418
      %v1420 = vpop.xlane.xlu0 %1419
      %v1421 = vmax.f32 %v1160, %v1162
      %1422 = vmax.xlane.f32.xlu0 %v1421
      %v1423 = vpop.xlane.xlu0 %1422
      %v1424 = vmax.f32 %v1166, %v1168
      %1425 = vmax.xlane.f32.xlu0 %v1424
      %v1426 = vpop.xlane.xlu0 %1425
      %v1427 = vmax.f32 %v1170, %v1172
      %1428 = vmax.xlane.f32.xlu0 %v1427
      %v1429 = vpop.xlane.xlu0 %1428
      %v1430 = vmax.f32 %v1174, %v1240
      %v1431 = vmax.f32 %v1175, %v1243
      %v1432 = vmax.f32 %v1176, %v1246
      %v1433 = vmax.f32 %v1177, %v1249
      %v1434 = vmax.f32 %v1178, %v1252
      %v1435 = vmax.f32 %v1179, %v1255
      %v1436 = vmax.f32 %v1180, %v1258
      %v1437 = vmax.f32 %v1181, %v1261
      %v1438 = vmax.f32 %v1182, %v1264
      %v1439 = vmax.f32 %v1183, %v1267
      %v1440 = vmax.f32 %v1184, %v1270
      %v1441 = vmax.f32 %v1185, %v1273
      %v1442 = vmax.f32 %v1186, %v1276
      %v1443 = vmax.f32 %v1187, %v1279
      %v1444 = vmax.f32 %v1188, %v1282
      %v1445 = vmax.f32 %v1189, %v1285
      %v1446 = vmax.f32 %v1190, %v1288
      %v1447 = vmax.f32 %v1191, %v1291
      %v1448 = vmax.f32 %v1192, %v1294
      %v1449 = vmax.f32 %v1193, %v1297
      %v1450 = vmax.f32 %v1194, %v1300
      %v1451 = vmax.f32 %v1195, %v1303
      %v1452 = vmax.f32 %v1196, %v1306
      %v1453 = vmax.f32 %v1197, %v1309
      %v1454 = vmax.f32 %v1198, %v1312
      %v1455 = vmax.f32 %v1199, %v1315
      %v1456 = vmax.f32 %v1200, %v1318
      %v1457 = vmax.f32 %v1201, %v1321
      %v1458 = vmax.f32 %v1202, %v1324
      %v1459 = vmax.f32 %v1203, %v1327
      %v1460 = vmax.f32 %v1204, %v1330
      %v1461 = vmax.f32 %v1205, %v1333
      %v1462 = vmax.f32 %v1206, %v1336
      %v1463 = vmax.f32 %v1207, %v1339
      %v1464 = vmax.f32 %v1208, %v1342
      %v1465 = vmax.f32 %v1209, %v1345
      %v1466 = vmax.f32 %v1210, %v1348
      %v1467 = vmax.f32 %v1211, %v1351
      %v1468 = vmax.f32 %v1212, %v1354
      %v1469 = vmax.f32 %v1213, %v1357
      %v1470 = vmax.f32 %v1214, %v1360
      %v1471 = vmax.f32 %v1215, %v1363
      %v1472 = vmax.f32 %v1216, %v1366
      %v1473 = vmax.f32 %v1217, %v1369
      %v1474 = vmax.f32 %v1218, %v1372
      %v1475 = vmax.f32 %v1219, %v1375
      %v1476 = vmax.f32 %v1220, %v1378
      %v1477 = vmax.f32 %v1221, %v1381
      %v1478 = vmax.f32 %v1222, %v1384
      %v1479 = vmax.f32 %v1223, %v1387
      %v1480 = vmax.f32 %v1224, %v1390
      %v1481 = vmax.f32 %v1225, %v1393
      %v1482 = vmax.f32 %v1226, %v1396
      %v1483 = vmax.f32 %v1227, %v1399
      %v1484 = vmax.f32 %v1228, %v1402
      %v1485 = vmax.f32 %v1229, %v1405
      %v1486 = vmax.f32 %v1230, %v1408
      %v1487 = vmax.f32 %v1231, %v1411
      %v1488 = vmax.f32 %v1232, %v1414
      %v1489 = vmax.f32 %v1233, %v1417
      %v1490 = vmax.f32 %v1234, %v1420
      %v1491 = vmax.f32 %v1235, %v1423
      %v1492 = vmax.f32 %v1236, %v1426
      %v1493 = vmax.f32 %v1237, %v1429
      %v1494 = vsub.f32 %v1174, %v1430
      %v1495 = vsub.f32 %v1175, %v1431
      %v1496 = vsub.f32 %v1176, %v1432
      %v1497 = vsub.f32 %v1177, %v1433
      %v1498 = vsub.f32 %v1178, %v1434
      %v1499 = vsub.f32 %v1179, %v1435
      %v1500 = vsub.f32 %v1180, %v1436
      %v1501 = vsub.f32 %v1181, %v1437
      %v1502 = vsub.f32 %v1182, %v1438
      %v1503 = vsub.f32 %v1183, %v1439
      %v1504 = vsub.f32 %v1184, %v1440
      %v1505 = vsub.f32 %v1185, %v1441
      %v1506 = vsub.f32 %v1186, %v1442
      %v1507 = vsub.f32 %v1187, %v1443
      %v1508 = vsub.f32 %v1188, %v1444
      %v1509 = vsub.f32 %v1189, %v1445
      %v1510 = vsub.f32 %v1190, %v1446
      %v1511 = vsub.f32 %v1191, %v1447
      %v1512 = vsub.f32 %v1192, %v1448
      %v1513 = vsub.f32 %v1193, %v1449
      %v1514 = vsub.f32 %v1194, %v1450
      %v1515 = vsub.f32 %v1195, %v1451
      %v1516 = vsub.f32 %v1196, %v1452
      %v1517 = vsub.f32 %v1197, %v1453
      %v1518 = vsub.f32 %v1198, %v1454
      %v1519 = vsub.f32 %v1199, %v1455
      %v1520 = vsub.f32 %v1200, %v1456
      %v1521 = vsub.f32 %v1201, %v1457
      %v1522 = vsub.f32 %v1202, %v1458
      %v1523 = vsub.f32 %v1203, %v1459
      %v1524 = vsub.f32 %v1204, %v1460
      %v1525 = vsub.f32 %v1205, %v1461
      %v1526 = vsub.f32 %v1206, %v1462
      %v1527 = vsub.f32 %v1207, %v1463
      %v1528 = vsub.f32 %v1208, %v1464
      %v1529 = vsub.f32 %v1209, %v1465
      %v1530 = vsub.f32 %v1210, %v1466
      %v1531 = vsub.f32 %v1211, %v1467
      %v1532 = vsub.f32 %v1212, %v1468
      %v1533 = vsub.f32 %v1213, %v1469
      %v1534 = vsub.f32 %v1214, %v1470
      %v1535 = vsub.f32 %v1215, %v1471
      %v1536 = vsub.f32 %v1216, %v1472
      %v1537 = vsub.f32 %v1217, %v1473
      %v1538 = vsub.f32 %v1218, %v1474
      %v1539 = vsub.f32 %v1219, %v1475
      %v1540 = vsub.f32 %v1220, %v1476
      %v1541 = vsub.f32 %v1221, %v1477
      %v1542 = vsub.f32 %v1222, %v1478
      %v1543 = vsub.f32 %v1223, %v1479
      %v1544 = vsub.f32 %v1224, %v1480
      %v1545 = vsub.f32 %v1225, %v1481
      %v1546 = vsub.f32 %v1226, %v1482
      %v1547 = vsub.f32 %v1227, %v1483
      %v1548 = vsub.f32 %v1228, %v1484
      %v1549 = vsub.f32 %v1229, %v1485
      %v1550 = vsub.f32 %v1230, %v1486
      %v1551 = vsub.f32 %v1231, %v1487
      %v1552 = vsub.f32 %v1232, %v1488
      %v1553 = vsub.f32 %v1233, %v1489
      %v1554 = vsub.f32 %v1234, %v1490
      %v1555 = vsub.f32 %v1235, %v1491
      %v1556 = vsub.f32 %v1236, %v1492
      %v1557 = vsub.f32 %v1237, %v1493
      %v1558 = vmul.f32 %v1494, 1.442695
      %v1559 = vpow.pop %v1558
      %v1560 = vmul.f32 %v1495, 1.442695
      %v1561 = vpow.pop %v1560
      %v1562 = vmul.f32 %v1496, 1.442695
      %v1563 = vpow.pop %v1562
      %v1564 = vmul.f32 %v1497, 1.442695
      %v1565 = vpow.pop %v1564
      %v1566 = vmul.f32 %v1498, 1.442695
      %v1567 = vpow.pop %v1566
      %v1568 = vmul.f32 %v1499, 1.442695
      %v1569 = vpow.pop %v1568
      %v1570 = vmul.f32 %v1500, 1.442695
      %v1571 = vpow.pop %v1570
      %v1572 = vmul.f32 %v1501, 1.442695
      %v1573 = vpow.pop %v1572
      %v1574 = vmul.f32 %v1502, 1.442695
      %v1575 = vpow.pop %v1574
      %v1576 = vmul.f32 %v1503, 1.442695
      %v1577 = vpow.pop %v1576
      %v1578 = vmul.f32 %v1504, 1.442695
      %v1579 = vpow.pop %v1578
      %v1580 = vmul.f32 %v1505, 1.442695
      %v1581 = vpow.pop %v1580
      %v1582 = vmul.f32 %v1506, 1.442695
      %v1583 = vpow.pop %v1582
      %v1584 = vmul.f32 %v1507, 1.442695
      %v1585 = vpow.pop %v1584
      %v1586 = vmul.f32 %v1508, 1.442695
      %v1587 = vpow.pop %v1586
      %v1588 = vmul.f32 %v1509, 1.442695
      %v1589 = vpow.pop %v1588
      %v1590 = vmul.f32 %v1510, 1.442695
      %v1591 = vpow.pop %v1590
      %v1592 = vmul.f32 %v1511, 1.442695
      %v1593 = vpow.pop %v1592
      %v1594 = vmul.f32 %v1512, 1.442695
      %v1595 = vpow.pop %v1594
      %v1596 = vmul.f32 %v1513, 1.442695
      %v1597 = vpow.pop %v1596
      %v1598 = vmul.f32 %v1514, 1.442695
      %v1599 = vpow.pop %v1598
      %v1600 = vmul.f32 %v1515, 1.442695
      %v1601 = vpow.pop %v1600
      %v1602 = vmul.f32 %v1516, 1.442695
      %v1603 = vpow.pop %v1602
      %v1604 = vmul.f32 %v1517, 1.442695
      %v1605 = vpow.pop %v1604
      %v1606 = vmul.f32 %v1518, 1.442695
      %v1607 = vpow.pop %v1606
      %v1608 = vmul.f32 %v1519, 1.442695
      %v1609 = vpow.pop %v1608
      %v1610 = vmul.f32 %v1520, 1.442695
      %v1611 = vpow.pop %v1610
      %v1612 = vmul.f32 %v1521, 1.442695
      %v1613 = vpow.pop %v1612
      %v1614 = vmul.f32 %v1522, 1.442695
      %v1615 = vpow.pop %v1614
      %v1616 = vmul.f32 %v1523, 1.442695
      %v1617 = vpow.pop %v1616
      %v1618 = vmul.f32 %v1524, 1.442695
      %v1619 = vpow.pop %v1618
      %v1620 = vmul.f32 %v1525, 1.442695
      %v1621 = vpow.pop %v1620
      %v1622 = vmul.f32 %v1526, 1.442695
      %v1623 = vpow.pop %v1622
      %v1624 = vmul.f32 %v1527, 1.442695
      %v1625 = vpow.pop %v1624
      %v1626 = vmul.f32 %v1528, 1.442695
      %v1627 = vpow.pop %v1626
      %v1628 = vmul.f32 %v1529, 1.442695
      %v1629 = vpow.pop %v1628
      %v1630 = vmul.f32 %v1530, 1.442695
      %v1631 = vpow.pop %v1630
      %v1632 = vmul.f32 %v1531, 1.442695
      %v1633 = vpow.pop %v1632
      %v1634 = vmul.f32 %v1532, 1.442695
      %v1635 = vpow.pop %v1634
      %v1636 = vmul.f32 %v1533, 1.442695
      %v1637 = vpow.pop %v1636
      %v1638 = vmul.f32 %v1534, 1.442695
      %v1639 = vpow.pop %v1638
      %v1640 = vmul.f32 %v1535, 1.442695
      %v1641 = vpow.pop %v1640
      %v1642 = vmul.f32 %v1536, 1.442695
      %v1643 = vpow.pop %v1642
      %v1644 = vmul.f32 %v1537, 1.442695
      %v1645 = vpow.pop %v1644
      %v1646 = vmul.f32 %v1538, 1.442695
      %v1647 = vpow.pop %v1646
      %v1648 = vmul.f32 %v1539, 1.442695
      %v1649 = vpow.pop %v1648
      %v1650 = vmul.f32 %v1540, 1.442695
      %v1651 = vpow.pop %v1650
      %v1652 = vmul.f32 %v1541, 1.442695
      %v1653 = vpow.pop %v1652
      %v1654 = vmul.f32 %v1542, 1.442695
      %v1655 = vpow.pop %v1654
      %v1656 = vmul.f32 %v1543, 1.442695
      %v1657 = vpow.pop %v1656
      %v1658 = vmul.f32 %v1544, 1.442695
      %v1659 = vpow.pop %v1658
      %v1660 = vmul.f32 %v1545, 1.442695
      %v1661 = vpow.pop %v1660
      %v1662 = vmul.f32 %v1546, 1.442695
      %v1663 = vpow.pop %v1662
      %v1664 = vmul.f32 %v1547, 1.442695
      %v1665 = vpow.pop %v1664
      %v1666 = vmul.f32 %v1548, 1.442695
      %v1667 = vpow.pop %v1666
      %v1668 = vmul.f32 %v1549, 1.442695
      %v1669 = vpow.pop %v1668
      %v1670 = vmul.f32 %v1550, 1.442695
      %v1671 = vpow.pop %v1670
      %v1672 = vmul.f32 %v1551, 1.442695
      %v1673 = vpow.pop %v1672
      %v1674 = vmul.f32 %v1552, 1.442695
      %v1675 = vpow.pop %v1674
      %v1676 = vmul.f32 %v1553, 1.442695
      %v1677 = vpow.pop %v1676
      %v1678 = vmul.f32 %v1554, 1.442695
      %v1679 = vpow.pop %v1678
      %v1680 = vmul.f32 %v1555, 1.442695
      %v1681 = vpow.pop %v1680
      %v1682 = vmul.f32 %v1556, 1.442695
      %v1683 = vpow.pop %v1682
      %v1684 = vmul.f32 %v1557, 1.442695
      %v1685 = vpow.pop %v1684
      %1687 = vset.pattern.permute.xlu0 0
      %1688 = vperm.xlu0 %1687, %v1430
      %v1689 = vpop.permute.xlu0 %1688
      %1692 = vset.pattern.permute.xlu0 0
      %1693 = vperm.xlu0 %1692, %v1431
      %v1694 = vpop.permute.xlu0 %1693
      %1697 = vset.pattern.permute.xlu0 0
      %1698 = vperm.xlu0 %1697, %v1432
      %v1699 = vpop.permute.xlu0 %1698
      %1702 = vset.pattern.permute.xlu0 0
      %1703 = vperm.xlu0 %1702, %v1433
      %v1704 = vpop.permute.xlu0 %1703
      %1707 = vset.pattern.permute.xlu0 0
      %1708 = vperm.xlu0 %1707, %v1434
      %v1709 = vpop.permute.xlu0 %1708
      %1712 = vset.pattern.permute.xlu0 0
      %1713 = vperm.xlu0 %1712, %v1435
      %v1714 = vpop.permute.xlu0 %1713
      %1717 = vset.pattern.permute.xlu0 0
      %1718 = vperm.xlu0 %1717, %v1436
      %v1719 = vpop.permute.xlu0 %1718
      %1722 = vset.pattern.permute.xlu0 0
      %1723 = vperm.xlu0 %1722, %v1437
      %v1724 = vpop.permute.xlu0 %1723
      %1727 = vset.pattern.permute.xlu0 0
      %1728 = vperm.xlu0 %1727, %v1438
      %v1729 = vpop.permute.xlu0 %1728
      %1732 = vset.pattern.permute.xlu0 0
      %1733 = vperm.xlu0 %1732, %v1439
      %v1734 = vpop.permute.xlu0 %1733
      %1737 = vset.pattern.permute.xlu0 0
      %1738 = vperm.xlu0 %1737, %v1440
      %v1739 = vpop.permute.xlu0 %1738
      %1742 = vset.pattern.permute.xlu0 0
      %1743 = vperm.xlu0 %1742, %v1441
      %v1744 = vpop.permute.xlu0 %1743
      %1747 = vset.pattern.permute.xlu0 0
      %1748 = vperm.xlu0 %1747, %v1442
      %v1749 = vpop.permute.xlu0 %1748
      %1752 = vset.pattern.permute.xlu0 0
      %1753 = vperm.xlu0 %1752, %v1443
      %v1754 = vpop.permute.xlu0 %1753
      %1757 = vset.pattern.permute.xlu0 0
      %1758 = vperm.xlu0 %1757, %v1444
      %v1759 = vpop.permute.xlu0 %1758
      %1762 = vset.pattern.permute.xlu0 0
      %1763 = vperm.xlu0 %1762, %v1445
      %v1764 = vpop.permute.xlu0 %1763
      %1767 = vset.pattern.permute.xlu0 0
      %1768 = vperm.xlu0 %1767, %v1446
      %v1769 = vpop.permute.xlu0 %1768
      %1772 = vset.pattern.permute.xlu0 0
      %1773 = vperm.xlu0 %1772, %v1447
      %v1774 = vpop.permute.xlu0 %1773
      %1777 = vset.pattern.permute.xlu0 0
      %1778 = vperm.xlu0 %1777, %v1448
      %v1779 = vpop.permute.xlu0 %1778
      %1782 = vset.pattern.permute.xlu0 0
      %1783 = vperm.xlu0 %1782, %v1449
      %v1784 = vpop.permute.xlu0 %1783
      %1787 = vset.pattern.permute.xlu0 0
      %1788 = vperm.xlu0 %1787, %v1450
      %v1789 = vpop.permute.xlu0 %1788
      %1792 = vset.pattern.permute.xlu0 0
      %1793 = vperm.xlu0 %1792, %v1451
      %v1794 = vpop.permute.xlu0 %1793
      %1797 = vset.pattern.permute.xlu0 0
      %1798 = vperm.xlu0 %1797, %v1452
      %v1799 = vpop.permute.xlu0 %1798
      %1802 = vset.pattern.permute.xlu0 0
      %1803 = vperm.xlu0 %1802, %v1453
      %v1804 = vpop.permute.xlu0 %1803
      %1807 = vset.pattern.permute.xlu0 0
      %1808 = vperm.xlu0 %1807, %v1454
      %v1809 = vpop.permute.xlu0 %1808
      %1812 = vset.pattern.permute.xlu0 0
      %1813 = vperm.xlu0 %1812, %v1455
      %v1814 = vpop.permute.xlu0 %1813
      %1817 = vset.pattern.permute.xlu0 0
      %1818 = vperm.xlu0 %1817, %v1456
      %v1819 = vpop.permute.xlu0 %1818
      %1822 = vset.pattern.permute.xlu0 0
      %1823 = vperm.xlu0 %1822, %v1457
      %v1824 = vpop.permute.xlu0 %1823
      %1827 = vset.pattern.permute.xlu0 0
      %1828 = vperm.xlu0 %1827, %v1458
      %v1829 = vpop.permute.xlu0 %1828
      %1832 = vset.pattern.permute.xlu0 0
      %1833 = vperm.xlu0 %1832, %v1459
      %v1834 = vpop.permute.xlu0 %1833
      %1837 = vset.pattern.permute.xlu0 0
      %1838 = vperm.xlu0 %1837, %v1460
      %v1839 = vpop.permute.xlu0 %1838
      %1842 = vset.pattern.permute.xlu0 0
      %1843 = vperm.xlu0 %1842, %v1461
      %v1844 = vpop.permute.xlu0 %1843
      %1847 = vset.pattern.permute.xlu0 0
      %1848 = vperm.xlu0 %1847, %v1462
      %v1849 = vpop.permute.xlu0 %1848
      %1852 = vset.pattern.permute.xlu0 0
      %1853 = vperm.xlu0 %1852, %v1463
      %v1854 = vpop.permute.xlu0 %1853
      %1857 = vset.pattern.permute.xlu0 0
      %1858 = vperm.xlu0 %1857, %v1464
      %v1859 = vpop.permute.xlu0 %1858
      %1862 = vset.pattern.permute.xlu0 0
      %1863 = vperm.xlu0 %1862, %v1465
      %v1864 = vpop.permute.xlu0 %1863
      %1867 = vset.pattern.permute.xlu0 0
      %1868 = vperm.xlu0 %1867, %v1466
      %v1869 = vpop.permute.xlu0 %1868
      %1872 = vset.pattern.permute.xlu0 0
      %1873 = vperm.xlu0 %1872, %v1467
      %v1874 = vpop.permute.xlu0 %1873
      %1877 = vset.pattern.permute.xlu0 0
      %1878 = vperm.xlu0 %1877, %v1468
      %v1879 = vpop.permute.xlu0 %1878
      %1882 = vset.pattern.permute.xlu0 0
      %1883 = vperm.xlu0 %1882, %v1469
      %v1884 = vpop.permute.xlu0 %1883
      %1887 = vset.pattern.permute.xlu0 0
      %1888 = vperm.xlu0 %1887, %v1470
      %v1889 = vpop.permute.xlu0 %1888
      %1892 = vset.pattern.permute.xlu0 0
      %1893 = vperm.xlu0 %1892, %v1471
      %v1894 = vpop.permute.xlu0 %1893
      %1897 = vset.pattern.permute.xlu0 0
      %1898 = vperm.xlu0 %1897, %v1472
      %v1899 = vpop.permute.xlu0 %1898
      %1902 = vset.pattern.permute.xlu0 0
      %1903 = vperm.xlu0 %1902, %v1473
      %v1904 = vpop.permute.xlu0 %1903
      %1907 = vset.pattern.permute.xlu0 0
      %1908 = vperm.xlu0 %1907, %v1474
      %v1909 = vpop.permute.xlu0 %1908
      %1912 = vset.pattern.permute.xlu0 0
      %1913 = vperm.xlu0 %1912, %v1475
      %v1914 = vpop.permute.xlu0 %1913
      %1917 = vset.pattern.permute.xlu0 0
      %1918 = vperm.xlu0 %1917, %v1476
      %v1919 = vpop.permute.xlu0 %1918
      %1922 = vset.pattern.permute.xlu0 0
      %1923 = vperm.xlu0 %1922, %v1477
      %v1924 = vpop.permute.xlu0 %1923
      %1927 = vset.pattern.permute.xlu0 0
      %1928 = vperm.xlu0 %1927, %v1478
      %v1929 = vpop.permute.xlu0 %1928
      %1932 = vset.pattern.permute.xlu0 0
      %1933 = vperm.xlu0 %1932, %v1479
      %v1934 = vpop.permute.xlu0 %1933
      %1937 = vset.pattern.permute.xlu0 0
      %1938 = vperm.xlu0 %1937, %v1480
      %v1939 = vpop.permute.xlu0 %1938
      %1942 = vset.pattern.permute.xlu0 0
      %1943 = vperm.xlu0 %1942, %v1481
      %v1944 = vpop.permute.xlu0 %1943
      %1947 = vset.pattern.permute.xlu0 0
      %1948 = vperm.xlu0 %1947, %v1482
      %v1949 = vpop.permute.xlu0 %1948
      %1952 = vset.pattern.permute.xlu0 0
      %1953 = vperm.xlu0 %1952, %v1483
      %v1954 = vpop.permute.xlu0 %1953
      %1957 = vset.pattern.permute.xlu0 0
      %1958 = vperm.xlu0 %1957, %v1484
      %v1959 = vpop.permute.xlu0 %1958
      %1962 = vset.pattern.permute.xlu0 0
      %1963 = vperm.xlu0 %1962, %v1485
      %v1964 = vpop.permute.xlu0 %1963
      %1967 = vset.pattern.permute.xlu0 0
      %1968 = vperm.xlu0 %1967, %v1486
      %v1969 = vpop.permute.xlu0 %1968
      %1972 = vset.pattern.permute.xlu0 0
      %1973 = vperm.xlu0 %1972, %v1487
      %v1974 = vpop.permute.xlu0 %1973
      %1977 = vset.pattern.permute.xlu0 0
      %1978 = vperm.xlu0 %1977, %v1488
      %v1979 = vpop.permute.xlu0 %1978
      %1982 = vset.pattern.permute.xlu0 0
      %1983 = vperm.xlu0 %1982, %v1489
      %v1984 = vpop.permute.xlu0 %1983
      %1987 = vset.pattern.permute.xlu0 0
      %1988 = vperm.xlu0 %1987, %v1490
      %v1989 = vpop.permute.xlu0 %1988
      %1992 = vset.pattern.permute.xlu0 0
      %1993 = vperm.xlu0 %1992, %v1491
      %v1994 = vpop.permute.xlu0 %1993
      %1997 = vset.pattern.permute.xlu0 0
      %1998 = vperm.xlu0 %1997, %v1492
      %v1999 = vpop.permute.xlu0 %1998
      %2002 = vset.pattern.permute.xlu0 0
      %2003 = vperm.xlu0 %2002, %v1493
      %v2004 = vpop.permute.xlu0 %2003
      %v2006 = vsub.f32 %v856, %v1689
      %v2007 = vsub.f32 %v858, %v1689
      %v2008 = vsub.f32 %v860, %v1694
      %v2009 = vsub.f32 %v862, %v1694
      %v2010 = vsub.f32 %v866, %v1699
      %v2011 = vsub.f32 %v868, %v1699
      %v2012 = vsub.f32 %v870, %v1704
      %v2013 = vsub.f32 %v872, %v1704
      %v2014 = vsub.f32 %v876, %v1709
      %v2015 = vsub.f32 %v878, %v1709
      %v2016 = vsub.f32 %v880, %v1714
      %v2017 = vsub.f32 %v882, %v1714
      %v2018 = vsub.f32 %v886, %v1719
      %v2019 = vsub.f32 %v888, %v1719
      %v2020 = vsub.f32 %v890, %v1724
      %v2021 = vsub.f32 %v892, %v1724
      %v2022 = vsub.f32 %v896, %v1729
      %v2023 = vsub.f32 %v898, %v1729
      %v2024 = vsub.f32 %v900, %v1734
      %v2025 = vsub.f32 %v902, %v1734
      %v2026 = vsub.f32 %v906, %v1739
      %v2027 = vsub.f32 %v908, %v1739
      %v2028 = vsub.f32 %v910, %v1744
      %v2029 = vsub.f32 %v912, %v1744
      %v2030 = vsub.f32 %v916, %v1749
      %v2031 = vsub.f32 %v918, %v1749
      %v2032 = vsub.f32 %v920, %v1754
      %v2033 = vsub.f32 %v922, %v1754
      %v2034 = vsub.f32 %v926, %v1759
      %v2035 = vsub.f32 %v928, %v1759
      %v2036 = vsub.f32 %v930, %v1764
      %v2037 = vsub.f32 %v932, %v1764
      %v2038 = vsub.f32 %v936, %v1769
      %v2039 = vsub.f32 %v938, %v1769
      %v2040 = vsub.f32 %v940, %v1774
      %v2041 = vsub.f32 %v942, %v1774
      %v2042 = vsub.f32 %v946, %v1779
      %v2043 = vsub.f32 %v948, %v1779
      %v2044 = vsub.f32 %v950, %v1784
      %v2045 = vsub.f32 %v952, %v1784
      %v2046 = vsub.f32 %v956, %v1789
      %v2047 = vsub.f32 %v958, %v1789
      %v2048 = vsub.f32 %v960, %v1794
      %v2049 = vsub.f32 %v962, %v1794
      %v2050 = vsub.f32 %v966, %v1799
      %v2051 = vsub.f32 %v968, %v1799
      %v2052 = vsub.f32 %v970, %v1804
      %v2053 = vsub.f32 %v972, %v1804
      %v2054 = vsub.f32 %v976, %v1809
      %v2055 = vsub.f32 %v978, %v1809
      %v2056 = vsub.f32 %v980, %v1814
      %v2057 = vsub.f32 %v982, %v1814
      %v2058 = vsub.f32 %v986, %v1819
      %v2059 = vsub.f32 %v988, %v1819
      %v2060 = vsub.f32 %v990, %v1824
      %v2061 = vsub.f32 %v992, %v1824
      %v2062 = vsub.f32 %v996, %v1829
      %v2063 = vsub.f32 %v998, %v1829
      %v2064 = vsub.f32 %v1000, %v1834
      %v2065 = vsub.f32 %v1002, %v1834
      %v2066 = vsub.f32 %v1006, %v1839
      %v2067 = vsub.f32 %v1008, %v1839
      %v2068 = vsub.f32 %v1010, %v1844
      %v2069 = vsub.f32 %v1012, %v1844
      %v2070 = vsub.f32 %v1016, %v1849
      %v2071 = vsub.f32 %v1018, %v1849
      %v2072 = vsub.f32 %v1020, %v1854
      %v2073 = vsub.f32 %v1022, %v1854
      %v2074 = vsub.f32 %v1026, %v1859
      %v2075 = vsub.f32 %v1028, %v1859
      %v2076 = vsub.f32 %v1030, %v1864
      %v2077 = vsub.f32 %v1032, %v1864
      %v2078 = vsub.f32 %v1036, %v1869
      %v2079 = vsub.f32 %v1038, %v1869
      %v2080 = vsub.f32 %v1040, %v1874
      %v2081 = vsub.f32 %v1042, %v1874
      %v2082 = vsub.f32 %v1046, %v1879
      %v2083 = vsub.f32 %v1048, %v1879
      %v2084 = vsub.f32 %v1050, %v1884
      %v2085 = vsub.f32 %v1052, %v1884
      %v2086 = vsub.f32 %v1056, %v1889
      %v2087 = vsub.f32 %v1058, %v1889
      %v2088 = vsub.f32 %v1060, %v1894
      %v2089 = vsub.f32 %v1062, %v1894
      %v2090 = vsub.f32 %v1066, %v1899
      %v2091 = vsub.f32 %v1068, %v1899
      %v2092 = vsub.f32 %v1070, %v1904
      %v2093 = vsub.f32 %v1072, %v1904
      %v2094 = vsub.f32 %v1076, %v1909
      %v2095 = vsub.f32 %v1078, %v1909
      %v2096 = vsub.f32 %v1080, %v1914
      %v2097 = vsub.f32 %v1082, %v1914
      %v2098 = vsub.f32 %v1086, %v1919
      %v2099 = vsub.f32 %v1088, %v1919
      %v2100 = vsub.f32 %v1090, %v1924
      %v2101 = vsub.f32 %v1092, %v1924
      %v2102 = vsub.f32 %v1096, %v1929
      %v2103 = vsub.f32 %v1098, %v1929
      %v2104 = vsub.f32 %v1100, %v1934
      %v2105 = vsub.f32 %v1102, %v1934
      %v2106 = vsub.f32 %v1106, %v1939
      %v2107 = vsub.f32 %v1108, %v1939
      %v2108 = vsub.f32 %v1110, %v1944
      %v2109 = vsub.f32 %v1112, %v1944
      %v2110 = vsub.f32 %v1116, %v1949
      %v2111 = vsub.f32 %v1118, %v1949
      %v2112 = vsub.f32 %v1120, %v1954
      %v2113 = vsub.f32 %v1122, %v1954
      %v2114 = vsub.f32 %v1126, %v1959
      %v2115 = vsub.f32 %v1128, %v1959
      %v2116 = vsub.f32 %v1130, %v1964
      %v2117 = vsub.f32 %v1132, %v1964
      %v2118 = vsub.f32 %v1136, %v1969
      %v2119 = vsub.f32 %v1138, %v1969
      %v2120 = vsub.f32 %v1140, %v1974
      %v2121 = vsub.f32 %v1142, %v1974
      %v2122 = vsub.f32 %v1146, %v1979
      %v2123 = vsub.f32 %v1148, %v1979
      %v2124 = vsub.f32 %v1150, %v1984
      %v2125 = vsub.f32 %v1152, %v1984
      %v2126 = vsub.f32 %v1156, %v1989
      %v2127 = vsub.f32 %v1158, %v1989
      %v2128 = vsub.f32 %v1160, %v1994
      %v2129 = vsub.f32 %v1162, %v1994
      %v2130 = vsub.f32 %v1166, %v1999
      %v2131 = vsub.f32 %v1168, %v1999
      %v2132 = vsub.f32 %v1170, %v2004
      %v2133 = vsub.f32 %v1172, %v2004
      %v2134 = vmul.f32 %v2006, 1.442695
      %v2135 = vpow.pop %v2134
      %v2136 = vmul.f32 %v2007, 1.442695
      %v2137 = vpow.pop %v2136
      %v2138 = vmul.f32 %v2008, 1.442695
      %v2139 = vpow.pop %v2138
      %v2140 = vmul.f32 %v2009, 1.442695
      %v2141 = vpow.pop %v2140
      %v2142 = vmul.f32 %v2010, 1.442695
      %v2143 = vpow.pop %v2142
      %v2144 = vmul.f32 %v2011, 1.442695
      %v2145 = vpow.pop %v2144
      %v2146 = vmul.f32 %v2012, 1.442695
      %v2147 = vpow.pop %v2146
      %v2148 = vmul.f32 %v2013, 1.442695
      %v2149 = vpow.pop %v2148
      %v2150 = vmul.f32 %v2014, 1.442695
      %v2151 = vpow.pop %v2150
      %v2152 = vmul.f32 %v2015, 1.442695
      %v2153 = vpow.pop %v2152
      %v2154 = vmul.f32 %v2016, 1.442695
      %v2155 = vpow.pop %v2154
      %v2156 = vmul.f32 %v2017, 1.442695
      %v2157 = vpow.pop %v2156
      %v2158 = vmul.f32 %v2018, 1.442695
      %v2159 = vpow.pop %v2158
      %v2160 = vmul.f32 %v2019, 1.442695
      %v2161 = vpow.pop %v2160
      %v2162 = vmul.f32 %v2020, 1.442695
      %v2163 = vpow.pop %v2162
      %v2164 = vmul.f32 %v2021, 1.442695
      %v2165 = vpow.pop %v2164
      %v2166 = vmul.f32 %v2022, 1.442695
      %v2167 = vpow.pop %v2166
      %v2168 = vmul.f32 %v2023, 1.442695
      %v2169 = vpow.pop %v2168
      %v2170 = vmul.f32 %v2024, 1.442695
      %v2171 = vpow.pop %v2170
      %v2172 = vmul.f32 %v2025, 1.442695
      %v2173 = vpow.pop %v2172
      %v2174 = vmul.f32 %v2026, 1.442695
      %v2175 = vpow.pop %v2174
      %v2176 = vmul.f32 %v2027, 1.442695
      %v2177 = vpow.pop %v2176
      %v2178 = vmul.f32 %v2028, 1.442695
      %v2179 = vpow.pop %v2178
      %v2180 = vmul.f32 %v2029, 1.442695
      %v2181 = vpow.pop %v2180
      %v2182 = vmul.f32 %v2030, 1.442695
      %v2183 = vpow.pop %v2182
      %v2184 = vmul.f32 %v2031, 1.442695
      %v2185 = vpow.pop %v2184
      %v2186 = vmul.f32 %v2032, 1.442695
      %v2187 = vpow.pop %v2186
      %v2188 = vmul.f32 %v2033, 1.442695
      %v2189 = vpow.pop %v2188
      %v2190 = vmul.f32 %v2034, 1.442695
      %v2191 = vpow.pop %v2190
      %v2192 = vmul.f32 %v2035, 1.442695
      %v2193 = vpow.pop %v2192
      %v2194 = vmul.f32 %v2036, 1.442695
      %v2195 = vpow.pop %v2194
      %v2196 = vmul.f32 %v2037, 1.442695
      %v2197 = vpow.pop %v2196
      %v2198 = vmul.f32 %v2038, 1.442695
      %v2199 = vpow.pop %v2198
      %v2200 = vmul.f32 %v2039, 1.442695
      %v2201 = vpow.pop %v2200
      %v2202 = vmul.f32 %v2040, 1.442695
      %v2203 = vpow.pop %v2202
      %v2204 = vmul.f32 %v2041, 1.442695
      %v2205 = vpow.pop %v2204
      %v2206 = vmul.f32 %v2042, 1.442695
      %v2207 = vpow.pop %v2206
      %v2208 = vmul.f32 %v2043, 1.442695
      %v2209 = vpow.pop %v2208
      %v2210 = vmul.f32 %v2044, 1.442695
      %v2211 = vpow.pop %v2210
      %v2212 = vmul.f32 %v2045, 1.442695
      %v2213 = vpow.pop %v2212
      %v2214 = vmul.f32 %v2046, 1.442695
      %v2215 = vpow.pop %v2214
      %v2216 = vmul.f32 %v2047, 1.442695
      %v2217 = vpow.pop %v2216
      %v2218 = vmul.f32 %v2048, 1.442695
      %v2219 = vpow.pop %v2218
      %v2220 = vmul.f32 %v2049, 1.442695
      %v2221 = vpow.pop %v2220
      %v2222 = vmul.f32 %v2050, 1.442695
      %v2223 = vpow.pop %v2222
      %v2224 = vmul.f32 %v2051, 1.442695
      %v2225 = vpow.pop %v2224
      %v2226 = vmul.f32 %v2052, 1.442695
      %v2227 = vpow.pop %v2226
      %v2228 = vmul.f32 %v2053, 1.442695
      %v2229 = vpow.pop %v2228
      %v2230 = vmul.f32 %v2054, 1.442695
      %v2231 = vpow.pop %v2230
      %v2232 = vmul.f32 %v2055, 1.442695
      %v2233 = vpow.pop %v2232
      %v2234 = vmul.f32 %v2056, 1.442695
      %v2235 = vpow.pop %v2234
      %v2236 = vmul.f32 %v2057, 1.442695
      %v2237 = vpow.pop %v2236
      %v2238 = vmul.f32 %v2058, 1.442695
      %v2239 = vpow.pop %v2238
      %v2240 = vmul.f32 %v2059, 1.442695
      %v2241 = vpow.pop %v2240
      %v2242 = vmul.f32 %v2060, 1.442695
      %v2243 = vpow.pop %v2242
      %v2244 = vmul.f32 %v2061, 1.442695
      %v2245 = vpow.pop %v2244
      %v2246 = vmul.f32 %v2062, 1.442695
      %v2247 = vpow.pop %v2246
      %v2248 = vmul.f32 %v2063, 1.442695
      %v2249 = vpow.pop %v2248
      %v2250 = vmul.f32 %v2064, 1.442695
      %v2251 = vpow.pop %v2250
      %v2252 = vmul.f32 %v2065, 1.442695
      %v2253 = vpow.pop %v2252
      %v2254 = vmul.f32 %v2066, 1.442695
      %v2255 = vpow.pop %v2254
      %v2256 = vmul.f32 %v2067, 1.442695
      %v2257 = vpow.pop %v2256
      %v2258 = vmul.f32 %v2068, 1.442695
      %v2259 = vpow.pop %v2258
      %v2260 = vmul.f32 %v2069, 1.442695
      %v2261 = vpow.pop %v2260
      %v2262 = vmul.f32 %v2070, 1.442695
      %v2263 = vpow.pop %v2262
      %v2264 = vmul.f32 %v2071, 1.442695
      %v2265 = vpow.pop %v2264
      %v2266 = vmul.f32 %v2072, 1.442695
      %v2267 = vpow.pop %v2266
      %v2268 = vmul.f32 %v2073, 1.442695
      %v2269 = vpow.pop %v2268
      %v2270 = vmul.f32 %v2074, 1.442695
      %v2271 = vpow.pop %v2270
      %v2272 = vmul.f32 %v2075, 1.442695
      %v2273 = vpow.pop %v2272
      %v2274 = vmul.f32 %v2076, 1.442695
      %v2275 = vpow.pop %v2274
      %v2276 = vmul.f32 %v2077, 1.442695
      %v2277 = vpow.pop %v2276
      %v2278 = vmul.f32 %v2078, 1.442695
      %v2279 = vpow.pop %v2278
      %v2280 = vmul.f32 %v2079, 1.442695
      %v2281 = vpow.pop %v2280
      %v2282 = vmul.f32 %v2080, 1.442695
      %v2283 = vpow.pop %v2282
      %v2284 = vmul.f32 %v2081, 1.442695
      %v2285 = vpow.pop %v2284
      %v2286 = vmul.f32 %v2082, 1.442695
      %v2287 = vpow.pop %v2286
      %v2288 = vmul.f32 %v2083, 1.442695
      %v2289 = vpow.pop %v2288
      %v2290 = vmul.f32 %v2084, 1.442695
      %v2291 = vpow.pop %v2290
      %v2292 = vmul.f32 %v2085, 1.442695
      %v2293 = vpow.pop %v2292
      %v2294 = vmul.f32 %v2086, 1.442695
      %v2295 = vpow.pop %v2294
      %v2296 = vmul.f32 %v2087, 1.442695
      %v2297 = vpow.pop %v2296
      %v2298 = vmul.f32 %v2088, 1.442695
      %v2299 = vpow.pop %v2298
      %v2300 = vmul.f32 %v2089, 1.442695
      %v2301 = vpow.pop %v2300
      %v2302 = vmul.f32 %v2090, 1.442695
      %v2303 = vpow.pop %v2302
      %v2304 = vmul.f32 %v2091, 1.442695
      %v2305 = vpow.pop %v2304
      %v2306 = vmul.f32 %v2092, 1.442695
      %v2307 = vpow.pop %v2306
      %v2308 = vmul.f32 %v2093, 1.442695
      %v2309 = vpow.pop %v2308
      %v2310 = vmul.f32 %v2094, 1.442695
      %v2311 = vpow.pop %v2310
      %v2312 = vmul.f32 %v2095, 1.442695
      %v2313 = vpow.pop %v2312
      %v2314 = vmul.f32 %v2096, 1.442695
      %v2315 = vpow.pop %v2314
      %v2316 = vmul.f32 %v2097, 1.442695
      %v2317 = vpow.pop %v2316
      %v2318 = vmul.f32 %v2098, 1.442695
      %v2319 = vpow.pop %v2318
      %v2320 = vmul.f32 %v2099, 1.442695
      %v2321 = vpow.pop %v2320
      %v2322 = vmul.f32 %v2100, 1.442695
      %v2323 = vpow.pop %v2322
      %v2324 = vmul.f32 %v2101, 1.442695
      %v2325 = vpow.pop %v2324
      %v2326 = vmul.f32 %v2102, 1.442695
      %v2327 = vpow.pop %v2326
      %v2328 = vmul.f32 %v2103, 1.442695
      %v2329 = vpow.pop %v2328
      %v2330 = vmul.f32 %v2104, 1.442695
      %v2331 = vpow.pop %v2330
      %v2332 = vmul.f32 %v2105, 1.442695
      %v2333 = vpow.pop %v2332
      %v2334 = vmul.f32 %v2106, 1.442695
      %v2335 = vpow.pop %v2334
      %v2336 = vmul.f32 %v2107, 1.442695
      %v2337 = vpow.pop %v2336
      %v2338 = vmul.f32 %v2108, 1.442695
      %v2339 = vpow.pop %v2338
      %v2340 = vmul.f32 %v2109, 1.442695
      %v2341 = vpow.pop %v2340
      %v2342 = vmul.f32 %v2110, 1.442695
      %v2343 = vpow.pop %v2342
      %v2344 = vmul.f32 %v2111, 1.442695
      %v2345 = vpow.pop %v2344
      %v2346 = vmul.f32 %v2112, 1.442695
      %v2347 = vpow.pop %v2346
      %v2348 = vmul.f32 %v2113, 1.442695
      %v2349 = vpow.pop %v2348
      %v2350 = vmul.f32 %v2114, 1.442695
      %v2351 = vpow.pop %v2350
      %v2352 = vmul.f32 %v2115, 1.442695
      %v2353 = vpow.pop %v2352
      %v2354 = vmul.f32 %v2116, 1.442695
      %v2355 = vpow.pop %v2354
      %v2356 = vmul.f32 %v2117, 1.442695
      %v2357 = vpow.pop %v2356
      %v2358 = vmul.f32 %v2118, 1.442695
      %v2359 = vpow.pop %v2358
      %v2360 = vmul.f32 %v2119, 1.442695
      %v2361 = vpow.pop %v2360
      %v2362 = vmul.f32 %v2120, 1.442695
      %v2363 = vpow.pop %v2362
      %v2364 = vmul.f32 %v2121, 1.442695
      %v2365 = vpow.pop %v2364
      %v2366 = vmul.f32 %v2122, 1.442695
      %v2367 = vpow.pop %v2366
      %v2368 = vmul.f32 %v2123, 1.442695
      %v2369 = vpow.pop %v2368
      %v2370 = vmul.f32 %v2124, 1.442695
      %v2371 = vpow.pop %v2370
      %v2372 = vmul.f32 %v2125, 1.442695
      %v2373 = vpow.pop %v2372
      %v2374 = vmul.f32 %v2126, 1.442695
      %v2375 = vpow.pop %v2374
      %v2376 = vmul.f32 %v2127, 1.442695
      %v2377 = vpow.pop %v2376
      %v2378 = vmul.f32 %v2128, 1.442695
      %v2379 = vpow.pop %v2378
      %v2380 = vmul.f32 %v2129, 1.442695
      %v2381 = vpow.pop %v2380
      %v2382 = vmul.f32 %v2130, 1.442695
      %v2383 = vpow.pop %v2382
      %v2384 = vmul.f32 %v2131, 1.442695
      %v2385 = vpow.pop %v2384
      %v2386 = vmul.f32 %v2132, 1.442695
      %v2387 = vpow.pop %v2386
      %v2388 = vmul.f32 %v2133, 1.442695
      %v2389 = vpow.pop %v2388
      %v2390 = vld [vmem:[#allocation3] sm:$0xff]
      %v2391 = vld [vmem:[#allocation3 + $0x8] sm:$0xff]
      %v2392 = vld [vmem:[#allocation3 + $0x10] sm:$0xff]
      %v2393 = vld [vmem:[#allocation3 + $0x18] sm:$0xff]
      %v2394 = vld [vmem:[#allocation3 + $0x20] sm:$0xff]
      %v2395 = vld [vmem:[#allocation3 + $0x28] sm:$0xff]
      %v2396 = vld [vmem:[#allocation3 + $0x30] sm:$0xff]
      %v2397 = vld [vmem:[#allocation3 + $0x38] sm:$0xff]
      %v2398 = vld [vmem:[#allocation3 + $0x40] sm:$0xff]
      %v2399 = vld [vmem:[#allocation3 + $0x48] sm:$0xff]
      %v2400 = vld [vmem:[#allocation3 + $0x50] sm:$0xff]
      %v2401 = vld [vmem:[#allocation3 + $0x58] sm:$0xff]
      %v2402 = vld [vmem:[#allocation3 + $0x60] sm:$0xff]
      %v2403 = vld [vmem:[#allocation3 + $0x68] sm:$0xff]
      %v2404 = vld [vmem:[#allocation3 + $0x70] sm:$0xff]
      %v2405 = vld [vmem:[#allocation3 + $0x78] sm:$0xff]
      %v2406 = vld [vmem:[#allocation3 + $0x80] sm:$0xff]
      %v2407 = vld [vmem:[#allocation3 + $0x88] sm:$0xff]
      %v2408 = vld [vmem:[#allocation3 + $0x90] sm:$0xff]
      %v2409 = vld [vmem:[#allocation3 + $0x98] sm:$0xff]
      %v2410 = vld [vmem:[#allocation3 + $0xa0] sm:$0xff]
      %v2411 = vld [vmem:[#allocation3 + $0xa8] sm:$0xff]
      %v2412 = vld [vmem:[#allocation3 + $0xb0] sm:$0xff]
      %v2413 = vld [vmem:[#allocation3 + $0xb8] sm:$0xff]
      %v2414 = vld [vmem:[#allocation3 + $0xc0] sm:$0xff]
      %v2415 = vld [vmem:[#allocation3 + $0xc8] sm:$0xff]
      %v2416 = vld [vmem:[#allocation3 + $0xd0] sm:$0xff]
      %v2417 = vld [vmem:[#allocation3 + $0xd8] sm:$0xff]
      %v2418 = vld [vmem:[#allocation3 + $0xe0] sm:$0xff]
      %v2419 = vld [vmem:[#allocation3 + $0xe8] sm:$0xff]
      %v2420 = vld [vmem:[#allocation3 + $0xf0] sm:$0xff]
      %v2421 = vld [vmem:[#allocation3 + $0xf8] sm:$0xff]
      %v2422 = vld [vmem:[#allocation3 + $0x100] sm:$0xff]
      %v2423 = vld [vmem:[#allocation3 + $0x108] sm:$0xff]
      %v2424 = vld [vmem:[#allocation3 + $0x110] sm:$0xff]
      %v2425 = vld [vmem:[#allocation3 + $0x118] sm:$0xff]
      %v2426 = vld [vmem:[#allocation3 + $0x120] sm:$0xff]
      %v2427 = vld [vmem:[#allocation3 + $0x128] sm:$0xff]
      %v2428 = vld [vmem:[#allocation3 + $0x130] sm:$0xff]
      %v2429 = vld [vmem:[#allocation3 + $0x138] sm:$0xff]
      %v2430 = vld [vmem:[#allocation3 + $0x140] sm:$0xff]
      %v2431 = vld [vmem:[#allocation3 + $0x148] sm:$0xff]
      %v2432 = vld [vmem:[#allocation3 + $0x150] sm:$0xff]
      %v2433 = vld [vmem:[#allocation3 + $0x158] sm:$0xff]
      %v2434 = vld [vmem:[#allocation3 + $0x160] sm:$0xff]
      %v2435 = vld [vmem:[#allocation3 + $0x168] sm:$0xff]
      %v2436 = vld [vmem:[#allocation3 + $0x170] sm:$0xff]
      %v2437 = vld [vmem:[#allocation3 + $0x178] sm:$0xff]
      %v2438 = vld [vmem:[#allocation3 + $0x180] sm:$0xff]
      %v2439 = vld [vmem:[#allocation3 + $0x188] sm:$0xff]
      %v2440 = vld [vmem:[#allocation3 + $0x190] sm:$0xff]
      %v2441 = vld [vmem:[#allocation3 + $0x198] sm:$0xff]
      %v2442 = vld [vmem:[#allocation3 + $0x1a0] sm:$0xff]
      %v2443 = vld [vmem:[#allocation3 + $0x1a8] sm:$0xff]
      %v2444 = vld [vmem:[#allocation3 + $0x1b0] sm:$0xff]
      %v2445 = vld [vmem:[#allocation3 + $0x1b8] sm:$0xff]
      %v2446 = vld [vmem:[#allocation3 + $0x1c0] sm:$0xff]
      %v2447 = vld [vmem:[#allocation3 + $0x1c8] sm:$0xff]
      %v2448 = vld [vmem:[#allocation3 + $0x1d0] sm:$0xff]
      %v2449 = vld [vmem:[#allocation3 + $0x1d8] sm:$0xff]
      %v2450 = vld [vmem:[#allocation3 + $0x1e0] sm:$0xff]
      %v2451 = vld [vmem:[#allocation3 + $0x1e8] sm:$0xff]
      %v2452 = vld [vmem:[#allocation3 + $0x1f0] sm:$0xff]
      %v2453 = vld [vmem:[#allocation3 + $0x1f8] sm:$0xff]
      %v2454 = vmul.f32 %v1559, %v2390
      %v2455 = vmul.f32 %v1561, %v2391
      %v2456 = vmul.f32 %v1563, %v2392
      %v2457 = vmul.f32 %v1565, %v2393
      %v2458 = vmul.f32 %v1567, %v2394
      %v2459 = vmul.f32 %v1569, %v2395
      %v2460 = vmul.f32 %v1571, %v2396
      %v2461 = vmul.f32 %v1573, %v2397
      %v2462 = vmul.f32 %v1575, %v2398
      %v2463 = vmul.f32 %v1577, %v2399
      %v2464 = vmul.f32 %v1579, %v2400
      %v2465 = vmul.f32 %v1581, %v2401
      %v2466 = vmul.f32 %v1583, %v2402
      %v2467 = vmul.f32 %v1585, %v2403
      %v2468 = vmul.f32 %v1587, %v2404
      %v2469 = vmul.f32 %v1589, %v2405
      %v2470 = vmul.f32 %v1591, %v2406
      %v2471 = vmul.f32 %v1593, %v2407
      %v2472 = vmul.f32 %v1595, %v2408
      %v2473 = vmul.f32 %v1597, %v2409
      %v2474 = vmul.f32 %v1599, %v2410
      %v2475 = vmul.f32 %v1601, %v2411
      %v2476 = vmul.f32 %v1603, %v2412
      %v2477 = vmul.f32 %v1605, %v2413
      %v2478 = vmul.f32 %v1607, %v2414
      %v2479 = vmul.f32 %v1609, %v2415
      %v2480 = vmul.f32 %v1611, %v2416
      %v2481 = vmul.f32 %v1613, %v2417
      %v2482 = vmul.f32 %v1615, %v2418
      %v2483 = vmul.f32 %v1617, %v2419
      %v2484 = vmul.f32 %v1619, %v2420
      %v2485 = vmul.f32 %v1621, %v2421
      %v2486 = vmul.f32 %v1623, %v2422
      %v2487 = vmul.f32 %v1625, %v2423
      %v2488 = vmul.f32 %v1627, %v2424
      %v2489 = vmul.f32 %v1629, %v2425
      %v2490 = vmul.f32 %v1631, %v2426
      %v2491 = vmul.f32 %v1633, %v2427
      %v2492 = vmul.f32 %v1635, %v2428
      %v2493 = vmul.f32 %v1637, %v2429
      %v2494 = vmul.f32 %v1639, %v2430
      %v2495 = vmul.f32 %v1641, %v2431
      %v2496 = vmul.f32 %v1643, %v2432
      %v2497 = vmul.f32 %v1645, %v2433
      %v2498 = vmul.f32 %v1647, %v2434
      %v2499 = vmul.f32 %v1649, %v2435
      %v2500 = vmul.f32 %v1651, %v2436
      %v2501 = vmul.f32 %v1653, %v2437
      %v2502 = vmul.f32 %v1655, %v2438
      %v2503 = vmul.f32 %v1657, %v2439
      %v2504 = vmul.f32 %v1659, %v2440
      %v2505 = vmul.f32 %v1661, %v2441
      %v2506 = vmul.f32 %v1663, %v2442
      %v2507 = vmul.f32 %v1665, %v2443
      %v2508 = vmul.f32 %v1667, %v2444
      %v2509 = vmul.f32 %v1669, %v2445
      %v2510 = vmul.f32 %v1671, %v2446
      %v2511 = vmul.f32 %v1673, %v2447
      %v2512 = vmul.f32 %v1675, %v2448
      %v2513 = vmul.f32 %v1677, %v2449
      %v2514 = vmul.f32 %v1679, %v2450
      %v2515 = vmul.f32 %v1681, %v2451
      %v2516 = vmul.f32 %v1683, %v2452
      %v2517 = vmul.f32 %v1685, %v2453
      %v2518 = vadd.f32 %v2135, %v2137
      %2519 = vadd.xlane.f32.xlu0 %v2518
      %v2520 = vpop.xlane.xlu0 %2519
      %v2521 = vadd.f32 %v2139, %v2141
      %2522 = vadd.xlane.f32.xlu0 %v2521
      %v2523 = vpop.xlane.xlu0 %2522
      %v2524 = vadd.f32 %v2143, %v2145
      %2525 = vadd.xlane.f32.xlu0 %v2524
      %v2526 = vpop.xlane.xlu0 %2525
      %v2527 = vadd.f32 %v2147, %v2149
      %2528 = vadd.xlane.f32.xlu0 %v2527
      %v2529 = vpop.xlane.xlu0 %2528
      %v2530 = vadd.f32 %v2151, %v2153
      %2531 = vadd.xlane.f32.xlu0 %v2530
      %v2532 = vpop.xlane.xlu0 %2531
      %v2533 = vadd.f32 %v2155, %v2157
      %2534 = vadd.xlane.f32.xlu0 %v2533
      %v2535 = vpop.xlane.xlu0 %2534
      %v2536 = vadd.f32 %v2159, %v2161
      %2537 = vadd.xlane.f32.xlu0 %v2536
      %v2538 = vpop.xlane.xlu0 %2537
      %v2539 = vadd.f32 %v2163, %v2165
      %2540 = vadd.xlane.f32.xlu0 %v2539
      %v2541 = vpop.xlane.xlu0 %2540
      %v2542 = vadd.f32 %v2167, %v2169
      %2543 = vadd.xlane.f32.xlu0 %v2542
      %v2544 = vpop.xlane.xlu0 %2543
      %v2545 = vadd.f32 %v2171, %v2173
      %2546 = vadd.xlane.f32.xlu0 %v2545
      %v2547 = vpop.xlane.xlu0 %2546
      %v2548 = vadd.f32 %v2175, %v2177
      %2549 = vadd.xlane.f32.xlu0 %v2548
      %v2550 = vpop.xlane.xlu0 %2549
      %v2551 = vadd.f32 %v2179, %v2181
      %2552 = vadd.xlane.f32.xlu0 %v2551
      %v2553 = vpop.xlane.xlu0 %2552
      %v2554 = vadd.f32 %v2183, %v2185
      %2555 = vadd.xlane.f32.xlu0 %v2554
      %v2556 = vpop.xlane.xlu0 %2555
      %v2557 = vadd.f32 %v2187, %v2189
      %2558 = vadd.xlane.f32.xlu0 %v2557
      %v2559 = vpop.xlane.xlu0 %2558
      %v2560 = vadd.f32 %v2191, %v2193
      %2561 = vadd.xlane.f32.xlu0 %v2560
      %v2562 = vpop.xlane.xlu0 %2561
      %v2563 = vadd.f32 %v2195, %v2197
      %2564 = vadd.xlane.f32.xlu0 %v2563
      %v2565 = vpop.xlane.xlu0 %2564
      %v2566 = vadd.f32 %v2199, %v2201
      %2567 = vadd.xlane.f32.xlu0 %v2566
      %v2568 = vpop.xlane.xlu0 %2567
      %v2569 = vadd.f32 %v2203, %v2205
      %2570 = vadd.xlane.f32.xlu0 %v2569
      %v2571 = vpop.xlane.xlu0 %2570
      %v2572 = vadd.f32 %v2207, %v2209
      %2573 = vadd.xlane.f32.xlu0 %v2572
      %v2574 = vpop.xlane.xlu0 %2573
      %v2575 = vadd.f32 %v2211, %v2213
      %2576 = vadd.xlane.f32.xlu0 %v2575
      %v2577 = vpop.xlane.xlu0 %2576
      %v2578 = vadd.f32 %v2215, %v2217
      %2579 = vadd.xlane.f32.xlu0 %v2578
      %v2580 = vpop.xlane.xlu0 %2579
      %v2581 = vadd.f32 %v2219, %v2221
      %2582 = vadd.xlane.f32.xlu0 %v2581
      %v2583 = vpop.xlane.xlu0 %2582
      %v2584 = vadd.f32 %v2223, %v2225
      %2585 = vadd.xlane.f32.xlu0 %v2584
      %v2586 = vpop.xlane.xlu0 %2585
      %v2587 = vadd.f32 %v2227, %v2229
      %2588 = vadd.xlane.f32.xlu0 %v2587
      %v2589 = vpop.xlane.xlu0 %2588
      %v2590 = vadd.f32 %v2231, %v2233
      %2591 = vadd.xlane.f32.xlu0 %v2590
      %v2592 = vpop.xlane.xlu0 %2591
      %v2593 = vadd.f32 %v2235, %v2237
      %2594 = vadd.xlane.f32.xlu0 %v2593
      %v2595 = vpop.xlane.xlu0 %2594
      %v2596 = vadd.f32 %v2239, %v2241
      %2597 = vadd.xlane.f32.xlu0 %v2596
      %v2598 = vpop.xlane.xlu0 %2597
      %v2599 = vadd.f32 %v2243, %v2245
      %2600 = vadd.xlane.f32.xlu0 %v2599
      %v2601 = vpop.xlane.xlu0 %2600
      %v2602 = vadd.f32 %v2247, %v2249
      %2603 = vadd.xlane.f32.xlu0 %v2602
      %v2604 = vpop.xlane.xlu0 %2603
      %v2605 = vadd.f32 %v2251, %v2253
      %2606 = vadd.xlane.f32.xlu0 %v2605
      %v2607 = vpop.xlane.xlu0 %2606
      %v2608 = vadd.f32 %v2255, %v2257
      %2609 = vadd.xlane.f32.xlu0 %v2608
      %v2610 = vpop.xlane.xlu0 %2609
      %v2611 = vadd.f32 %v2259, %v2261
      %2612 = vadd.xlane.f32.xlu0 %v2611
      %v2613 = vpop.xlane.xlu0 %2612
      %v2614 = vadd.f32 %v2263, %v2265
      %2615 = vadd.xlane.f32.xlu0 %v2614
      %v2616 = vpop.xlane.xlu0 %2615
      %v2617 = vadd.f32 %v2267, %v2269
      %2618 = vadd.xlane.f32.xlu0 %v2617
      %v2619 = vpop.xlane.xlu0 %2618
      %v2620 = vadd.f32 %v2271, %v2273
      %2621 = vadd.xlane.f32.xlu0 %v2620
      %v2622 = vpop.xlane.xlu0 %2621
      %v2623 = vadd.f32 %v2275, %v2277
      %2624 = vadd.xlane.f32.xlu0 %v2623
      %v2625 = vpop.xlane.xlu0 %2624
      %v2626 = vadd.f32 %v2279, %v2281
      %2627 = vadd.xlane.f32.xlu0 %v2626
      %v2628 = vpop.xlane.xlu0 %2627
      %v2629 = vadd.f32 %v2283, %v2285
      %2630 = vadd.xlane.f32.xlu0 %v2629
      %v2631 = vpop.xlane.xlu0 %2630
      %v2632 = vadd.f32 %v2287, %v2289
      %2633 = vadd.xlane.f32.xlu0 %v2632
      %v2634 = vpop.xlane.xlu0 %2633
      %v2635 = vadd.f32 %v2291, %v2293
      %2636 = vadd.xlane.f32.xlu0 %v2635
      %v2637 = vpop.xlane.xlu0 %2636
      %v2638 = vadd.f32 %v2295, %v2297
      %2639 = vadd.xlane.f32.xlu0 %v2638
      %v2640 = vpop.xlane.xlu0 %2639
      %v2641 = vadd.f32 %v2299, %v2301
      %2642 = vadd.xlane.f32.xlu0 %v2641
      %v2643 = vpop.xlane.xlu0 %2642
      %v2644 = vadd.f32 %v2303, %v2305
      %2645 = vadd.xlane.f32.xlu0 %v2644
      %v2646 = vpop.xlane.xlu0 %2645
      %v2647 = vadd.f32 %v2307, %v2309
      %2648 = vadd.xlane.f32.xlu0 %v2647
      %v2649 = vpop.xlane.xlu0 %2648
      %v2650 = vadd.f32 %v2311, %v2313
      %2651 = vadd.xlane.f32.xlu0 %v2650
      %v2652 = vpop.xlane.xlu0 %2651
      %v2653 = vadd.f32 %v2315, %v2317
      %2654 = vadd.xlane.f32.xlu0 %v2653
      %v2655 = vpop.xlane.xlu0 %2654
      %v2656 = vadd.f32 %v2319, %v2321
      %2657 = vadd.xlane.f32.xlu0 %v2656
      %v2658 = vpop.xlane.xlu0 %2657
      %v2659 = vadd.f32 %v2323, %v2325
      %2660 = vadd.xlane.f32.xlu0 %v2659
      %v2661 = vpop.xlane.xlu0 %2660
      %v2662 = vadd.f32 %v2327, %v2329
      %2663 = vadd.xlane.f32.xlu0 %v2662
      %v2664 = vpop.xlane.xlu0 %2663
      %v2665 = vadd.f32 %v2331, %v2333
      %2666 = vadd.xlane.f32.xlu0 %v2665
      %v2667 = vpop.xlane.xlu0 %2666
      %v2668 = vadd.f32 %v2335, %v2337
      %2669 = vadd.xlane.f32.xlu0 %v2668
      %v2670 = vpop.xlane.xlu0 %2669
      %v2671 = vadd.f32 %v2339, %v2341
      %2672 = vadd.xlane.f32.xlu0 %v2671
      %v2673 = vpop.xlane.xlu0 %2672
      %v2674 = vadd.f32 %v2343, %v2345
      %2675 = vadd.xlane.f32.xlu0 %v2674
      %v2676 = vpop.xlane.xlu0 %2675
      %v2677 = vadd.f32 %v2347, %v2349
      %2678 = vadd.xlane.f32.xlu0 %v2677
      %v2679 = vpop.xlane.xlu0 %2678
      %v2680 = vadd.f32 %v2351, %v2353
      %2681 = vadd.xlane.f32.xlu0 %v2680
      %v2682 = vpop.xlane.xlu0 %2681
      %v2683 = vadd.f32 %v2355, %v2357
      %2684 = vadd.xlane.f32.xlu0 %v2683
      %v2685 = vpop.xlane.xlu0 %2684
      %v2686 = vadd.f32 %v2359, %v2361
      %2687 = vadd.xlane.f32.xlu0 %v2686
      %v2688 = vpop.xlane.xlu0 %2687
      %v2689 = vadd.f32 %v2363, %v2365
      %2690 = vadd.xlane.f32.xlu0 %v2689
      %v2691 = vpop.xlane.xlu0 %2690
      %v2692 = vadd.f32 %v2367, %v2369
      %2693 = vadd.xlane.f32.xlu0 %v2692
      %v2694 = vpop.xlane.xlu0 %2693
      %v2695 = vadd.f32 %v2371, %v2373
      %2696 = vadd.xlane.f32.xlu0 %v2695
      %v2697 = vpop.xlane.xlu0 %2696
      %v2698 = vadd.f32 %v2375, %v2377
      %2699 = vadd.xlane.f32.xlu0 %v2698
      %v2700 = vpop.xlane.xlu0 %2699
      %v2701 = vadd.f32 %v2379, %v2381
      %2702 = vadd.xlane.f32.xlu0 %v2701
      %v2703 = vpop.xlane.xlu0 %2702
      %v2704 = vadd.f32 %v2383, %v2385
      %2705 = vadd.xlane.f32.xlu0 %v2704
      %v2706 = vpop.xlane.xlu0 %2705
      %v2707 = vadd.f32 %v2387, %v2389
      %2708 = vadd.xlane.f32.xlu0 %v2707
      %v2709 = vpop.xlane.xlu0 %2708
      %v2710 = vadd.f32 %v2454, %v2520
      %v2711 = vadd.f32 %v2455, %v2523
      %v2712 = vadd.f32 %v2456, %v2526
      %v2713 = vadd.f32 %v2457, %v2529
      %v2714 = vadd.f32 %v2458, %v2532
      %v2715 = vadd.f32 %v2459, %v2535
      %v2716 = vadd.f32 %v2460, %v2538
      %v2717 = vadd.f32 %v2461, %v2541
      %v2718 = vadd.f32 %v2462, %v2544
      %v2719 = vadd.f32 %v2463, %v2547
      %v2720 = vadd.f32 %v2464, %v2550
      %v2721 = vadd.f32 %v2465, %v2553
      %v2722 = vadd.f32 %v2466, %v2556
      %v2723 = vadd.f32 %v2467, %v2559
      %v2724 = vadd.f32 %v2468, %v2562
      %v2725 = vadd.f32 %v2469, %v2565
      %v2726 = vadd.f32 %v2470, %v2568
      %v2727 = vadd.f32 %v2471, %v2571
      %v2728 = vadd.f32 %v2472, %v2574
      %v2729 = vadd.f32 %v2473, %v2577
      %v2730 = vadd.f32 %v2474, %v2580
      %v2731 = vadd.f32 %v2475, %v2583
      %v2732 = vadd.f32 %v2476, %v2586
      %v2733 = vadd.f32 %v2477, %v2589
      %v2734 = vadd.f32 %v2478, %v2592
      %v2735 = vadd.f32 %v2479, %v2595
      %v2736 = vadd.f32 %v2480, %v2598
      %v2737 = vadd.f32 %v2481, %v2601
      %v2738 = vadd.f32 %v2482, %v2604
      %v2739 = vadd.f32 %v2483, %v2607
      %v2740 = vadd.f32 %v2484, %v2610
      %v2741 = vadd.f32 %v2485, %v2613
      %v2742 = vadd.f32 %v2486, %v2616
      %v2743 = vadd.f32 %v2487, %v2619
      %v2744 = vadd.f32 %v2488, %v2622
      %v2745 = vadd.f32 %v2489, %v2625
      %v2746 = vadd.f32 %v2490, %v2628
      %v2747 = vadd.f32 %v2491, %v2631
      %v2748 = vadd.f32 %v2492, %v2634
      %v2749 = vadd.f32 %v2493, %v2637
      %v2750 = vadd.f32 %v2494, %v2640
      %v2751 = vadd.f32 %v2495, %v2643
      %v2752 = vadd.f32 %v2496, %v2646
      %v2753 = vadd.f32 %v2497, %v2649
      %v2754 = vadd.f32 %v2498, %v2652
      %v2755 = vadd.f32 %v2499, %v2655
      %v2756 = vadd.f32 %v2500, %v2658
      %v2757 = vadd.f32 %v2501, %v2661
      %v2758 = vadd.f32 %v2502, %v2664
      %v2759 = vadd.f32 %v2503, %v2667
      %v2760 = vadd.f32 %v2504, %v2670
      %v2761 = vadd.f32 %v2505, %v2673
      %v2762 = vadd.f32 %v2506, %v2676
      %v2763 = vadd.f32 %v2507, %v2679
      %v2764 = vadd.f32 %v2508, %v2682
      %v2765 = vadd.f32 %v2509, %v2685
      %v2766 = vadd.f32 %v2510, %v2688
      %v2767 = vadd.f32 %v2511, %v2691
      %v2768 = vadd.f32 %v2512, %v2694
      %v2769 = vadd.f32 %v2513, %v2697
      %v2770 = vadd.f32 %v2514, %v2700
      %v2771 = vadd.f32 %v2515, %v2703
      %v2772 = vadd.f32 %v2516, %v2706
      %v2773 = vadd.f32 %v2517, %v2709
      %vm2774 = vcmask 7168
      %2775 = vst.msk [vmem:[#allocation3] sm:$0xff] %vm2774, %v2710
      %2776 = vst.msk [vmem:[#allocation3 + $0x8] sm:$0xff] %vm2774, %v2711
      %2777 = vst.msk [vmem:[#allocation3 + $0x10] sm:$0xff] %vm2774, %v2712
      %2778 = vst.msk [vmem:[#allocation3 + $0x18] sm:$0xff] %vm2774, %v2713
      %2779 = vst.msk [vmem:[#allocation3 + $0x20] sm:$0xff] %vm2774, %v2714
      %2780 = vst.msk [vmem:[#allocation3 + $0x28] sm:$0xff] %vm2774, %v2715
      %2781 = vst.msk [vmem:[#allocation3 + $0x30] sm:$0xff] %vm2774, %v2716
      %2782 = vst.msk [vmem:[#allocation3 + $0x38] sm:$0xff] %vm2774, %v2717
      %2783 = vst.msk [vmem:[#allocation3 + $0x40] sm:$0xff] %vm2774, %v2718
      %2784 = vst.msk [vmem:[#allocation3 + $0x48] sm:$0xff] %vm2774, %v2719
      %2785 = vst.msk [vmem:[#allocation3 + $0x50] sm:$0xff] %vm2774, %v2720
      %2786 = vst.msk [vmem:[#allocation3 + $0x58] sm:$0xff] %vm2774, %v2721
      %2787 = vst.msk [vmem:[#allocation3 + $0x60] sm:$0xff] %vm2774, %v2722
      %2788 = vst.msk [vmem:[#allocation3 + $0x68] sm:$0xff] %vm2774, %v2723
      %2789 = vst.msk [vmem:[#allocation3 + $0x70] sm:$0xff] %vm2774, %v2724
      %2790 = vst.msk [vmem:[#allocation3 + $0x78] sm:$0xff] %vm2774, %v2725
      %2791 = vst.msk [vmem:[#allocation3 + $0x80] sm:$0xff] %vm2774, %v2726
      %2792 = vst.msk [vmem:[#allocation3 + $0x88] sm:$0xff] %vm2774, %v2727
      %2793 = vst.msk [vmem:[#allocation3 + $0x90] sm:$0xff] %vm2774, %v2728
      %2794 = vst.msk [vmem:[#allocation3 + $0x98] sm:$0xff] %vm2774, %v2729
      %2795 = vst.msk [vmem:[#allocation3 + $0xa0] sm:$0xff] %vm2774, %v2730
      %2796 = vst.msk [vmem:[#allocation3 + $0xa8] sm:$0xff] %vm2774, %v2731
      %2797 = vst.msk [vmem:[#allocation3 + $0xb0] sm:$0xff] %vm2774, %v2732
      %2798 = vst.msk [vmem:[#allocation3 + $0xb8] sm:$0xff] %vm2774, %v2733
      %2799 = vst.msk [vmem:[#allocation3 + $0xc0] sm:$0xff] %vm2774, %v2734
      %2800 = vst.msk [vmem:[#allocation3 + $0xc8] sm:$0xff] %vm2774, %v2735
      %2801 = vst.msk [vmem:[#allocation3 + $0xd0] sm:$0xff] %vm2774, %v2736
      %2802 = vst.msk [vmem:[#allocation3 + $0xd8] sm:$0xff] %vm2774, %v2737
      %2803 = vst.msk [vmem:[#allocation3 + $0xe0] sm:$0xff] %vm2774, %v2738
      %2804 = vst.msk [vmem:[#allocation3 + $0xe8] sm:$0xff] %vm2774, %v2739
      %2805 = vst.msk [vmem:[#allocation3 + $0xf0] sm:$0xff] %vm2774, %v2740
      %2806 = vst.msk [vmem:[#allocation3 + $0xf8] sm:$0xff] %vm2774, %v2741
      %2807 = vst.msk [vmem:[#allocation3 + $0x100] sm:$0xff] %vm2774, %v2742
      %2808 = vst.msk [vmem:[#allocation3 + $0x108] sm:$0xff] %vm2774, %v2743
      %2809 = vst.msk [vmem:[#allocation3 + $0x110] sm:$0xff] %vm2774, %v2744
      %2810 = vst.msk [vmem:[#allocation3 + $0x118] sm:$0xff] %vm2774, %v2745
      %2811 = vst.msk [vmem:[#allocation3 + $0x120] sm:$0xff] %vm2774, %v2746
      %2812 = vst.msk [vmem:[#allocation3 + $0x128] sm:$0xff] %vm2774, %v2747
      %2813 = vst.msk [vmem:[#allocation3 + $0x130] sm:$0xff] %vm2774, %v2748
      %2814 = vst.msk [vmem:[#allocation3 + $0x138] sm:$0xff] %vm2774, %v2749
      %2815 = vst.msk [vmem:[#allocation3 + $0x140] sm:$0xff] %vm2774, %v2750
      %2816 = vst.msk [vmem:[#allocation3 + $0x148] sm:$0xff] %vm2774, %v2751
      %2817 = vst.msk [vmem:[#allocation3 + $0x150] sm:$0xff] %vm2774, %v2752
      %2818 = vst.msk [vmem:[#allocation3 + $0x158] sm:$0xff] %vm2774, %v2753
      %2819 = vst.msk [vmem:[#allocation3 + $0x160] sm:$0xff] %vm2774, %v2754
      %2820 = vst.msk [vmem:[#allocation3 + $0x168] sm:$0xff] %vm2774, %v2755
      %2821 = vst.msk [vmem:[#allocation3 + $0x170] sm:$0xff] %vm2774, %v2756
      %2822 = vst.msk [vmem:[#allocation3 + $0x178] sm:$0xff] %vm2774, %v2757
      %2823 = vst.msk [vmem:[#allocation3 + $0x180] sm:$0xff] %vm2774, %v2758
      %2824 = vst.msk [vmem:[#allocation3 + $0x188] sm:$0xff] %vm2774, %v2759
      %2825 = vst.msk [vmem:[#allocation3 + $0x190] sm:$0xff] %vm2774, %v2760
      %2826 = vst.msk [vmem:[#allocation3 + $0x198] sm:$0xff] %vm2774, %v2761
      %2827 = vst.msk [vmem:[#allocation3 + $0x1a0] sm:$0xff] %vm2774, %v2762
      %2828 = vst.msk [vmem:[#allocation3 + $0x1a8] sm:$0xff] %vm2774, %v2763
      %2829 = vst.msk [vmem:[#allocation3 + $0x1b0] sm:$0xff] %vm2774, %v2764
      %2830 = vst.msk [vmem:[#allocation3 + $0x1b8] sm:$0xff] %vm2774, %v2765
      %2831 = vst.msk [vmem:[#allocation3 + $0x1c0] sm:$0xff] %vm2774, %v2766
      %2832 = vst.msk [vmem:[#allocation3 + $0x1c8] sm:$0xff] %vm2774, %v2767
      %2833 = vst.msk [vmem:[#allocation3 + $0x1d0] sm:$0xff] %vm2774, %v2768
      %2834 = vst.msk [vmem:[#allocation3 + $0x1d8] sm:$0xff] %vm2774, %v2769
      %2835 = vst.msk [vmem:[#allocation3 + $0x1e0] sm:$0xff] %vm2774, %v2770
      %2836 = vst.msk [vmem:[#allocation3 + $0x1e8] sm:$0xff] %vm2774, %v2771
      %2837 = vst.msk [vmem:[#allocation3 + $0x1f0] sm:$0xff] %vm2774, %v2772
      %2838 = vst.msk [vmem:[#allocation3 + $0x1f8] sm:$0xff] %vm2774, %v2773
      %v2839 = vld [vmem:[#allocation4] sm:$0xff]
      %v2840 = vld [vmem:[#allocation4 + $0x8] sm:$0xff]
      %v2841 = vld [vmem:[#allocation4 + $0x10] sm:$0xff]
      %v2842 = vld [vmem:[#allocation4 + $0x18] sm:$0xff]
      %v2843 = vld [vmem:[#allocation4 + $0x20] sm:$0xff]
      %v2844 = vld [vmem:[#allocation4 + $0x28] sm:$0xff]
      %v2845 = vld [vmem:[#allocation4 + $0x30] sm:$0xff]
      %v2846 = vld [vmem:[#allocation4 + $0x38] sm:$0xff]
      %v2847 = vld [vmem:[#allocation4 + $0x40] sm:$0xff]
      %v2848 = vld [vmem:[#allocation4 + $0x48] sm:$0xff]
      %v2849 = vld [vmem:[#allocation4 + $0x50] sm:$0xff]
      %v2850 = vld [vmem:[#allocation4 + $0x58] sm:$0xff]
      %v2851 = vld [vmem:[#allocation4 + $0x60] sm:$0xff]
      %v2852 = vld [vmem:[#allocation4 + $0x68] sm:$0xff]
      %v2853 = vld [vmem:[#allocation4 + $0x70] sm:$0xff]
      %v2854 = vld [vmem:[#allocation4 + $0x78] sm:$0xff]
      %v2855 = vld [vmem:[#allocation4 + $0x80] sm:$0xff]
      %v2856 = vld [vmem:[#allocation4 + $0x88] sm:$0xff]
      %v2857 = vld [vmem:[#allocation4 + $0x90] sm:$0xff]
      %v2858 = vld [vmem:[#allocation4 + $0x98] sm:$0xff]
      %v2859 = vld [vmem:[#allocation4 + $0xa0] sm:$0xff]
      %v2860 = vld [vmem:[#allocation4 + $0xa8] sm:$0xff]
      %v2861 = vld [vmem:[#allocation4 + $0xb0] sm:$0xff]
      %v2862 = vld [vmem:[#allocation4 + $0xb8] sm:$0xff]
      %v2863 = vld [vmem:[#allocation4 + $0xc0] sm:$0xff]
      %v2864 = vld [vmem:[#allocation4 + $0xc8] sm:$0xff]
      %v2865 = vld [vmem:[#allocation4 + $0xd0] sm:$0xff]
      %v2866 = vld [vmem:[#allocation4 + $0xd8] sm:$0xff]
      %v2867 = vld [vmem:[#allocation4 + $0xe0] sm:$0xff]
      %v2868 = vld [vmem:[#allocation4 + $0xe8] sm:$0xff]
      %v2869 = vld [vmem:[#allocation4 + $0xf0] sm:$0xff]
      %v2870 = vld [vmem:[#allocation4 + $0xf8] sm:$0xff]
      %v2871 = vld [vmem:[#allocation4 + $0x100] sm:$0xff]
      %v2872 = vld [vmem:[#allocation4 + $0x108] sm:$0xff]
      %v2873 = vld [vmem:[#allocation4 + $0x110] sm:$0xff]
      %v2874 = vld [vmem:[#allocation4 + $0x118] sm:$0xff]
      %v2875 = vld [vmem:[#allocation4 + $0x120] sm:$0xff]
      %v2876 = vld [vmem:[#allocation4 + $0x128] sm:$0xff]
      %v2877 = vld [vmem:[#allocation4 + $0x130] sm:$0xff]
      %v2878 = vld [vmem:[#allocation4 + $0x138] sm:$0xff]
      %v2879 = vld [vmem:[#allocation4 + $0x140] sm:$0xff]
      %v2880 = vld [vmem:[#allocation4 + $0x148] sm:$0xff]
      %v2881 = vld [vmem:[#allocation4 + $0x150] sm:$0xff]
      %v2882 = vld [vmem:[#allocation4 + $0x158] sm:$0xff]
      %v2883 = vld [vmem:[#allocation4 + $0x160] sm:$0xff]
      %v2884 = vld [vmem:[#allocation4 + $0x168] sm:$0xff]
      %v2885 = vld [vmem:[#allocation4 + $0x170] sm:$0xff]
      %v2886 = vld [vmem:[#allocation4 + $0x178] sm:$0xff]
      %v2887 = vld [vmem:[#allocation4 + $0x180] sm:$0xff]
      %v2888 = vld [vmem:[#allocation4 + $0x188] sm:$0xff]
      %v2889 = vld [vmem:[#allocation4 + $0x190] sm:$0xff]
      %v2890 = vld [vmem:[#allocation4 + $0x198] sm:$0xff]
      %v2891 = vld [vmem:[#allocation4 + $0x1a0] sm:$0xff]
      %v2892 = vld [vmem:[#allocation4 + $0x1a8] sm:$0xff]
      %v2893 = vld [vmem:[#allocation4 + $0x1b0] sm:$0xff]
      %v2894 = vld [vmem:[#allocation4 + $0x1b8] sm:$0xff]
      %v2895 = vld [vmem:[#allocation4 + $0x1c0] sm:$0xff]
      %v2896 = vld [vmem:[#allocation4 + $0x1c8] sm:$0xff]
      %v2897 = vld [vmem:[#allocation4 + $0x1d0] sm:$0xff]
      %v2898 = vld [vmem:[#allocation4 + $0x1d8] sm:$0xff]
      %v2899 = vld [vmem:[#allocation4 + $0x1e0] sm:$0xff]
      %v2900 = vld [vmem:[#allocation4 + $0x1e8] sm:$0xff]
      %v2901 = vld [vmem:[#allocation4 + $0x1f0] sm:$0xff]
      %v2902 = vld [vmem:[#allocation4 + $0x1f8] sm:$0xff]
      %2904 = vset.pattern.permute.xlu0 0
      %2905 = vperm.xlu0 %2904, %v1559
      %v2906 = vpop.permute.xlu0 %2905
      %2909 = vset.pattern.permute.xlu0 0
      %2910 = vperm.xlu0 %2909, %v1561
      %v2911 = vpop.permute.xlu0 %2910
      %2914 = vset.pattern.permute.xlu0 0
      %2915 = vperm.xlu0 %2914, %v1563
      %v2916 = vpop.permute.xlu0 %2915
      %2919 = vset.pattern.permute.xlu0 0
      %2920 = vperm.xlu0 %2919, %v1565
      %v2921 = vpop.permute.xlu0 %2920
      %2924 = vset.pattern.permute.xlu0 0
      %2925 = vperm.xlu0 %2924, %v1567
      %v2926 = vpop.permute.xlu0 %2925
      %2929 = vset.pattern.permute.xlu0 0
      %2930 = vperm.xlu0 %2929, %v1569
      %v2931 = vpop.permute.xlu0 %2930
      %2934 = vset.pattern.permute.xlu0 0
      %2935 = vperm.xlu0 %2934, %v1571
      %v2936 = vpop.permute.xlu0 %2935
      %2939 = vset.pattern.permute.xlu0 0
      %2940 = vperm.xlu0 %2939, %v1573
      %v2941 = vpop.permute.xlu0 %2940
      %2944 = vset.pattern.permute.xlu0 0
      %2945 = vperm.xlu0 %2944, %v1575
      %v2946 = vpop.permute.xlu0 %2945
      %2949 = vset.pattern.permute.xlu0 0
      %2950 = vperm.xlu0 %2949, %v1577
      %v2951 = vpop.permute.xlu0 %2950
      %2954 = vset.pattern.permute.xlu0 0
      %2955 = vperm.xlu0 %2954, %v1579
      %v2956 = vpop.permute.xlu0 %2955
      %2959 = vset.pattern.permute.xlu0 0
      %2960 = vperm.xlu0 %2959, %v1581
      %v2961 = vpop.permute.xlu0 %2960
      %2964 = vset.pattern.permute.xlu0 0
      %2965 = vperm.xlu0 %2964, %v1583
      %v2966 = vpop.permute.xlu0 %2965
      %2969 = vset.pattern.permute.xlu0 0
      %2970 = vperm.xlu0 %2969, %v1585
      %v2971 = vpop.permute.xlu0 %2970
      %2974 = vset.pattern.permute.xlu0 0
      %2975 = vperm.xlu0 %2974, %v1587
      %v2976 = vpop.permute.xlu0 %2975
      %2979 = vset.pattern.permute.xlu0 0
      %2980 = vperm.xlu0 %2979, %v1589
      %v2981 = vpop.permute.xlu0 %2980
      %2984 = vset.pattern.permute.xlu0 0
      %2985 = vperm.xlu0 %2984, %v1591
      %v2986 = vpop.permute.xlu0 %2985
      %2989 = vset.pattern.permute.xlu0 0
      %2990 = vperm.xlu0 %2989, %v1593
      %v2991 = vpop.permute.xlu0 %2990
      %2994 = vset.pattern.permute.xlu0 0
      %2995 = vperm.xlu0 %2994, %v1595
      %v2996 = vpop.permute.xlu0 %2995
      %2999 = vset.pattern.permute.xlu0 0
      %3000 = vperm.xlu0 %2999, %v1597
      %v3001 = vpop.permute.xlu0 %3000
      %3004 = vset.pattern.permute.xlu0 0
      %3005 = vperm.xlu0 %3004, %v1599
      %v3006 = vpop.permute.xlu0 %3005
      %3009 = vset.pattern.permute.xlu0 0
      %3010 = vperm.xlu0 %3009, %v1601
      %v3011 = vpop.permute.xlu0 %3010
      %3014 = vset.pattern.permute.xlu0 0
      %3015 = vperm.xlu0 %3014, %v1603
      %v3016 = vpop.permute.xlu0 %3015
      %3019 = vset.pattern.permute.xlu0 0
      %3020 = vperm.xlu0 %3019, %v1605
      %v3021 = vpop.permute.xlu0 %3020
      %3024 = vset.pattern.permute.xlu0 0
      %3025 = vperm.xlu0 %3024, %v1607
      %v3026 = vpop.permute.xlu0 %3025
      %3029 = vset.pattern.permute.xlu0 0
      %3030 = vperm.xlu0 %3029, %v1609
      %v3031 = vpop.permute.xlu0 %3030
      %3034 = vset.pattern.permute.xlu0 0
      %3035 = vperm.xlu0 %3034, %v1611
      %v3036 = vpop.permute.xlu0 %3035
      %3039 = vset.pattern.permute.xlu0 0
      %3040 = vperm.xlu0 %3039, %v1613
      %v3041 = vpop.permute.xlu0 %3040
      %3044 = vset.pattern.permute.xlu0 0
      %3045 = vperm.xlu0 %3044, %v1615
      %v3046 = vpop.permute.xlu0 %3045
      %3049 = vset.pattern.permute.xlu0 0
      %3050 = vperm.xlu0 %3049, %v1617
      %v3051 = vpop.permute.xlu0 %3050
      %3054 = vset.pattern.permute.xlu0 0
      %3055 = vperm.xlu0 %3054, %v1619
      %v3056 = vpop.permute.xlu0 %3055
      %3059 = vset.pattern.permute.xlu0 0
      %3060 = vperm.xlu0 %3059, %v1621
      %v3061 = vpop.permute.xlu0 %3060
      %3064 = vset.pattern.permute.xlu0 0
      %3065 = vperm.xlu0 %3064, %v1623
      %v3066 = vpop.permute.xlu0 %3065
      %3069 = vset.pattern.permute.xlu0 0
      %3070 = vperm.xlu0 %3069, %v1625
      %v3071 = vpop.permute.xlu0 %3070
      %3074 = vset.pattern.permute.xlu0 0
      %3075 = vperm.xlu0 %3074, %v1627
      %v3076 = vpop.permute.xlu0 %3075
      %3079 = vset.pattern.permute.xlu0 0
      %3080 = vperm.xlu0 %3079, %v1629
      %v3081 = vpop.permute.xlu0 %3080
      %3084 = vset.pattern.permute.xlu0 0
      %3085 = vperm.xlu0 %3084, %v1631
      %v3086 = vpop.permute.xlu0 %3085
      %3089 = vset.pattern.permute.xlu0 0
      %3090 = vperm.xlu0 %3089, %v1633
      %v3091 = vpop.permute.xlu0 %3090
      %3094 = vset.pattern.permute.xlu0 0
      %3095 = vperm.xlu0 %3094, %v1635
      %v3096 = vpop.permute.xlu0 %3095
      %3099 = vset.pattern.permute.xlu0 0
      %3100 = vperm.xlu0 %3099, %v1637
      %v3101 = vpop.permute.xlu0 %3100
      %3104 = vset.pattern.permute.xlu0 0
      %3105 = vperm.xlu0 %3104, %v1639
      %v3106 = vpop.permute.xlu0 %3105
      %3109 = vset.pattern.permute.xlu0 0
      %3110 = vperm.xlu0 %3109, %v1641
      %v3111 = vpop.permute.xlu0 %3110
      %3114 = vset.pattern.permute.xlu0 0
      %3115 = vperm.xlu0 %3114, %v1643
      %v3116 = vpop.permute.xlu0 %3115
      %3119 = vset.pattern.permute.xlu0 0
      %3120 = vperm.xlu0 %3119, %v1645
      %v3121 = vpop.permute.xlu0 %3120
      %3124 = vset.pattern.permute.xlu0 0
      %3125 = vperm.xlu0 %3124, %v1647
      %v3126 = vpop.permute.xlu0 %3125
      %3129 = vset.pattern.permute.xlu0 0
      %3130 = vperm.xlu0 %3129, %v1649
      %v3131 = vpop.permute.xlu0 %3130
      %3134 = vset.pattern.permute.xlu0 0
      %3135 = vperm.xlu0 %3134, %v1651
      %v3136 = vpop.permute.xlu0 %3135
      %3139 = vset.pattern.permute.xlu0 0
      %3140 = vperm.xlu0 %3139, %v1653
      %v3141 = vpop.permute.xlu0 %3140
      %3144 = vset.pattern.permute.xlu0 0
      %3145 = vperm.xlu0 %3144, %v1655
      %v3146 = vpop.permute.xlu0 %3145
      %3149 = vset.pattern.permute.xlu0 0
      %3150 = vperm.xlu0 %3149, %v1657
      %v3151 = vpop.permute.xlu0 %3150
      %3154 = vset.pattern.permute.xlu0 0
      %3155 = vperm.xlu0 %3154, %v1659
      %v3156 = vpop.permute.xlu0 %3155
      %3159 = vset.pattern.permute.xlu0 0
      %3160 = vperm.xlu0 %3159, %v1661
      %v3161 = vpop.permute.xlu0 %3160
      %3164 = vset.pattern.permute.xlu0 0
      %3165 = vperm.xlu0 %3164, %v1663
      %v3166 = vpop.permute.xlu0 %3165
      %3169 = vset.pattern.permute.xlu0 0
      %3170 = vperm.xlu0 %3169, %v1665
      %v3171 = vpop.permute.xlu0 %3170
      %3174 = vset.pattern.permute.xlu0 0
      %3175 = vperm.xlu0 %3174, %v1667
      %v3176 = vpop.permute.xlu0 %3175
      %3179 = vset.pattern.permute.xlu0 0
      %3180 = vperm.xlu0 %3179, %v1669
      %v3181 = vpop.permute.xlu0 %3180
      %3184 = vset.pattern.permute.xlu0 0
      %3185 = vperm.xlu0 %3184, %v1671
      %v3186 = vpop.permute.xlu0 %3185
      %3189 = vset.pattern.permute.xlu0 0
      %3190 = vperm.xlu0 %3189, %v1673
      %v3191 = vpop.permute.xlu0 %3190
      %3194 = vset.pattern.permute.xlu0 0
      %3195 = vperm.xlu0 %3194, %v1675
      %v3196 = vpop.permute.xlu0 %3195
      %3199 = vset.pattern.permute.xlu0 0
      %3200 = vperm.xlu0 %3199, %v1677
      %v3201 = vpop.permute.xlu0 %3200
      %3204 = vset.pattern.permute.xlu0 0
      %3205 = vperm.xlu0 %3204, %v1679
      %v3206 = vpop.permute.xlu0 %3205
      %3209 = vset.pattern.permute.xlu0 0
      %3210 = vperm.xlu0 %3209, %v1681
      %v3211 = vpop.permute.xlu0 %3210
      %3214 = vset.pattern.permute.xlu0 0
      %3215 = vperm.xlu0 %3214, %v1683
      %v3216 = vpop.permute.xlu0 %3215
      %3219 = vset.pattern.permute.xlu0 0
      %3220 = vperm.xlu0 %3219, %v1685
      %v3221 = vpop.permute.xlu0 %3220
      %v3223 = vmul.f32 %v2906, %v2839
      %v3224 = vmul.f32 %v2911, %v2840
      %v3225 = vmul.f32 %v2916, %v2841
      %v3226 = vmul.f32 %v2921, %v2842
      %v3227 = vmul.f32 %v2926, %v2843
      %v3228 = vmul.f32 %v2931, %v2844
      %v3229 = vmul.f32 %v2936, %v2845
      %v3230 = vmul.f32 %v2941, %v2846
      %v3231 = vmul.f32 %v2946, %v2847
      %v3232 = vmul.f32 %v2951, %v2848
      %v3233 = vmul.f32 %v2956, %v2849
      %v3234 = vmul.f32 %v2961, %v2850
      %v3235 = vmul.f32 %v2966, %v2851
      %v3236 = vmul.f32 %v2971, %v2852
      %v3237 = vmul.f32 %v2976, %v2853
      %v3238 = vmul.f32 %v2981, %v2854
      %v3239 = vmul.f32 %v2986, %v2855
      %v3240 = vmul.f32 %v2991, %v2856
      %v3241 = vmul.f32 %v2996, %v2857
      %v3242 = vmul.f32 %v3001, %v2858
      %v3243 = vmul.f32 %v3006, %v2859
      %v3244 = vmul.f32 %v3011, %v2860
      %v3245 = vmul.f32 %v3016, %v2861
      %v3246 = vmul.f32 %v3021, %v2862
      %v3247 = vmul.f32 %v3026, %v2863
      %v3248 = vmul.f32 %v3031, %v2864
      %v3249 = vmul.f32 %v3036, %v2865
      %v3250 = vmul.f32 %v3041, %v2866
      %v3251 = vmul.f32 %v3046, %v2867
      %v3252 = vmul.f32 %v3051, %v2868
      %v3253 = vmul.f32 %v3056, %v2869
      %v3254 = vmul.f32 %v3061, %v2870
      %v3255 = vmul.f32 %v3066, %v2871
      %v3256 = vmul.f32 %v3071, %v2872
      %v3257 = vmul.f32 %v3076, %v2873
      %v3258 = vmul.f32 %v3081, %v2874
      %v3259 = vmul.f32 %v3086, %v2875
      %v3260 = vmul.f32 %v3091, %v2876
      %v3261 = vmul.f32 %v3096, %v2877
      %v3262 = vmul.f32 %v3101, %v2878
      %v3263 = vmul.f32 %v3106, %v2879
      %v3264 = vmul.f32 %v3111, %v2880
      %v3265 = vmul.f32 %v3116, %v2881
      %v3266 = vmul.f32 %v3121, %v2882
      %v3267 = vmul.f32 %v3126, %v2883
      %v3268 = vmul.f32 %v3131, %v2884
      %v3269 = vmul.f32 %v3136, %v2885
      %v3270 = vmul.f32 %v3141, %v2886
      %v3271 = vmul.f32 %v3146, %v2887
      %v3272 = vmul.f32 %v3151, %v2888
      %v3273 = vmul.f32 %v3156, %v2889
      %v3274 = vmul.f32 %v3161, %v2890
      %v3275 = vmul.f32 %v3166, %v2891
      %v3276 = vmul.f32 %v3171, %v2892
      %v3277 = vmul.f32 %v3176, %v2893
      %v3278 = vmul.f32 %v3181, %v2894
      %v3279 = vmul.f32 %v3186, %v2895
      %v3280 = vmul.f32 %v3191, %v2896
      %v3281 = vmul.f32 %v3196, %v2897
      %v3282 = vmul.f32 %v3201, %v2898
      %v3283 = vmul.f32 %v3206, %v2899
      %v3284 = vmul.f32 %v3211, %v2900
      %v3285 = vmul.f32 %v3216, %v2901
      %v3286 = vmul.f32 %v3221, %v2902
      %v3287 = vpack.c.bf16 %v2139, %v2135
      %v3288 = vpack.c.bf16 %v2141, %v2137
      %v3289 = vpack.c.bf16 %v2147, %v2143
      %v3290 = vpack.c.bf16 %v2149, %v2145
      %v3291 = vpack.c.bf16 %v2155, %v2151
      %v3292 = vpack.c.bf16 %v2157, %v2153
      %v3293 = vpack.c.bf16 %v2163, %v2159
      %v3294 = vpack.c.bf16 %v2165, %v2161
      %v3295 = vpack.c.bf16 %v2171, %v2167
      %v3296 = vpack.c.bf16 %v2173, %v2169
      %v3297 = vpack.c.bf16 %v2179, %v2175
      %v3298 = vpack.c.bf16 %v2181, %v2177
      %v3299 = vpack.c.bf16 %v2187, %v2183
      %v3300 = vpack.c.bf16 %v2189, %v2185
      %v3301 = vpack.c.bf16 %v2195, %v2191
      %v3302 = vpack.c.bf16 %v2197, %v2193
      %v3303 = vpack.c.bf16 %v2203, %v2199
      %v3304 = vpack.c.bf16 %v2205, %v2201
      %v3305 = vpack.c.bf16 %v2211, %v2207
      %v3306 = vpack.c.bf16 %v2213, %v2209
      %v3307 = vpack.c.bf16 %v2219, %v2215
      %v3308 = vpack.c.bf16 %v2221, %v2217
      %v3309 = vpack.c.bf16 %v2227, %v2223
      %v3310 = vpack.c.bf16 %v2229, %v2225
      %v3311 = vpack.c.bf16 %v2235, %v2231
      %v3312 = vpack.c.bf16 %v2237, %v2233
      %v3313 = vpack.c.bf16 %v2243, %v2239
      %v3314 = vpack.c.bf16 %v2245, %v2241
      %v3315 = vpack.c.bf16 %v2251, %v2247
      %v3316 = vpack.c.bf16 %v2253, %v2249
      %v3317 = vpack.c.bf16 %v2259, %v2255
      %v3318 = vpack.c.bf16 %v2261, %v2257
      %v3319 = vpack.c.bf16 %v2267, %v2263
      %v3320 = vpack.c.bf16 %v2269, %v2265
      %v3321 = vpack.c.bf16 %v2275, %v2271
      %v3322 = vpack.c.bf16 %v2277, %v2273
      %v3323 = vpack.c.bf16 %v2283, %v2279
      %v3324 = vpack.c.bf16 %v2285, %v2281
      %v3325 = vpack.c.bf16 %v2291, %v2287
      %v3326 = vpack.c.bf16 %v2293, %v2289
      %v3327 = vpack.c.bf16 %v2299, %v2295
      %v3328 = vpack.c.bf16 %v2301, %v2297
      %v3329 = vpack.c.bf16 %v2307, %v2303
      %v3330 = vpack.c.bf16 %v2309, %v2305
      %v3331 = vpack.c.bf16 %v2315, %v2311
      %v3332 = vpack.c.bf16 %v2317, %v2313
      %v3333 = vpack.c.bf16 %v2323, %v2319
      %v3334 = vpack.c.bf16 %v2325, %v2321
      %v3335 = vpack.c.bf16 %v2331, %v2327
      %v3336 = vpack.c.bf16 %v2333, %v2329
      %v3337 = vpack.c.bf16 %v2339, %v2335
      %v3338 = vpack.c.bf16 %v2341, %v2337
      %v3339 = vpack.c.bf16 %v2347, %v2343
      %v3340 = vpack.c.bf16 %v2349, %v2345
      %v3341 = vpack.c.bf16 %v2355, %v2351
      %v3342 = vpack.c.bf16 %v2357, %v2353
      %v3343 = vpack.c.bf16 %v2363, %v2359
      %v3344 = vpack.c.bf16 %v2365, %v2361
      %v3345 = vpack.c.bf16 %v2371, %v2367
      %v3346 = vpack.c.bf16 %v2373, %v2369
      %v3347 = vpack.c.bf16 %v2379, %v2375
      %v3348 = vpack.c.bf16 %v2381, %v2377
      %v3349 = vpack.c.bf16 %v2387, %v2383
      %v3350 = vpack.c.bf16 %v2389, %v2385
      %v3351 = vld [vmem:[%s277] sm:$0xf]
      %v3352 = vld [vmem:[%s277 + $0x4] sm:$0xf]
      %v3353 = vld [vmem:[%s277 + $0x8] sm:$0xf]
      %v3354 = vld [vmem:[%s277 + $0xc] sm:$0xf]
      %v3355 = vld [vmem:[%s277 + $0x10] sm:$0xf]
      %v3356 = vld [vmem:[%s277 + $0x14] sm:$0xf]
      %v3357 = vld [vmem:[%s277 + $0x18] sm:$0xf]
      %v3358 = vld [vmem:[%s277 + $0x1c] sm:$0xf]
      %v3359 = vld [vmem:[%s277 + $0x20] sm:$0xf]
      %v3360 = vld [vmem:[%s277 + $0x24] sm:$0xf]
      %v3361 = vld [vmem:[%s277 + $0x28] sm:$0xf]
      %v3362 = vld [vmem:[%s277 + $0x2c] sm:$0xf]
      %v3363 = vld [vmem:[%s277 + $0x30] sm:$0xf]
      %v3364 = vld [vmem:[%s277 + $0x34] sm:$0xf]
      %v3365 = vld [vmem:[%s277 + $0x38] sm:$0xf]
      %v3366 = vld [vmem:[%s277 + $0x3c] sm:$0xf]
      %v3367 = vld [vmem:[%s277 + $0x40] sm:$0xf]
      %v3368 = vld [vmem:[%s277 + $0x44] sm:$0xf]
      %v3369 = vld [vmem:[%s277 + $0x48] sm:$0xf]
      %v3370 = vld [vmem:[%s277 + $0x4c] sm:$0xf]
      %v3371 = vld [vmem:[%s277 + $0x50] sm:$0xf]
      %v3372 = vld [vmem:[%s277 + $0x54] sm:$0xf]
      %v3373 = vld [vmem:[%s277 + $0x58] sm:$0xf]
      %v3374 = vld [vmem:[%s277 + $0x5c] sm:$0xf]
      %v3375 = vld [vmem:[%s277 + $0x60] sm:$0xf]
      %v3376 = vld [vmem:[%s277 + $0x64] sm:$0xf]
      %v3377 = vld [vmem:[%s277 + $0x68] sm:$0xf]
      %v3378 = vld [vmem:[%s277 + $0x6c] sm:$0xf]
      %v3379 = vld [vmem:[%s277 + $0x70] sm:$0xf]
      %v3380 = vld [vmem:[%s277 + $0x74] sm:$0xf]
      %v3381 = vld [vmem:[%s277 + $0x78] sm:$0xf]
      %v3382 = vld [vmem:[%s277 + $0x7c] sm:$0xf]
      %v3415 = vunpack.c.l.b16 %v3351
      %v3416 = vunpack.c.l.b16 %v3352
      %v3417 = vunpack.c.l.b16 %v3353
      %v3418 = vunpack.c.l.b16 %v3354
      %v3419 = vunpack.c.l.b16 %v3355
      %v3420 = vunpack.c.l.b16 %v3356
      %v3421 = vunpack.c.l.b16 %v3357
      %v3422 = vunpack.c.l.b16 %v3358
      %v3423 = vunpack.c.l.b16 %v3359
      %v3424 = vunpack.c.l.b16 %v3360
      %v3425 = vunpack.c.l.b16 %v3361
      %v3426 = vunpack.c.l.b16 %v3362
      %v3427 = vunpack.c.l.b16 %v3363
      %v3428 = vunpack.c.l.b16 %v3364
      %v3429 = vunpack.c.l.b16 %v3365
      %v3430 = vunpack.c.l.b16 %v3366
      %v3431 = vunpack.c.l.b16 %v3367
      %v3432 = vunpack.c.l.b16 %v3368
      %v3433 = vunpack.c.l.b16 %v3369
      %v3434 = vunpack.c.l.b16 %v3370
      %v3435 = vunpack.c.l.b16 %v3371
      %v3436 = vunpack.c.l.b16 %v3372
      %v3437 = vunpack.c.l.b16 %v3373
      %v3438 = vunpack.c.l.b16 %v3374
      %v3439 = vunpack.c.l.b16 %v3375
      %v3440 = vunpack.c.l.b16 %v3376
      %v3441 = vunpack.c.l.b16 %v3377
      %v3442 = vunpack.c.l.b16 %v3378
      %v3443 = vunpack.c.l.b16 %v3379
      %v3444 = vunpack.c.l.b16 %v3380
      %v3445 = vunpack.c.l.b16 %v3381
      %v3446 = vunpack.c.l.b16 %v3382
      %v3447 = vpack.c.b16 %v3416, %v3415
      %v3448 = vpack.c.b16 %v3418, %v3417
      %v3449 = vpack.c.b16 %v3420, %v3419
      %v3450 = vpack.c.b16 %v3422, %v3421
      %v3451 = vpack.c.b16 %v3424, %v3423
      %v3452 = vpack.c.b16 %v3426, %v3425
      %v3453 = vpack.c.b16 %v3428, %v3427
      %v3454 = vpack.c.b16 %v3430, %v3429
      %v3455 = vpack.c.b16 %v3432, %v3431
      %v3456 = vpack.c.b16 %v3434, %v3433
      %v3457 = vpack.c.b16 %v3436, %v3435
      %v3458 = vpack.c.b16 %v3438, %v3437
      %v3459 = vpack.c.b16 %v3440, %v3439
      %v3460 = vpack.c.b16 %v3442, %v3441
      %v3461 = vpack.c.b16 %v3444, %v3443
      %v3462 = vpack.c.b16 %v3446, %v3445
      %3479 = vmatprep.subr.bf16.mxu0 0
      %3480 = vmatpush1.bf16.msra.mxu0 %v3447
      %3481 = vmatprep.subr.bf16.mxu0 0
      %3482 = vmatpush1.bf16.msra.mxu0 %v3448
      %3483 = vmatprep.subr.bf16.mxu0 0
      %3484 = vmatpush1.bf16.msra.mxu0 %v3449
      %3485 = vmatprep.subr.bf16.mxu0 0
      %3486 = vmatpush1.bf16.msra.mxu0 %v3450
      %3487 = vmatprep.subr.bf16.mxu0 0
      %3488 = vmatpush1.bf16.msra.mxu0 %v3451
      %3489 = vmatprep.subr.bf16.mxu0 0
      %3490 = vmatpush1.bf16.msra.mxu0 %v3452
      %3491 = vmatprep.subr.bf16.mxu0 0
      %3492 = vmatpush1.bf16.msra.mxu0 %v3453
      %3493 = vmatprep.subr.bf16.mxu0 0
      %3494 = vmatpush1.bf16.msra.mxu0 %v3454
      %3495 = vmatprep.subr.bf16.mxu0 0
      %3496 = vmatpush1.bf16.msra.mxu0 %v3455
      %3497 = vmatprep.subr.bf16.mxu0 0
      %3498 = vmatpush1.bf16.msra.mxu0 %v3456
      %3499 = vmatprep.subr.bf16.mxu0 0
      %3500 = vmatpush1.bf16.msra.mxu0 %v3457
      %3501 = vmatprep.subr.bf16.mxu0 0
      %3502 = vmatpush1.bf16.msra.mxu0 %v3458
      %3503 = vmatprep.subr.bf16.mxu0 0
      %3504 = vmatpush1.bf16.msra.mxu0 %v3459
      %3505 = vmatprep.subr.bf16.mxu0 0
      %3506 = vmatpush1.bf16.msra.mxu0 %v3460
      %3507 = vmatprep.subr.bf16.mxu0 0
      %3508 = vmatpush1.bf16.msra.mxu0 %v3461
      %3509 = vmatprep.subr.bf16.mxu0 0
      %3510 = vmatpush1.bf16.msra.mxu0 %v3462
      %3511 = vmatprep.mubr.bf16.mxu0 %v3288
      %3512 = vmatmul.mubr.bf16.gmra.mrb[0].mxu0 %v3287
      %v3513 = vpop.f32.mrb[0].mxu0
      %v3514 = vadd.f32 0.0, %v3513
      %v3515 = vpop.f32.mrb[0].mxu0
      %v3516 = vpop.f32.mrb[0].mxu0
      %v3517 = vadd.f32 0.0, %v3516
      %v3518 = vpop.f32.mrb[0].mxu0
      %3519 = vmatprep.mubr.bf16.mxu0 %v3290
      %3520 = vmatmul.mubr.bf16.gmra.mrb[0].mxu0 %v3289
      %v3521 = vpop.f32.mrb[0].mxu0
      %v3522 = vadd.f32 0.0, %v3521
      %v3523 = vpop.f32.mrb[0].mxu0
      %v3524 = vpop.f32.mrb[0].mxu0
      %v3525 = vadd.f32 0.0, %v3524
      %v3526 = vpop.f32.mrb[0].mxu0
      %3527 = vmatprep.mubr.bf16.mxu0 %v3292
      %3528 = vmatmul.mubr.bf16.gmra.mrb[0].mxu0 %v3291
      %v3529 = vpop.f32.mrb[0].mxu0
      %v3530 = vadd.f32 0.0, %v3529
      %v3531 = vpop.f32.mrb[0].mxu0
      %v3532 = vpop.f32.mrb[0].mxu0
      %v3533 = vadd.f32 0.0, %v3532
      %v3534 = vpop.f32.mrb[0].mxu0
      %3535 = vmatprep.mubr.bf16.mxu0 %v3294
      %3536 = vmatmul.mubr.bf16.gmra.mrb[0].mxu0 %v3293
      %v3537 = vpop.f32.mrb[0].mxu0
      %v3538 = vadd.f32 0.0, %v3537
      %v3539 = vpop.f32.mrb[0].mxu0
      %v3540 = vpop.f32.mrb[0].mxu0
      %v3541 = vadd.f32 0.0, %v3540
      %v3542 = vpop.f32.mrb[0].mxu0
      %3543 = vmatprep.mubr.bf16.mxu0 %v3296
      %3544 = vmatmul.mubr.bf16.gmra.mrb[0].mxu0 %v3295
      %v3545 = vpop.f32.mrb[0].mxu0
      %v3546 = vadd.f32 0.0, %v3545
      %v3547 = vpop.f32.mrb[0].mxu0
      %v3548 = vpop.f32.mrb[0].mxu0
      %v3549 = vadd.f32 0.0, %v3548
      %v3550 = vpop.f32.mrb[0].mxu0
      %3551 = vmatprep.mubr.bf16.mxu0 %v3298
      %3552 = vmatmul.mubr.bf16.gmra.mrb[0].mxu0 %v3297
      %v3553 = vpop.f32.mrb[0].mxu0
      %v3554 = vadd.f32 0.0, %v3553
      %v3555 = vpop.f32.mrb[0].mxu0
      %v3556 = vpop.f32.mrb[0].mxu0
      %v3557 = vadd.f32 0.0, %v3556
      %v3558 = vpop.f32.mrb[0].mxu0
      %3559 = vmatprep.mubr.bf16.mxu0 %v3300
      %3560 = vmatmul.mubr.bf16.gmra.mrb[0].mxu0 %v3299
      %v3561 = vpop.f32.mrb[0].mxu0
      %v3562 = vadd.f32 0.0, %v3561
      %v3563 = vpop.f32.mrb[0].mxu0
      %v3564 = vpop.f32.mrb[0].mxu0
      %v3565 = vadd.f32 0.0, %v3564
      %v3566 = vpop.f32.mrb[0].mxu0
      %3567 = vmatprep.mubr.bf16.mxu0 %v3302
      %3568 = vmatmul.mubr.bf16.gmra.mrb[0].mxu0 %v3301
      %v3569 = vpop.f32.mrb[0].mxu0
      %v3570 = vadd.f32 0.0, %v3569
      %v3571 = vpop.f32.mrb[0].mxu0
      %v3572 = vpop.f32.mrb[0].mxu0
      %v3573 = vadd.f32 0.0, %v3572
      %v3574 = vpop.f32.mrb[0].mxu0
      %3575 = vmatprep.mubr.bf16.mxu0 %v3304
      %3576 = vmatmul.mubr.bf16.gmra.mrb[0].mxu0 %v3303
      %v3577 = vpop.f32.mrb[0].mxu0
      %v3578 = vadd.f32 0.0, %v3577
      %v3579 = vpop.f32.mrb[0].mxu0
      %v3580 = vpop.f32.mrb[0].mxu0
      %v3581 = vadd.f32 0.0, %v3580
      %v3582 = vpop.f32.mrb[0].mxu0
      %3583 = vmatprep.mubr.bf16.mxu0 %v3306
      %3584 = vmatmul.mubr.bf16.gmra.mrb[0].mxu0 %v3305
      %v3585 = vpop.f32.mrb[0].mxu0
      %v3586 = vadd.f32 0.0, %v3585
      %v3587 = vpop.f32.mrb[0].mxu0
      %v3588 = vpop.f32.mrb[0].mxu0
      %v3589 = vadd.f32 0.0, %v3588
      %v3590 = vpop.f32.mrb[0].mxu0
      %3591 = vmatprep.mubr.bf16.mxu0 %v3308
      %3592 = vmatmul.mubr.bf16.gmra.mrb[0].mxu0 %v3307
      %v3593 = vpop.f32.mrb[0].mxu0
      %v3594 = vadd.f32 0.0, %v3593
      %v3595 = vpop.f32.mrb[0].mxu0
      %v3596 = vpop.f32.mrb[0].mxu0
      %v3597 = vadd.f32 0.0, %v3596
      %v3598 = vpop.f32.mrb[0].mxu0
      %3599 = vmatprep.mubr.bf16.mxu0 %v3310
      %3600 = vmatmul.mubr.bf16.gmra.mrb[0].mxu0 %v3309
      %v3601 = vpop.f32.mrb[0].mxu0
      %v3602 = vadd.f32 0.0, %v3601
      %v3603 = vpop.f32.mrb[0].mxu0
      %v3604 = vpop.f32.mrb[0].mxu0
      %v3605 = vadd.f32 0.0, %v3604
      %v3606 = vpop.f32.mrb[0].mxu0
      %3607 = vmatprep.mubr.bf16.mxu0 %v3312
      %3608 = vmatmul.mubr.bf16.gmra.mrb[0].mxu0 %v3311
      %v3609 = vpop.f32.mrb[0].mxu0
      %v3610 = vadd.f32 0.0, %v3609
      %v3611 = vpop.f32.mrb[0].mxu0
      %v3612 = vpop.f32.mrb[0].mxu0
      %v3613 = vadd.f32 0.0, %v3612
      %v3614 = vpop.f32.mrb[0].mxu0
      %3615 = vmatprep.mubr.bf16.mxu0 %v3314
      %3616 = vmatmul.mubr.bf16.gmra.mrb[0].mxu0 %v3313
      %v3617 = vpop.f32.mrb[0].mxu0
      %v3618 = vadd.f32 0.0, %v3617
      %v3619 = vpop.f32.mrb[0].mxu0
      %v3620 = vpop.f32.mrb[0].mxu0
      %v3621 = vadd.f32 0.0, %v3620
      %v3622 = vpop.f32.mrb[0].mxu0
      %3623 = vmatprep.mubr.bf16.mxu0 %v3316
      %3624 = vmatmul.mubr.bf16.gmra.mrb[0].mxu0 %v3315
      %v3625 = vpop.f32.mrb[0].mxu0
      %v3626 = vadd.f32 0.0, %v3625
      %v3627 = vpop.f32.mrb[0].mxu0
      %v3628 = vpop.f32.mrb[0].mxu0
      %v3629 = vadd.f32 0.0, %v3628
      %v3630 = vpop.f32.mrb[0].mxu0
      %3631 = vmatprep.mubr.bf16.mxu0 %v3318
      %3632 = vmatmul.mubr.bf16.gmra.mrb[0].mxu0 %v3317
      %v3633 = vpop.f32.mrb[0].mxu0
      %v3634 = vadd.f32 0.0, %v3633
      %v3635 = vpop.f32.mrb[0].mxu0
      %v3636 = vpop.f32.mrb[0].mxu0
      %v3637 = vadd.f32 0.0, %v3636
      %v3638 = vpop.f32.mrb[0].mxu0
      %3639 = vmatprep.mubr.bf16.mxu0 %v3320
      %3640 = vmatmul.mubr.bf16.gmra.mrb[0].mxu0 %v3319
      %v3641 = vpop.f32.mrb[0].mxu0
      %v3642 = vadd.f32 0.0, %v3641
      %v3643 = vpop.f32.mrb[0].mxu0
      %v3644 = vpop.f32.mrb[0].mxu0
      %v3645 = vadd.f32 0.0, %v3644
      %v3646 = vpop.f32.mrb[0].mxu0
      %3647 = vmatprep.mubr.bf16.mxu0 %v3322
      %3648 = vmatmul.mubr.bf16.gmra.mrb[0].mxu0 %v3321
      %v3649 = vpop.f32.mrb[0].mxu0
      %v3650 = vadd.f32 0.0, %v3649
      %v3651 = vpop.f32.mrb[0].mxu0
      %v3652 = vpop.f32.mrb[0].mxu0
      %v3653 = vadd.f32 0.0, %v3652
      %v3654 = vpop.f32.mrb[0].mxu0
      %3655 = vmatprep.mubr.bf16.mxu0 %v3324
      %3656 = vmatmul.mubr.bf16.gmra.mrb[0].mxu0 %v3323
      %v3657 = vpop.f32.mrb[0].mxu0
      %v3658 = vadd.f32 0.0, %v3657
      %v3659 = vpop.f32.mrb[0].mxu0
      %v3660 = vpop.f32.mrb[0].mxu0
      %v3661 = vadd.f32 0.0, %v3660
      %v3662 = vpop.f32.mrb[0].mxu0
      %3663 = vmatprep.mubr.bf16.mxu0 %v3326
      %3664 = vmatmul.mubr.bf16.gmra.mrb[0].mxu0 %v3325
      %v3665 = vpop.f32.mrb[0].mxu0
      %v3666 = vadd.f32 0.0, %v3665
      %v3667 = vpop.f32.mrb[0].mxu0
      %v3668 = vpop.f32.mrb[0].mxu0
      %v3669 = vadd.f32 0.0, %v3668
      %v3670 = vpop.f32.mrb[0].mxu0
      %3671 = vmatprep.mubr.bf16.mxu0 %v3328
      %3672 = vmatmul.mubr.bf16.gmra.mrb[0].mxu0 %v3327
      %v3673 = vpop.f32.mrb[0].mxu0
      %v3674 = vadd.f32 0.0, %v3673
      %v3675 = vpop.f32.mrb[0].mxu0
      %v3676 = vpop.f32.mrb[0].mxu0
      %v3677 = vadd.f32 0.0, %v3676
      %v3678 = vpop.f32.mrb[0].mxu0
      %3679 = vmatprep.mubr.bf16.mxu0 %v3330
      %3680 = vmatmul.mubr.bf16.gmra.mrb[0].mxu0 %v3329
      %v3681 = vpop.f32.mrb[0].mxu0
      %v3682 = vadd.f32 0.0, %v3681
      %v3683 = vpop.f32.mrb[0].mxu0
      %v3684 = vpop.f32.mrb[0].mxu0
      %v3685 = vadd.f32 0.0, %v3684
      %v3686 = vpop.f32.mrb[0].mxu0
      %3687 = vmatprep.mubr.bf16.mxu0 %v3332
      %3688 = vmatmul.mubr.bf16.gmra.mrb[0].mxu0 %v3331
      %v3689 = vpop.f32.mrb[0].mxu0
      %v3690 = vadd.f32 0.0, %v3689
      %v3691 = vpop.f32.mrb[0].mxu0
      %v3692 = vpop.f32.mrb[0].mxu0
      %v3693 = vadd.f32 0.0, %v3692
      %v3694 = vpop.f32.mrb[0].mxu0
      %3695 = vmatprep.mubr.bf16.mxu0 %v3334
      %3696 = vmatmul.mubr.bf16.gmra.mrb[0].mxu0 %v3333
      %v3697 = vpop.f32.mrb[0].mxu0
      %v3698 = vadd.f32 0.0, %v3697
      %v3699 = vpop.f32.mrb[0].mxu0
      %v3700 = vpop.f32.mrb[0].mxu0
      %v3701 = vadd.f32 0.0, %v3700
      %v3702 = vpop.f32.mrb[0].mxu0
      %3703 = vmatprep.mubr.bf16.mxu0 %v3336
      %3704 = vmatmul.mubr.bf16.gmra.mrb[0].mxu0 %v3335
      %v3705 = vpop.f32.mrb[0].mxu0
      %v3706 = vadd.f32 0.0, %v3705
      %v3707 = vpop.f32.mrb[0].mxu0
      %v3708 = vpop.f32.mrb[0].mxu0
      %v3709 = vadd.f32 0.0, %v3708
      %v3710 = vpop.f32.mrb[0].mxu0
      %3711 = vmatprep.mubr.bf16.mxu0 %v3338
      %3712 = vmatmul.mubr.bf16.gmra.mrb[0].mxu0 %v3337
      %v3713 = vpop.f32.mrb[0].mxu0
      %v3714 = vadd.f32 0.0, %v3713
      %v3715 = vpop.f32.mrb[0].mxu0
      %v3716 = vpop.f32.mrb[0].mxu0
      %v3717 = vadd.f32 0.0, %v3716
      %v3718 = vpop.f32.mrb[0].mxu0
      %3719 = vmatprep.mubr.bf16.mxu0 %v3340
      %3720 = vmatmul.mubr.bf16.gmra.mrb[0].mxu0 %v3339
      %v3721 = vpop.f32.mrb[0].mxu0
      %v3722 = vadd.f32 0.0, %v3721
      %v3723 = vpop.f32.mrb[0].mxu0
      %v3724 = vpop.f32.mrb[0].mxu0
      %v3725 = vadd.f32 0.0, %v3724
      %v3726 = vpop.f32.mrb[0].mxu0
      %3727 = vmatprep.mubr.bf16.mxu0 %v3342
      %3728 = vmatmul.mubr.bf16.gmra.mrb[0].mxu0 %v3341
      %v3729 = vpop.f32.mrb[0].mxu0
      %v3730 = vadd.f32 0.0, %v3729
      %v3731 = vpop.f32.mrb[0].mxu0
      %v3732 = vpop.f32.mrb[0].mxu0
      %v3733 = vadd.f32 0.0, %v3732
      %v3734 = vpop.f32.mrb[0].mxu0
      %3735 = vmatprep.mubr.bf16.mxu0 %v3344
      %3736 = vmatmul.mubr.bf16.gmra.mrb[0].mxu0 %v3343
      %v3737 = vpop.f32.mrb[0].mxu0
      %v3738 = vadd.f32 0.0, %v3737
      %v3739 = vpop.f32.mrb[0].mxu0
      %v3740 = vpop.f32.mrb[0].mxu0
      %v3741 = vadd.f32 0.0, %v3740
      %v3742 = vpop.f32.mrb[0].mxu0
      %3743 = vmatprep.mubr.bf16.mxu0 %v3346
      %3744 = vmatmul.mubr.bf16.gmra.mrb[0].mxu0 %v3345
      %v3745 = vpop.f32.mrb[0].mxu0
      %v3746 = vadd.f32 0.0, %v3745
      %v3747 = vpop.f32.mrb[0].mxu0
      %v3748 = vpop.f32.mrb[0].mxu0
      %v3749 = vadd.f32 0.0, %v3748
      %v3750 = vpop.f32.mrb[0].mxu0
      %3751 = vmatprep.mubr.bf16.mxu0 %v3348
      %3752 = vmatmul.mubr.bf16.gmra.mrb[0].mxu0 %v3347
      %v3753 = vpop.f32.mrb[0].mxu0
      %v3754 = vadd.f32 0.0, %v3753
      %v3755 = vpop.f32.mrb[0].mxu0
      %v3756 = vpop.f32.mrb[0].mxu0
      %v3757 = vadd.f32 0.0, %v3756
      %v3758 = vpop.f32.mrb[0].mxu0
      %3759 = vmatprep.mubr.bf16.mxu0 %v3350
      %3760 = vmatmul.mubr.bf16.gmra.mrb[0].mxu0 %v3349
      %v3761 = vpop.f32.mrb[0].mxu0
      %v3762 = vadd.f32 0.0, %v3761
      %v3763 = vpop.f32.mrb[0].mxu0
      %v3764 = vpop.f32.mrb[0].mxu0
      %v3765 = vadd.f32 0.0, %v3764
      %v3766 = vpop.f32.mrb[0].mxu0
      %3767 = vdwg.mxu0
      %v3768 = vadd.f32 %v3223, %v3514
      %v3769 = vadd.f32 %v3224, %v3517
      %v3770 = vadd.f32 %v3225, %v3522
      %v3771 = vadd.f32 %v3226, %v3525
      %v3772 = vadd.f32 %v3227, %v3530
      %v3773 = vadd.f32 %v3228, %v3533
      %v3774 = vadd.f32 %v3229, %v3538
      %v3775 = vadd.f32 %v3230, %v3541
      %v3776 = vadd.f32 %v3231, %v3546
      %v3777 = vadd.f32 %v3232, %v3549
      %v3778 = vadd.f32 %v3233, %v3554
      %v3779 = vadd.f32 %v3234, %v3557
      %v3780 = vadd.f32 %v3235, %v3562
      %v3781 = vadd.f32 %v3236, %v3565
      %v3782 = vadd.f32 %v3237, %v3570
      %v3783 = vadd.f32 %v3238, %v3573
      %v3784 = vadd.f32 %v3239, %v3578
      %v3785 = vadd.f32 %v3240, %v3581
      %v3786 = vadd.f32 %v3241, %v3586
      %v3787 = vadd.f32 %v3242, %v3589
      %v3788 = vadd.f32 %v3243, %v3594
      %v3789 = vadd.f32 %v3244, %v3597
      %v3790 = vadd.f32 %v3245, %v3602
      %v3791 = vadd.f32 %v3246, %v3605
      %v3792 = vadd.f32 %v3247, %v3610
      %v3793 = vadd.f32 %v3248, %v3613
      %v3794 = vadd.f32 %v3249, %v3618
      %v3795 = vadd.f32 %v3250, %v3621
      %v3796 = vadd.f32 %v3251, %v3626
      %v3797 = vadd.f32 %v3252, %v3629
      %v3798 = vadd.f32 %v3253, %v3634
      %v3799 = vadd.f32 %v3254, %v3637
      %v3800 = vadd.f32 %v3255, %v3642
      %v3801 = vadd.f32 %v3256, %v3645
      %v3802 = vadd.f32 %v3257, %v3650
      %v3803 = vadd.f32 %v3258, %v3653
      %v3804 = vadd.f32 %v3259, %v3658
      %v3805 = vadd.f32 %v3260, %v3661
      %v3806 = vadd.f32 %v3261, %v3666
      %v3807 = vadd.f32 %v3262, %v3669
      %v3808 = vadd.f32 %v3263, %v3674
      %v3809 = vadd.f32 %v3264, %v3677
      %v3810 = vadd.f32 %v3265, %v3682
      %v3811 = vadd.f32 %v3266, %v3685
      %v3812 = vadd.f32 %v3267, %v3690
      %v3813 = vadd.f32 %v3268, %v3693
      %v3814 = vadd.f32 %v3269, %v3698
      %v3815 = vadd.f32 %v3270, %v3701
      %v3816 = vadd.f32 %v3271, %v3706
      %v3817 = vadd.f32 %v3272, %v3709
      %v3818 = vadd.f32 %v3273, %v3714
      %v3819 = vadd.f32 %v3274, %v3717
      %v3820 = vadd.f32 %v3275, %v3722
      %v3821 = vadd.f32 %v3276, %v3725
      %v3822 = vadd.f32 %v3277, %v3730
      %v3823 = vadd.f32 %v3278, %v3733
      %v3824 = vadd.f32 %v3279, %v3738
      %v3825 = vadd.f32 %v3280, %v3741
      %v3826 = vadd.f32 %v3281, %v3746
      %v3827 = vadd.f32 %v3282, %v3749
      %v3828 = vadd.f32 %v3283, %v3754
      %v3829 = vadd.f32 %v3284, %v3757
      %v3830 = vadd.f32 %v3285, %v3762
      %v3831 = vadd.f32 %v3286, %v3765
      %3832 = vst.msk [vmem:[#allocation4] sm:$0xff] %vm724, %v3768
      %3833 = vst.msk [vmem:[#allocation4 + $0x8] sm:$0xff] %vm724, %v3769
      %3834 = vst.msk [vmem:[#allocation4 + $0x10] sm:$0xff] %vm724, %v3770
      %3835 = vst.msk [vmem:[#allocation4 + $0x18] sm:$0xff] %vm724, %v3771
      %3836 = vst.msk [vmem:[#allocation4 + $0x20] sm:$0xff] %vm724, %v3772
      %3837 = vst.msk [vmem:[#allocation4 + $0x28] sm:$0xff] %vm724, %v3773
      %3838 = vst.msk [vmem:[#allocation4 + $0x30] sm:$0xff] %vm724, %v3774
      %3839 = vst.msk [vmem:[#allocation4 + $0x38] sm:$0xff] %vm724, %v3775
      %3840 = vst.msk [vmem:[#allocation4 + $0x40] sm:$0xff] %vm724, %v3776
      %3841 = vst.msk [vmem:[#allocation4 + $0x48] sm:$0xff] %vm724, %v3777
      %3842 = vst.msk [vmem:[#allocation4 + $0x50] sm:$0xff] %vm724, %v3778
      %3843 = vst.msk [vmem:[#allocation4 + $0x58] sm:$0xff] %vm724, %v3779
      %3844 = vst.msk [vmem:[#allocation4 + $0x60] sm:$0xff] %vm724, %v3780
      %3845 = vst.msk [vmem:[#allocation4 + $0x68] sm:$0xff] %vm724, %v3781
      %3846 = vst.msk [vmem:[#allocation4 + $0x70] sm:$0xff] %vm724, %v3782
      %3847 = vst.msk [vmem:[#allocation4 + $0x78] sm:$0xff] %vm724, %v3783
      %3848 = vst.msk [vmem:[#allocation4 + $0x80] sm:$0xff] %vm724, %v3784
      %3849 = vst.msk [vmem:[#allocation4 + $0x88] sm:$0xff] %vm724, %v3785
      %3850 = vst.msk [vmem:[#allocation4 + $0x90] sm:$0xff] %vm724, %v3786
      %3851 = vst.msk [vmem:[#allocation4 + $0x98] sm:$0xff] %vm724, %v3787
      %3852 = vst.msk [vmem:[#allocation4 + $0xa0] sm:$0xff] %vm724, %v3788
      %3853 = vst.msk [vmem:[#allocation4 + $0xa8] sm:$0xff] %vm724, %v3789
      %3854 = vst.msk [vmem:[#allocation4 + $0xb0] sm:$0xff] %vm724, %v3790
      %3855 = vst.msk [vmem:[#allocation4 + $0xb8] sm:$0xff] %vm724, %v3791
      %3856 = vst.msk [vmem:[#allocation4 + $0xc0] sm:$0xff] %vm724, %v3792
      %3857 = vst.msk [vmem:[#allocation4 + $0xc8] sm:$0xff] %vm724, %v3793
      %3858 = vst.msk [vmem:[#allocation4 + $0xd0] sm:$0xff] %vm724, %v3794
      %3859 = vst.msk [vmem:[#allocation4 + $0xd8] sm:$0xff] %vm724, %v3795
      %3860 = vst.msk [vmem:[#allocation4 + $0xe0] sm:$0xff] %vm724, %v3796
      %3861 = vst.msk [vmem:[#allocation4 + $0xe8] sm:$0xff] %vm724, %v3797
      %3862 = vst.msk [vmem:[#allocation4 + $0xf0] sm:$0xff] %vm724, %v3798
      %3863 = vst.msk [vmem:[#allocation4 + $0xf8] sm:$0xff] %vm724, %v3799
      %3864 = vst.msk [vmem:[#allocation4 + $0x100] sm:$0xff] %vm724, %v3800
      %3865 = vst.msk [vmem:[#allocation4 + $0x108] sm:$0xff] %vm724, %v3801
      %3866 = vst.msk [vmem:[#allocation4 + $0x110] sm:$0xff] %vm724, %v3802
      %3867 = vst.msk [vmem:[#allocation4 + $0x118] sm:$0xff] %vm724, %v3803
      %3868 = vst.msk [vmem:[#allocation4 + $0x120] sm:$0xff] %vm724, %v3804
      %3869 = vst.msk [vmem:[#allocation4 + $0x128] sm:$0xff] %vm724, %v3805
      %3870 = vst.msk [vmem:[#allocation4 + $0x130] sm:$0xff] %vm724, %v3806
      %3871 = vst.msk [vmem:[#allocation4 + $0x138] sm:$0xff] %vm724, %v3807
      %3872 = vst.msk [vmem:[#allocation4 + $0x140] sm:$0xff] %vm724, %v3808
      %3873 = vst.msk [vmem:[#allocation4 + $0x148] sm:$0xff] %vm724, %v3809
      %3874 = vst.msk [vmem:[#allocation4 + $0x150] sm:$0xff] %vm724, %v3810
      %3875 = vst.msk [vmem:[#allocation4 + $0x158] sm:$0xff] %vm724, %v3811
      %3876 = vst.msk [vmem:[#allocation4 + $0x160] sm:$0xff] %vm724, %v3812
      %3877 = vst.msk [vmem:[#allocation4 + $0x168] sm:$0xff] %vm724, %v3813
      %3878 = vst.msk [vmem:[#allocation4 + $0x170] sm:$0xff] %vm724, %v3814
      %3879 = vst.msk [vmem:[#allocation4 + $0x178] sm:$0xff] %vm724, %v3815
      %3880 = vst.msk [vmem:[#allocation4 + $0x180] sm:$0xff] %vm724, %v3816
      %3881 = vst.msk [vmem:[#allocation4 + $0x188] sm:$0xff] %vm724, %v3817
      %3882 = vst.msk [vmem:[#allocation4 + $0x190] sm:$0xff] %vm724, %v3818
      %3883 = vst.msk [vmem:[#allocation4 + $0x198] sm:$0xff] %vm724, %v3819
      %3884 = vst.msk [vmem:[#allocation4 + $0x1a0] sm:$0xff] %vm724, %v3820
      %3885 = vst.msk [vmem:[#allocation4 + $0x1a8] sm:$0xff] %vm724, %v3821
      %3886 = vst.msk [vmem:[#allocation4 + $0x1b0] sm:$0xff] %vm724, %v3822
      %3887 = vst.msk [vmem:[#allocation4 + $0x1b8] sm:$0xff] %vm724, %v3823
      %3888 = vst.msk [vmem:[#allocation4 + $0x1c0] sm:$0xff] %vm724, %v3824
      %3889 = vst.msk [vmem:[#allocation4 + $0x1c8] sm:$0xff] %vm724, %v3825
      %3890 = vst.msk [vmem:[#allocation4 + $0x1d0] sm:$0xff] %vm724, %v3826
      %3891 = vst.msk [vmem:[#allocation4 + $0x1d8] sm:$0xff] %vm724, %v3827
      %3892 = vst.msk [vmem:[#allocation4 + $0x1e0] sm:$0xff] %vm724, %v3828
      %3893 = vst.msk [vmem:[#allocation4 + $0x1e8] sm:$0xff] %vm724, %v3829
      %3894 = vst.msk [vmem:[#allocation4 + $0x1f0] sm:$0xff] %vm724, %v3830
      %3895 = vst.msk [vmem:[#allocation4 + $0x1f8] sm:$0xff] %vm724, %v3831
      %3896 = vst.msk [vmem:[#allocation2] sm:$0xff] %vm2774, %v1430
      %3897 = vst.msk [vmem:[#allocation2 + $0x8] sm:$0xff] %vm2774, %v1431
      %3898 = vst.msk [vmem:[#allocation2 + $0x10] sm:$0xff] %vm2774, %v1432
      %3899 = vst.msk [vmem:[#allocation2 + $0x18] sm:$0xff] %vm2774, %v1433
      %3900 = vst.msk [vmem:[#allocation2 + $0x20] sm:$0xff] %vm2774, %v1434
      %3901 = vst.msk [vmem:[#allocation2 + $0x28] sm:$0xff] %vm2774, %v1435
      %3902 = vst.msk [vmem:[#allocation2 + $0x30] sm:$0xff] %vm2774, %v1436
      %3903 = vst.msk [vmem:[#allocation2 + $0x38] sm:$0xff] %vm2774, %v1437
      %3904 = vst.msk [vmem:[#allocation2 + $0x40] sm:$0xff] %vm2774, %v1438
      %3905 = vst.msk [vmem:[#allocation2 + $0x48] sm:$0xff] %vm2774, %v1439
      %3906 = vst.msk [vmem:[#allocation2 + $0x50] sm:$0xff] %vm2774, %v1440
      %3907 = vst.msk [vmem:[#allocation2 + $0x58] sm:$0xff] %vm2774, %v1441
      %3908 = vst.msk [vmem:[#allocation2 + $0x60] sm:$0xff] %vm2774, %v1442
      %3909 = vst.msk [vmem:[#allocation2 + $0x68] sm:$0xff] %vm2774, %v1443
      %3910 = vst.msk [vmem:[#allocation2 + $0x70] sm:$0xff] %vm2774, %v1444
      %3911 = vst.msk [vmem:[#allocation2 + $0x78] sm:$0xff] %vm2774, %v1445
      %3912 = vst.msk [vmem:[#allocation2 + $0x80] sm:$0xff] %vm2774, %v1446
      %3913 = vst.msk [vmem:[#allocation2 + $0x88] sm:$0xff] %vm2774, %v1447
      %3914 = vst.msk [vmem:[#allocation2 + $0x90] sm:$0xff] %vm2774, %v1448
      %3915 = vst.msk [vmem:[#allocation2 + $0x98] sm:$0xff] %vm2774, %v1449
      %3916 = vst.msk [vmem:[#allocation2 + $0xa0] sm:$0xff] %vm2774, %v1450
      %3917 = vst.msk [vmem:[#allocation2 + $0xa8] sm:$0xff] %vm2774, %v1451
      %3918 = vst.msk [vmem:[#allocation2 + $0xb0] sm:$0xff] %vm2774, %v1452
      %3919 = vst.msk [vmem:[#allocation2 + $0xb8] sm:$0xff] %vm2774, %v1453
      %3920 = vst.msk [vmem:[#allocation2 + $0xc0] sm:$0xff] %vm2774, %v1454
      %3921 = vst.msk [vmem:[#allocation2 + $0xc8] sm:$0xff] %vm2774, %v1455
      %3922 = vst.msk [vmem:[#allocation2 + $0xd0] sm:$0xff] %vm2774, %v1456
      %3923 = vst.msk [vmem:[#allocation2 + $0xd8] sm:$0xff] %vm2774, %v1457
      %3924 = vst.msk [vmem:[#allocation2 + $0xe0] sm:$0xff] %vm2774, %v1458
      %3925 = vst.msk [vmem:[#allocation2 + $0xe8] sm:$0xff] %vm2774, %v1459
      %3926 = vst.msk [vmem:[#allocation2 + $0xf0] sm:$0xff] %vm2774, %v1460
      %3927 = vst.msk [vmem:[#allocation2 + $0xf8] sm:$0xff] %vm2774, %v1461
      %3928 = vst.msk [vmem:[#allocation2 + $0x100] sm:$0xff] %vm2774, %v1462
      %3929 = vst.msk [vmem:[#allocation2 + $0x108] sm:$0xff] %vm2774, %v1463
      %3930 = vst.msk [vmem:[#allocation2 + $0x110] sm:$0xff] %vm2774, %v1464
      %3931 = vst.msk [vmem:[#allocation2 + $0x118] sm:$0xff] %vm2774, %v1465
      %3932 = vst.msk [vmem:[#allocation2 + $0x120] sm:$0xff] %vm2774, %v1466
      %3933 = vst.msk [vmem:[#allocation2 + $0x128] sm:$0xff] %vm2774, %v1467
      %3934 = vst.msk [vmem:[#allocation2 + $0x130] sm:$0xff] %vm2774, %v1468
      %3935 = vst.msk [vmem:[#allocation2 + $0x138] sm:$0xff] %vm2774, %v1469
      %3936 = vst.msk [vmem:[#allocation2 + $0x140] sm:$0xff] %vm2774, %v1470
      %3937 = vst.msk [vmem:[#allocation2 + $0x148] sm:$0xff] %vm2774, %v1471
      %3938 = vst.msk [vmem:[#allocation2 + $0x150] sm:$0xff] %vm2774, %v1472
      %3939 = vst.msk [vmem:[#allocation2 + $0x158] sm:$0xff] %vm2774, %v1473
      %3940 = vst.msk [vmem:[#allocation2 + $0x160] sm:$0xff] %vm2774, %v1474
      %3941 = vst.msk [vmem:[#allocation2 + $0x168] sm:$0xff] %vm2774, %v1475
      %3942 = vst.msk [vmem:[#allocation2 + $0x170] sm:$0xff] %vm2774, %v1476
      %3943 = vst.msk [vmem:[#allocation2 + $0x178] sm:$0xff] %vm2774, %v1477
      %3944 = vst.msk [vmem:[#allocation2 + $0x180] sm:$0xff] %vm2774, %v1478
      %3945 = vst.msk [vmem:[#allocation2 + $0x188] sm:$0xff] %vm2774, %v1479
      %3946 = vst.msk [vmem:[#allocation2 + $0x190] sm:$0xff] %vm2774, %v1480
      %3947 = vst.msk [vmem:[#allocation2 + $0x198] sm:$0xff] %vm2774, %v1481
      %3948 = vst.msk [vmem:[#allocation2 + $0x1a0] sm:$0xff] %vm2774, %v1482
      %3949 = vst.msk [vmem:[#allocation2 + $0x1a8] sm:$0xff] %vm2774, %v1483
      %3950 = vst.msk [vmem:[#allocation2 + $0x1b0] sm:$0xff] %vm2774, %v1484
      %3951 = vst.msk [vmem:[#allocation2 + $0x1b8] sm:$0xff] %vm2774, %v1485
      %3952 = vst.msk [vmem:[#allocation2 + $0x1c0] sm:$0xff] %vm2774, %v1486
      %3953 = vst.msk [vmem:[#allocation2 + $0x1c8] sm:$0xff] %vm2774, %v1487
      %3954 = vst.msk [vmem:[#allocation2 + $0x1d0] sm:$0xff] %vm2774, %v1488
      %3955 = vst.msk [vmem:[#allocation2 + $0x1d8] sm:$0xff] %vm2774, %v1489
      %3956 = vst.msk [vmem:[#allocation2 + $0x1e0] sm:$0xff] %vm2774, %v1490
      %3957 = vst.msk [vmem:[#allocation2 + $0x1e8] sm:$0xff] %vm2774, %v1491
      %3958 = vst.msk [vmem:[#allocation2 + $0x1f0] sm:$0xff] %vm2774, %v1492
      %3959 = vst.msk [vmem:[#allocation2 + $0x1f8] sm:$0xff] %vm2774, %v1493
      // Predicated region
      $region37: #{mhsa_block_forward.4} parent=31 // pred_check
        %p3960 = pneg %p290
      $region38: #{mhsa_block_forward.4} parent=31 // pred_check_branch
        %3962 = sbr.rel (%p3960) target = $region40
      $region39: #{mhsa_block_forward.4} parent=31 // pred_region
        %v3963 = vld [vmem:[#allocation4] sm:$0xff]
        %v3964 = vld [vmem:[#allocation4 + $0x8] sm:$0xff]
        %v3965 = vld [vmem:[#allocation4 + $0x10] sm:$0xff]
        %v3966 = vld [vmem:[#allocation4 + $0x18] sm:$0xff]
        %v3967 = vld [vmem:[#allocation4 + $0x20] sm:$0xff]
        %v3968 = vld [vmem:[#allocation4 + $0x28] sm:$0xff]
        %v3969 = vld [vmem:[#allocation4 + $0x30] sm:$0xff]
        %v3970 = vld [vmem:[#allocation4 + $0x38] sm:$0xff]
        %v3971 = vld [vmem:[#allocation4 + $0x40] sm:$0xff]
        %v3972 = vld [vmem:[#allocation4 + $0x48] sm:$0xff]
        %v3973 = vld [vmem:[#allocation4 + $0x50] sm:$0xff]
        %v3974 = vld [vmem:[#allocation4 + $0x58] sm:$0xff]
        %v3975 = vld [vmem:[#allocation4 + $0x60] sm:$0xff]
        %v3976 = vld [vmem:[#allocation4 + $0x68] sm:$0xff]
        %v3977 = vld [vmem:[#allocation4 + $0x70] sm:$0xff]
        %v3978 = vld [vmem:[#allocation4 + $0x78] sm:$0xff]
        %v3979 = vld [vmem:[#allocation4 + $0x80] sm:$0xff]
        %v3980 = vld [vmem:[#allocation4 + $0x88] sm:$0xff]
        %v3981 = vld [vmem:[#allocation4 + $0x90] sm:$0xff]
        %v3982 = vld [vmem:[#allocation4 + $0x98] sm:$0xff]
        %v3983 = vld [vmem:[#allocation4 + $0xa0] sm:$0xff]
        %v3984 = vld [vmem:[#allocation4 + $0xa8] sm:$0xff]
        %v3985 = vld [vmem:[#allocation4 + $0xb0] sm:$0xff]
        %v3986 = vld [vmem:[#allocation4 + $0xb8] sm:$0xff]
        %v3987 = vld [vmem:[#allocation4 + $0xc0] sm:$0xff]
        %v3988 = vld [vmem:[#allocation4 + $0xc8] sm:$0xff]
        %v3989 = vld [vmem:[#allocation4 + $0xd0] sm:$0xff]
        %v3990 = vld [vmem:[#allocation4 + $0xd8] sm:$0xff]
        %v3991 = vld [vmem:[#allocation4 + $0xe0] sm:$0xff]
        %v3992 = vld [vmem:[#allocation4 + $0xe8] sm:$0xff]
        %v3993 = vld [vmem:[#allocation4 + $0xf0] sm:$0xff]
        %v3994 = vld [vmem:[#allocation4 + $0xf8] sm:$0xff]
        %v3995 = vld [vmem:[#allocation4 + $0x100] sm:$0xff]
        %v3996 = vld [vmem:[#allocation4 + $0x108] sm:$0xff]
        %v3997 = vld [vmem:[#allocation4 + $0x110] sm:$0xff]
        %v3998 = vld [vmem:[#allocation4 + $0x118] sm:$0xff]
        %v3999 = vld [vmem:[#allocation4 + $0x120] sm:$0xff]
        %v4000 = vld [vmem:[#allocation4 + $0x128] sm:$0xff]
        %v4001 = vld [vmem:[#allocation4 + $0x130] sm:$0xff]
        %v4002 = vld [vmem:[#allocation4 + $0x138] sm:$0xff]
        %v4003 = vld [vmem:[#allocation4 + $0x140] sm:$0xff]
        %v4004 = vld [vmem:[#allocation4 + $0x148] sm:$0xff]
        %v4005 = vld [vmem:[#allocation4 + $0x150] sm:$0xff]
        %v4006 = vld [vmem:[#allocation4 + $0x158] sm:$0xff]
        %v4007 = vld [vmem:[#allocation4 + $0x160] sm:$0xff]
        %v4008 = vld [vmem:[#allocation4 + $0x168] sm:$0xff]
        %v4009 = vld [vmem:[#allocation4 + $0x170] sm:$0xff]
        %v4010 = vld [vmem:[#allocation4 + $0x178] sm:$0xff]
        %v4011 = vld [vmem:[#allocation4 + $0x180] sm:$0xff]
        %v4012 = vld [vmem:[#allocation4 + $0x188] sm:$0xff]
        %v4013 = vld [vmem:[#allocation4 + $0x190] sm:$0xff]
        %v4014 = vld [vmem:[#allocation4 + $0x198] sm:$0xff]
        %v4015 = vld [vmem:[#allocation4 + $0x1a0] sm:$0xff]
        %v4016 = vld [vmem:[#allocation4 + $0x1a8] sm:$0xff]
        %v4017 = vld [vmem:[#allocation4 + $0x1b0] sm:$0xff]
        %v4018 = vld [vmem:[#allocation4 + $0x1b8] sm:$0xff]
        %v4019 = vld [vmem:[#allocation4 + $0x1c0] sm:$0xff]
        %v4020 = vld [vmem:[#allocation4 + $0x1c8] sm:$0xff]
        %v4021 = vld [vmem:[#allocation4 + $0x1d0] sm:$0xff]
        %v4022 = vld [vmem:[#allocation4 + $0x1d8] sm:$0xff]
        %v4023 = vld [vmem:[#allocation4 + $0x1e0] sm:$0xff]
        %v4024 = vld [vmem:[#allocation4 + $0x1e8] sm:$0xff]
        %v4025 = vld [vmem:[#allocation4 + $0x1f0] sm:$0xff]
        %v4026 = vld [vmem:[#allocation4 + $0x1f8] sm:$0xff]
        %v4027 = vld [vmem:[#allocation3] sm:$0xff]
        %v4028 = vld [vmem:[#allocation3 + $0x8] sm:$0xff]
        %v4029 = vld [vmem:[#allocation3 + $0x10] sm:$0xff]
        %v4030 = vld [vmem:[#allocation3 + $0x18] sm:$0xff]
        %v4031 = vld [vmem:[#allocation3 + $0x20] sm:$0xff]
        %v4032 = vld [vmem:[#allocation3 + $0x28] sm:$0xff]
        %v4033 = vld [vmem:[#allocation3 + $0x30] sm:$0xff]
        %v4034 = vld [vmem:[#allocation3 + $0x38] sm:$0xff]
        %v4035 = vld [vmem:[#allocation3 + $0x40] sm:$0xff]
        %v4036 = vld [vmem:[#allocation3 + $0x48] sm:$0xff]
        %v4037 = vld [vmem:[#allocation3 + $0x50] sm:$0xff]
        %v4038 = vld [vmem:[#allocation3 + $0x58] sm:$0xff]
        %v4039 = vld [vmem:[#allocation3 + $0x60] sm:$0xff]
        %v4040 = vld [vmem:[#allocation3 + $0x68] sm:$0xff]
        %v4041 = vld [vmem:[#allocation3 + $0x70] sm:$0xff]
        %v4042 = vld [vmem:[#allocation3 + $0x78] sm:$0xff]
        %v4043 = vld [vmem:[#allocation3 + $0x80] sm:$0xff]
        %v4044 = vld [vmem:[#allocation3 + $0x88] sm:$0xff]
        %v4045 = vld [vmem:[#allocation3 + $0x90] sm:$0xff]
        %v4046 = vld [vmem:[#allocation3 + $0x98] sm:$0xff]
        %v4047 = vld [vmem:[#allocation3 + $0xa0] sm:$0xff]
        %v4048 = vld [vmem:[#allocation3 + $0xa8] sm:$0xff]
        %v4049 = vld [vmem:[#allocation3 + $0xb0] sm:$0xff]
        %v4050 = vld [vmem:[#allocation3 + $0xb8] sm:$0xff]
        %v4051 = vld [vmem:[#allocation3 + $0xc0] sm:$0xff]
        %v4052 = vld [vmem:[#allocation3 + $0xc8] sm:$0xff]
        %v4053 = vld [vmem:[#allocation3 + $0xd0] sm:$0xff]
        %v4054 = vld [vmem:[#allocation3 + $0xd8] sm:$0xff]
        %v4055 = vld [vmem:[#allocation3 + $0xe0] sm:$0xff]
        %v4056 = vld [vmem:[#allocation3 + $0xe8] sm:$0xff]
        %v4057 = vld [vmem:[#allocation3 + $0xf0] sm:$0xff]
        %v4058 = vld [vmem:[#allocation3 + $0xf8] sm:$0xff]
        %v4059 = vld [vmem:[#allocation3 + $0x100] sm:$0xff]
        %v4060 = vld [vmem:[#allocation3 + $0x108] sm:$0xff]
        %v4061 = vld [vmem:[#allocation3 + $0x110] sm:$0xff]
        %v4062 = vld [vmem:[#allocation3 + $0x118] sm:$0xff]
        %v4063 = vld [vmem:[#allocation3 + $0x120] sm:$0xff]
        %v4064 = vld [vmem:[#allocation3 + $0x128] sm:$0xff]
        %v4065 = vld [vmem:[#allocation3 + $0x130] sm:$0xff]
        %v4066 = vld [vmem:[#allocation3 + $0x138] sm:$0xff]
        %v4067 = vld [vmem:[#allocation3 + $0x140] sm:$0xff]
        %v4068 = vld [vmem:[#allocation3 + $0x148] sm:$0xff]
        %v4069 = vld [vmem:[#allocation3 + $0x150] sm:$0xff]
        %v4070 = vld [vmem:[#allocation3 + $0x158] sm:$0xff]
        %v4071 = vld [vmem:[#allocation3 + $0x160] sm:$0xff]
        %v4072 = vld [vmem:[#allocation3 + $0x168] sm:$0xff]
        %v4073 = vld [vmem:[#allocation3 + $0x170] sm:$0xff]
        %v4074 = vld [vmem:[#allocation3 + $0x178] sm:$0xff]
        %v4075 = vld [vmem:[#allocation3 + $0x180] sm:$0xff]
        %v4076 = vld [vmem:[#allocation3 + $0x188] sm:$0xff]
        %v4077 = vld [vmem:[#allocation3 + $0x190] sm:$0xff]
        %v4078 = vld [vmem:[#allocation3 + $0x198] sm:$0xff]
        %v4079 = vld [vmem:[#allocation3 + $0x1a0] sm:$0xff]
        %v4080 = vld [vmem:[#allocation3 + $0x1a8] sm:$0xff]
        %v4081 = vld [vmem:[#allocation3 + $0x1b0] sm:$0xff]
        %v4082 = vld [vmem:[#allocation3 + $0x1b8] sm:$0xff]
        %v4083 = vld [vmem:[#allocation3 + $0x1c0] sm:$0xff]
        %v4084 = vld [vmem:[#allocation3 + $0x1c8] sm:$0xff]
        %v4085 = vld [vmem:[#allocation3 + $0x1d0] sm:$0xff]
        %v4086 = vld [vmem:[#allocation3 + $0x1d8] sm:$0xff]
        %v4087 = vld [vmem:[#allocation3 + $0x1e0] sm:$0xff]
        %v4088 = vld [vmem:[#allocation3 + $0x1e8] sm:$0xff]
        %v4089 = vld [vmem:[#allocation3 + $0x1f0] sm:$0xff]
        %v4090 = vld [vmem:[#allocation3 + $0x1f8] sm:$0xff]
        %v4091 = vrcp.pop %v4027
        %v4092 = vrcp.pop %v4028
        %v4093 = vrcp.pop %v4029
        %v4094 = vrcp.pop %v4030
        %v4095 = vrcp.pop %v4031
        %v4096 = vrcp.pop %v4032
        %v4097 = vrcp.pop %v4033
        %v4098 = vrcp.pop %v4034
        %v4099 = vrcp.pop %v4035
        %v4100 = vrcp.pop %v4036
        %v4101 = vrcp.pop %v4037
        %v4102 = vrcp.pop %v4038
        %v4103 = vrcp.pop %v4039
        %v4104 = vrcp.pop %v4040
        %v4105 = vrcp.pop %v4041
        %v4106 = vrcp.pop %v4042
        %v4107 = vrcp.pop %v4043
        %v4108 = vrcp.pop %v4044
        %v4109 = vrcp.pop %v4045
        %v4110 = vrcp.pop %v4046
        %v4111 = vrcp.pop %v4047
        %v4112 = vrcp.pop %v4048
        %v4113 = vrcp.pop %v4049
        %v4114 = vrcp.pop %v4050
        %v4115 = vrcp.pop %v4051
        %v4116 = vrcp.pop %v4052
        %v4117 = vrcp.pop %v4053
        %v4118 = vrcp.pop %v4054
        %v4119 = vrcp.pop %v4055
        %v4120 = vrcp.pop %v4056
        %v4121 = vrcp.pop %v4057
        %v4122 = vrcp.pop %v4058
        %v4123 = vrcp.pop %v4059
        %v4124 = vrcp.pop %v4060
        %v4125 = vrcp.pop %v4061
        %v4126 = vrcp.pop %v4062
        %v4127 = vrcp.pop %v4063
        %v4128 = vrcp.pop %v4064
        %v4129 = vrcp.pop %v4065
        %v4130 = vrcp.pop %v4066
        %v4131 = vrcp.pop %v4067
        %v4132 = vrcp.pop %v4068
        %v4133 = vrcp.pop %v4069
        %v4134 = vrcp.pop %v4070
        %v4135 = vrcp.pop %v4071
        %v4136 = vrcp.pop %v4072
        %v4137 = vrcp.pop %v4073
        %v4138 = vrcp.pop %v4074
        %v4139 = vrcp.pop %v4075
        %v4140 = vrcp.pop %v4076
        %v4141 = vrcp.pop %v4077
        %v4142 = vrcp.pop %v4078
        %v4143 = vrcp.pop %v4079
        %v4144 = vrcp.pop %v4080
        %v4145 = vrcp.pop %v4081
        %v4146 = vrcp.pop %v4082
        %v4147 = vrcp.pop %v4083
        %v4148 = vrcp.pop %v4084
        %v4149 = vrcp.pop %v4085
        %v4150 = vrcp.pop %v4086
        %v4151 = vrcp.pop %v4087
        %v4152 = vrcp.pop %v4088
        %v4153 = vrcp.pop %v4089
        %v4154 = vrcp.pop %v4090
        %4156 = vset.pattern.permute.xlu0 0
        %4157 = vperm.xlu0 %4156, %v4091
        %v4158 = vpop.permute.xlu0 %4157
        %4161 = vset.pattern.permute.xlu0 0
        %4162 = vperm.xlu0 %4161, %v4092
        %v4163 = vpop.permute.xlu0 %4162
        %4166 = vset.pattern.permute.xlu0 0
        %4167 = vperm.xlu0 %4166, %v4093
        %v4168 = vpop.permute.xlu0 %4167
        %4171 = vset.pattern.permute.xlu0 0
        %4172 = vperm.xlu0 %4171, %v4094
        %v4173 = vpop.permute.xlu0 %4172
        %4176 = vset.pattern.permute.xlu0 0
        %4177 = vperm.xlu0 %4176, %v4095
        %v4178 = vpop.permute.xlu0 %4177
        %4181 = vset.pattern.permute.xlu0 0
        %4182 = vperm.xlu0 %4181, %v4096
        %v4183 = vpop.permute.xlu0 %4182
        %4186 = vset.pattern.permute.xlu0 0
        %4187 = vperm.xlu0 %4186, %v4097
        %v4188 = vpop.permute.xlu0 %4187
        %4191 = vset.pattern.permute.xlu0 0
        %4192 = vperm.xlu0 %4191, %v4098
        %v4193 = vpop.permute.xlu0 %4192
        %4196 = vset.pattern.permute.xlu0 0
        %4197 = vperm.xlu0 %4196, %v4099
        %v4198 = vpop.permute.xlu0 %4197
        %4201 = vset.pattern.permute.xlu0 0
        %4202 = vperm.xlu0 %4201, %v4100
        %v4203 = vpop.permute.xlu0 %4202
        %4206 = vset.pattern.permute.xlu0 0
        %4207 = vperm.xlu0 %4206, %v4101
        %v4208 = vpop.permute.xlu0 %4207
        %4211 = vset.pattern.permute.xlu0 0
        %4212 = vperm.xlu0 %4211, %v4102
        %v4213 = vpop.permute.xlu0 %4212
        %4216 = vset.pattern.permute.xlu0 0
        %4217 = vperm.xlu0 %4216, %v4103
        %v4218 = vpop.permute.xlu0 %4217
        %4221 = vset.pattern.permute.xlu0 0
        %4222 = vperm.xlu0 %4221, %v4104
        %v4223 = vpop.permute.xlu0 %4222
        %4226 = vset.pattern.permute.xlu0 0
        %4227 = vperm.xlu0 %4226, %v4105
        %v4228 = vpop.permute.xlu0 %4227
        %4231 = vset.pattern.permute.xlu0 0
        %4232 = vperm.xlu0 %4231, %v4106
        %v4233 = vpop.permute.xlu0 %4232
        %4236 = vset.pattern.permute.xlu0 0
        %4237 = vperm.xlu0 %4236, %v4107
        %v4238 = vpop.permute.xlu0 %4237
        %4241 = vset.pattern.permute.xlu0 0
        %4242 = vperm.xlu0 %4241, %v4108
        %v4243 = vpop.permute.xlu0 %4242
        %4246 = vset.pattern.permute.xlu0 0
        %4247 = vperm.xlu0 %4246, %v4109
        %v4248 = vpop.permute.xlu0 %4247
        %4251 = vset.pattern.permute.xlu0 0
        %4252 = vperm.xlu0 %4251, %v4110
        %v4253 = vpop.permute.xlu0 %4252
        %4256 = vset.pattern.permute.xlu0 0
        %4257 = vperm.xlu0 %4256, %v4111
        %v4258 = vpop.permute.xlu0 %4257
        %4261 = vset.pattern.permute.xlu0 0
        %4262 = vperm.xlu0 %4261, %v4112
        %v4263 = vpop.permute.xlu0 %4262
        %4266 = vset.pattern.permute.xlu0 0
        %4267 = vperm.xlu0 %4266, %v4113
        %v4268 = vpop.permute.xlu0 %4267
        %4271 = vset.pattern.permute.xlu0 0
        %4272 = vperm.xlu0 %4271, %v4114
        %v4273 = vpop.permute.xlu0 %4272
        %4276 = vset.pattern.permute.xlu0 0
        %4277 = vperm.xlu0 %4276, %v4115
        %v4278 = vpop.permute.xlu0 %4277
        %4281 = vset.pattern.permute.xlu0 0
        %4282 = vperm.xlu0 %4281, %v4116
        %v4283 = vpop.permute.xlu0 %4282
        %4286 = vset.pattern.permute.xlu0 0
        %4287 = vperm.xlu0 %4286, %v4117
        %v4288 = vpop.permute.xlu0 %4287
        %4291 = vset.pattern.permute.xlu0 0
        %4292 = vperm.xlu0 %4291, %v4118
        %v4293 = vpop.permute.xlu0 %4292
        %4296 = vset.pattern.permute.xlu0 0
        %4297 = vperm.xlu0 %4296, %v4119
        %v4298 = vpop.permute.xlu0 %4297
        %4301 = vset.pattern.permute.xlu0 0
        %4302 = vperm.xlu0 %4301, %v4120
        %v4303 = vpop.permute.xlu0 %4302
        %4306 = vset.pattern.permute.xlu0 0
        %4307 = vperm.xlu0 %4306, %v4121
        %v4308 = vpop.permute.xlu0 %4307
        %4311 = vset.pattern.permute.xlu0 0
        %4312 = vperm.xlu0 %4311, %v4122
        %v4313 = vpop.permute.xlu0 %4312
        %4316 = vset.pattern.permute.xlu0 0
        %4317 = vperm.xlu0 %4316, %v4123
        %v4318 = vpop.permute.xlu0 %4317
        %4321 = vset.pattern.permute.xlu0 0
        %4322 = vperm.xlu0 %4321, %v4124
        %v4323 = vpop.permute.xlu0 %4322
        %4326 = vset.pattern.permute.xlu0 0
        %4327 = vperm.xlu0 %4326, %v4125
        %v4328 = vpop.permute.xlu0 %4327
        %4331 = vset.pattern.permute.xlu0 0
        %4332 = vperm.xlu0 %4331, %v4126
        %v4333 = vpop.permute.xlu0 %4332
        %4336 = vset.pattern.permute.xlu0 0
        %4337 = vperm.xlu0 %4336, %v4127
        %v4338 = vpop.permute.xlu0 %4337
        %4341 = vset.pattern.permute.xlu0 0
        %4342 = vperm.xlu0 %4341, %v4128
        %v4343 = vpop.permute.xlu0 %4342
        %4346 = vset.pattern.permute.xlu0 0
        %4347 = vperm.xlu0 %4346, %v4129
        %v4348 = vpop.permute.xlu0 %4347
        %4351 = vset.pattern.permute.xlu0 0
        %4352 = vperm.xlu0 %4351, %v4130
        %v4353 = vpop.permute.xlu0 %4352
        %4356 = vset.pattern.permute.xlu0 0
        %4357 = vperm.xlu0 %4356, %v4131
        %v4358 = vpop.permute.xlu0 %4357
        %4361 = vset.pattern.permute.xlu0 0
        %4362 = vperm.xlu0 %4361, %v4132
        %v4363 = vpop.permute.xlu0 %4362
        %4366 = vset.pattern.permute.xlu0 0
        %4367 = vperm.xlu0 %4366, %v4133
        %v4368 = vpop.permute.xlu0 %4367
        %4371 = vset.pattern.permute.xlu0 0
        %4372 = vperm.xlu0 %4371, %v4134
        %v4373 = vpop.permute.xlu0 %4372
        %4376 = vset.pattern.permute.xlu0 0
        %4377 = vperm.xlu0 %4376, %v4135
        %v4378 = vpop.permute.xlu0 %4377
        %4381 = vset.pattern.permute.xlu0 0
        %4382 = vperm.xlu0 %4381, %v4136
        %v4383 = vpop.permute.xlu0 %4382
        %4386 = vset.pattern.permute.xlu0 0
        %4387 = vperm.xlu0 %4386, %v4137
        %v4388 = vpop.permute.xlu0 %4387
        %4391 = vset.pattern.permute.xlu0 0
        %4392 = vperm.xlu0 %4391, %v4138
        %v4393 = vpop.permute.xlu0 %4392
        %4396 = vset.pattern.permute.xlu0 0
        %4397 = vperm.xlu0 %4396, %v4139
        %v4398 = vpop.permute.xlu0 %4397
        %4401 = vset.pattern.permute.xlu0 0
        %4402 = vperm.xlu0 %4401, %v4140
        %v4403 = vpop.permute.xlu0 %4402
        %4406 = vset.pattern.permute.xlu0 0
        %4407 = vperm.xlu0 %4406, %v4141
        %v4408 = vpop.permute.xlu0 %4407
        %4411 = vset.pattern.permute.xlu0 0
        %4412 = vperm.xlu0 %4411, %v4142
        %v4413 = vpop.permute.xlu0 %4412
        %4416 = vset.pattern.permute.xlu0 0
        %4417 = vperm.xlu0 %4416, %v4143
        %v4418 = vpop.permute.xlu0 %4417
        %4421 = vset.pattern.permute.xlu0 0
        %4422 = vperm.xlu0 %4421, %v4144
        %v4423 = vpop.permute.xlu0 %4422
        %4426 = vset.pattern.permute.xlu0 0
        %4427 = vperm.xlu0 %4426, %v4145
        %v4428 = vpop.permute.xlu0 %4427
        %4431 = vset.pattern.permute.xlu0 0
        %4432 = vperm.xlu0 %4431, %v4146
        %v4433 = vpop.permute.xlu0 %4432
        %4436 = vset.pattern.permute.xlu0 0
        %4437 = vperm.xlu0 %4436, %v4147
        %v4438 = vpop.permute.xlu0 %4437
        %4441 = vset.pattern.permute.xlu0 0
        %4442 = vperm.xlu0 %4441, %v4148
        %v4443 = vpop.permute.xlu0 %4442
        %4446 = vset.pattern.permute.xlu0 0
        %4447 = vperm.xlu0 %4446, %v4149
        %v4448 = vpop.permute.xlu0 %4447
        %4451 = vset.pattern.permute.xlu0 0
        %4452 = vperm.xlu0 %4451, %v4150
        %v4453 = vpop.permute.xlu0 %4452
        %4456 = vset.pattern.permute.xlu0 0
        %4457 = vperm.xlu0 %4456, %v4151
        %v4458 = vpop.permute.xlu0 %4457
        %4461 = vset.pattern.permute.xlu0 0
        %4462 = vperm.xlu0 %4461, %v4152
        %v4463 = vpop.permute.xlu0 %4462
        %4466 = vset.pattern.permute.xlu0 0
        %4467 = vperm.xlu0 %4466, %v4153
        %v4468 = vpop.permute.xlu0 %4467
        %4471 = vset.pattern.permute.xlu0 0
        %4472 = vperm.xlu0 %4471, %v4154
        %v4473 = vpop.permute.xlu0 %4472
        %v4475 = vmul.f32 %v3963, %v4158
        %v4476 = vmul.f32 %v3964, %v4163
        %v4477 = vmul.f32 %v3965, %v4168
        %v4478 = vmul.f32 %v3966, %v4173
        %v4479 = vmul.f32 %v3967, %v4178
        %v4480 = vmul.f32 %v3968, %v4183
        %v4481 = vmul.f32 %v3969, %v4188
        %v4482 = vmul.f32 %v3970, %v4193
        %v4483 = vmul.f32 %v3971, %v4198
        %v4484 = vmul.f32 %v3972, %v4203
        %v4485 = vmul.f32 %v3973, %v4208
        %v4486 = vmul.f32 %v3974, %v4213
        %v4487 = vmul.f32 %v3975, %v4218
        %v4488 = vmul.f32 %v3976, %v4223
        %v4489 = vmul.f32 %v3977, %v4228
        %v4490 = vmul.f32 %v3978, %v4233
        %v4491 = vmul.f32 %v3979, %v4238
        %v4492 = vmul.f32 %v3980, %v4243
        %v4493 = vmul.f32 %v3981, %v4248
        %v4494 = vmul.f32 %v3982, %v4253
        %v4495 = vmul.f32 %v3983, %v4258
        %v4496 = vmul.f32 %v3984, %v4263
        %v4497 = vmul.f32 %v3985, %v4268
        %v4498 = vmul.f32 %v3986, %v4273
        %v4499 = vmul.f32 %v3987, %v4278
        %v4500 = vmul.f32 %v3988, %v4283
        %v4501 = vmul.f32 %v3989, %v4288
        %v4502 = vmul.f32 %v3990, %v4293
        %v4503 = vmul.f32 %v3991, %v4298
        %v4504 = vmul.f32 %v3992, %v4303
        %v4505 = vmul.f32 %v3993, %v4308
        %v4506 = vmul.f32 %v3994, %v4313
        %v4507 = vmul.f32 %v3995, %v4318
        %v4508 = vmul.f32 %v3996, %v4323
        %v4509 = vmul.f32 %v3997, %v4328
        %v4510 = vmul.f32 %v3998, %v4333
        %v4511 = vmul.f32 %v3999, %v4338
        %v4512 = vmul.f32 %v4000, %v4343
        %v4513 = vmul.f32 %v4001, %v4348
        %v4514 = vmul.f32 %v4002, %v4353
        %v4515 = vmul.f32 %v4003, %v4358
        %v4516 = vmul.f32 %v4004, %v4363
        %v4517 = vmul.f32 %v4005, %v4368
        %v4518 = vmul.f32 %v4006, %v4373
        %v4519 = vmul.f32 %v4007, %v4378
        %v4520 = vmul.f32 %v4008, %v4383
        %v4521 = vmul.f32 %v4009, %v4388
        %v4522 = vmul.f32 %v4010, %v4393
        %v4523 = vmul.f32 %v4011, %v4398
        %v4524 = vmul.f32 %v4012, %v4403
        %v4525 = vmul.f32 %v4013, %v4408
        %v4526 = vmul.f32 %v4014, %v4413
        %v4527 = vmul.f32 %v4015, %v4418
        %v4528 = vmul.f32 %v4016, %v4423
        %v4529 = vmul.f32 %v4017, %v4428
        %v4530 = vmul.f32 %v4018, %v4433
        %v4531 = vmul.f32 %v4019, %v4438
        %v4532 = vmul.f32 %v4020, %v4443
        %v4533 = vmul.f32 %v4021, %v4448
        %v4534 = vmul.f32 %v4022, %v4453
        %v4535 = vmul.f32 %v4023, %v4458
        %v4536 = vmul.f32 %v4024, %v4463
        %v4537 = vmul.f32 %v4025, %v4468
        %v4538 = vmul.f32 %v4026, %v4473
        %v4539 = vpack.c.bf16 %v4476, %v4475
        %v4540 = vpack.c.bf16 %v4478, %v4477
        %v4541 = vpack.c.bf16 %v4480, %v4479
        %v4542 = vpack.c.bf16 %v4482, %v4481
        %v4543 = vpack.c.bf16 %v4484, %v4483
        %v4544 = vpack.c.bf16 %v4486, %v4485
        %v4545 = vpack.c.bf16 %v4488, %v4487
        %v4546 = vpack.c.bf16 %v4490, %v4489
        %v4547 = vpack.c.bf16 %v4492, %v4491
        %v4548 = vpack.c.bf16 %v4494, %v4493
        %v4549 = vpack.c.bf16 %v4496, %v4495
        %v4550 = vpack.c.bf16 %v4498, %v4497
        %v4551 = vpack.c.bf16 %v4500, %v4499
        %v4552 = vpack.c.bf16 %v4502, %v4501
        %v4553 = vpack.c.bf16 %v4504, %v4503
        %v4554 = vpack.c.bf16 %v4506, %v4505
        %v4555 = vpack.c.bf16 %v4508, %v4507
        %v4556 = vpack.c.bf16 %v4510, %v4509
        %v4557 = vpack.c.bf16 %v4512, %v4511
        %v4558 = vpack.c.bf16 %v4514, %v4513
        %v4559 = vpack.c.bf16 %v4516, %v4515
        %v4560 = vpack.c.bf16 %v4518, %v4517
        %v4561 = vpack.c.bf16 %v4520, %v4519
        %v4562 = vpack.c.bf16 %v4522, %v4521
        %v4563 = vpack.c.bf16 %v4524, %v4523
        %v4564 = vpack.c.bf16 %v4526, %v4525
        %v4565 = vpack.c.bf16 %v4528, %v4527
        %v4566 = vpack.c.bf16 %v4530, %v4529
        %v4567 = vpack.c.bf16 %v4532, %v4531
        %v4568 = vpack.c.bf16 %v4534, %v4533
        %v4569 = vpack.c.bf16 %v4536, %v4535
        %v4570 = vpack.c.bf16 %v4538, %v4537
        %v4603 = vunpack.c.l.b16 %v4539
        %v4604 = vunpack.c.h.b16 %v4539
        %v4605 = vunpack.c.l.b16 %v4540
        %v4606 = vunpack.c.h.b16 %v4540
        %v4607 = vunpack.c.l.b16 %v4541
        %v4608 = vunpack.c.h.b16 %v4541
        %v4609 = vunpack.c.l.b16 %v4542
        %v4610 = vunpack.c.h.b16 %v4542
        %v4611 = vunpack.c.l.b16 %v4543
        %v4612 = vunpack.c.h.b16 %v4543
        %v4613 = vunpack.c.l.b16 %v4544
        %v4614 = vunpack.c.h.b16 %v4544
        %v4615 = vunpack.c.l.b16 %v4545
        %v4616 = vunpack.c.h.b16 %v4545
        %v4617 = vunpack.c.l.b16 %v4546
        %v4618 = vunpack.c.h.b16 %v4546
        %v4619 = vunpack.c.l.b16 %v4547
        %v4620 = vunpack.c.h.b16 %v4547
        %v4621 = vunpack.c.l.b16 %v4548
        %v4622 = vunpack.c.h.b16 %v4548
        %v4623 = vunpack.c.l.b16 %v4549
        %v4624 = vunpack.c.h.b16 %v4549
        %v4625 = vunpack.c.l.b16 %v4550
        %v4626 = vunpack.c.h.b16 %v4550
        %v4627 = vunpack.c.l.b16 %v4551
        %v4628 = vunpack.c.h.b16 %v4551
        %v4629 = vunpack.c.l.b16 %v4552
        %v4630 = vunpack.c.h.b16 %v4552
        %v4631 = vunpack.c.l.b16 %v4553
        %v4632 = vunpack.c.h.b16 %v4553
        %v4633 = vunpack.c.l.b16 %v4554
        %v4634 = vunpack.c.h.b16 %v4554
        %v4635 = vunpack.c.l.b16 %v4555
        %v4636 = vunpack.c.h.b16 %v4555
        %v4637 = vunpack.c.l.b16 %v4556
        %v4638 = vunpack.c.h.b16 %v4556
        %v4639 = vunpack.c.l.b16 %v4557
        %v4640 = vunpack.c.h.b16 %v4557
        %v4641 = vunpack.c.l.b16 %v4558
        %v4642 = vunpack.c.h.b16 %v4558
        %v4643 = vunpack.c.l.b16 %v4559
        %v4644 = vunpack.c.h.b16 %v4559
        %v4645 = vunpack.c.l.b16 %v4560
        %v4646 = vunpack.c.h.b16 %v4560
        %v4647 = vunpack.c.l.b16 %v4561
        %v4648 = vunpack.c.h.b16 %v4561
        %v4649 = vunpack.c.l.b16 %v4562
        %v4650 = vunpack.c.h.b16 %v4562
        %v4651 = vunpack.c.l.b16 %v4563
        %v4652 = vunpack.c.h.b16 %v4563
        %v4653 = vunpack.c.l.b16 %v4564
        %v4654 = vunpack.c.h.b16 %v4564
        %v4655 = vunpack.c.l.b16 %v4565
        %v4656 = vunpack.c.h.b16 %v4565
        %v4657 = vunpack.c.l.b16 %v4566
        %v4658 = vunpack.c.h.b16 %v4566
        %v4659 = vunpack.c.l.b16 %v4567
        %v4660 = vunpack.c.h.b16 %v4567
        %v4661 = vunpack.c.l.b16 %v4568
        %v4662 = vunpack.c.h.b16 %v4568
        %v4663 = vunpack.c.l.b16 %v4569
        %v4664 = vunpack.c.h.b16 %v4569
        %v4665 = vunpack.c.l.b16 %v4570
        %v4666 = vunpack.c.h.b16 %v4570
        %v4667 = vpack.c.b16 %v4603, %v4603
        %v4668 = vpack.c.b16 %v4604, %v4604
        %v4669 = vpack.c.b16 %v4605, %v4605
        %v4670 = vpack.c.b16 %v4606, %v4606
        %v4671 = vpack.c.b16 %v4607, %v4607
        %v4672 = vpack.c.b16 %v4608, %v4608
        %v4673 = vpack.c.b16 %v4609, %v4609
        %v4674 = vpack.c.b16 %v4610, %v4610
        %v4675 = vpack.c.b16 %v4611, %v4611
        %v4676 = vpack.c.b16 %v4612, %v4612
        %v4677 = vpack.c.b16 %v4613, %v4613
        %v4678 = vpack.c.b16 %v4614, %v4614
        %v4679 = vpack.c.b16 %v4615, %v4615
        %v4680 = vpack.c.b16 %v4616, %v4616
        %v4681 = vpack.c.b16 %v4617, %v4617
        %v4682 = vpack.c.b16 %v4618, %v4618
        %v4683 = vpack.c.b16 %v4619, %v4619
        %v4684 = vpack.c.b16 %v4620, %v4620
        %v4685 = vpack.c.b16 %v4621, %v4621
        %v4686 = vpack.c.b16 %v4622, %v4622
        %v4687 = vpack.c.b16 %v4623, %v4623
        %v4688 = vpack.c.b16 %v4624, %v4624
        %v4689 = vpack.c.b16 %v4625, %v4625
        %v4690 = vpack.c.b16 %v4626, %v4626
        %v4691 = vpack.c.b16 %v4627, %v4627
        %v4692 = vpack.c.b16 %v4628, %v4628
        %v4693 = vpack.c.b16 %v4629, %v4629
        %v4694 = vpack.c.b16 %v4630, %v4630
        %v4695 = vpack.c.b16 %v4631, %v4631
        %v4696 = vpack.c.b16 %v4632, %v4632
        %v4697 = vpack.c.b16 %v4633, %v4633
        %v4698 = vpack.c.b16 %v4634, %v4634
        %v4699 = vpack.c.b16 %v4635, %v4635
        %v4700 = vpack.c.b16 %v4636, %v4636
        %v4701 = vpack.c.b16 %v4637, %v4637
        %v4702 = vpack.c.b16 %v4638, %v4638
        %v4703 = vpack.c.b16 %v4639, %v4639
        %v4704 = vpack.c.b16 %v4640, %v4640
        %v4705 = vpack.c.b16 %v4641, %v4641
        %v4706 = vpack.c.b16 %v4642, %v4642
        %v4707 = vpack.c.b16 %v4643, %v4643
        %v4708 = vpack.c.b16 %v4644, %v4644
        %v4709 = vpack.c.b16 %v4645, %v4645
        %v4710 = vpack.c.b16 %v4646, %v4646
        %v4711 = vpack.c.b16 %v4647, %v4647
        %v4712 = vpack.c.b16 %v4648, %v4648
        %v4713 = vpack.c.b16 %v4649, %v4649
        %v4714 = vpack.c.b16 %v4650, %v4650
        %v4715 = vpack.c.b16 %v4651, %v4651
        %v4716 = vpack.c.b16 %v4652, %v4652
        %v4717 = vpack.c.b16 %v4653, %v4653
        %v4718 = vpack.c.b16 %v4654, %v4654
        %v4719 = vpack.c.b16 %v4655, %v4655
        %v4720 = vpack.c.b16 %v4656, %v4656
        %v4721 = vpack.c.b16 %v4657, %v4657
        %v4722 = vpack.c.b16 %v4658, %v4658
        %v4723 = vpack.c.b16 %v4659, %v4659
        %v4724 = vpack.c.b16 %v4660, %v4660
        %v4725 = vpack.c.b16 %v4661, %v4661
        %v4726 = vpack.c.b16 %v4662, %v4662
        %v4727 = vpack.c.b16 %v4663, %v4663
        %v4728 = vpack.c.b16 %v4664, %v4664
        %v4729 = vpack.c.b16 %v4665, %v4665
        %v4730 = vpack.c.b16 %v4666, %v4666
        %vm4795 = vcmask 125952
        %4796 = vst.msk [vmem:[%s287] sm:$0xf] %vm4795, %v4667
        %4797 = vst.msk [vmem:[%s287 + $0x4] sm:$0xf] %vm4795, %v4668
        %4798 = vst.msk [vmem:[%s287 + $0x8] sm:$0xf] %vm4795, %v4669
        %4799 = vst.msk [vmem:[%s287 + $0xc] sm:$0xf] %vm4795, %v4670
        %4800 = vst.msk [vmem:[%s287 + $0x10] sm:$0xf] %vm4795, %v4671
        %4801 = vst.msk [vmem:[%s287 + $0x14] sm:$0xf] %vm4795, %v4672
        %4802 = vst.msk [vmem:[%s287 + $0x18] sm:$0xf] %vm4795, %v4673
        %4803 = vst.msk [vmem:[%s287 + $0x1c] sm:$0xf] %vm4795, %v4674
        %4804 = vst.msk [vmem:[%s287 + $0x20] sm:$0xf] %vm4795, %v4675
        %4805 = vst.msk [vmem:[%s287 + $0x24] sm:$0xf] %vm4795, %v4676
        %4806 = vst.msk [vmem:[%s287 + $0x28] sm:$0xf] %vm4795, %v4677
        %4807 = vst.msk [vmem:[%s287 + $0x2c] sm:$0xf] %vm4795, %v4678
        %4808 = vst.msk [vmem:[%s287 + $0x30] sm:$0xf] %vm4795, %v4679
        %4809 = vst.msk [vmem:[%s287 + $0x34] sm:$0xf] %vm4795, %v4680
        %4810 = vst.msk [vmem:[%s287 + $0x38] sm:$0xf] %vm4795, %v4681
        %4811 = vst.msk [vmem:[%s287 + $0x3c] sm:$0xf] %vm4795, %v4682
        %4812 = vst.msk [vmem:[%s287 + $0x40] sm:$0xf] %vm4795, %v4683
        %4813 = vst.msk [vmem:[%s287 + $0x44] sm:$0xf] %vm4795, %v4684
        %4814 = vst.msk [vmem:[%s287 + $0x48] sm:$0xf] %vm4795, %v4685
        %4815 = vst.msk [vmem:[%s287 + $0x4c] sm:$0xf] %vm4795, %v4686
        %4816 = vst.msk [vmem:[%s287 + $0x50] sm:$0xf] %vm4795, %v4687
        %4817 = vst.msk [vmem:[%s287 + $0x54] sm:$0xf] %vm4795, %v4688
        %4818 = vst.msk [vmem:[%s287 + $0x58] sm:$0xf] %vm4795, %v4689
        %4819 = vst.msk [vmem:[%s287 + $0x5c] sm:$0xf] %vm4795, %v4690
        %4820 = vst.msk [vmem:[%s287 + $0x60] sm:$0xf] %vm4795, %v4691
        %4821 = vst.msk [vmem:[%s287 + $0x64] sm:$0xf] %vm4795, %v4692
        %4822 = vst.msk [vmem:[%s287 + $0x68] sm:$0xf] %vm4795, %v4693
        %4823 = vst.msk [vmem:[%s287 + $0x6c] sm:$0xf] %vm4795, %v4694
        %4824 = vst.msk [vmem:[%s287 + $0x70] sm:$0xf] %vm4795, %v4695
        %4825 = vst.msk [vmem:[%s287 + $0x74] sm:$0xf] %vm4795, %v4696
        %4826 = vst.msk [vmem:[%s287 + $0x78] sm:$0xf] %vm4795, %v4697
        %4827 = vst.msk [vmem:[%s287 + $0x7c] sm:$0xf] %vm4795, %v4698
        %4828 = vst.msk [vmem:[%s287 + $0x80] sm:$0xf] %vm4795, %v4699
        %4829 = vst.msk [vmem:[%s287 + $0x84] sm:$0xf] %vm4795, %v4700
        %4830 = vst.msk [vmem:[%s287 + $0x88] sm:$0xf] %vm4795, %v4701
        %4831 = vst.msk [vmem:[%s287 + $0x8c] sm:$0xf] %vm4795, %v4702
        %4832 = vst.msk [vmem:[%s287 + $0x90] sm:$0xf] %vm4795, %v4703
        %4833 = vst.msk [vmem:[%s287 + $0x94] sm:$0xf] %vm4795, %v4704
        %4834 = vst.msk [vmem:[%s287 + $0x98] sm:$0xf] %vm4795, %v4705
        %4835 = vst.msk [vmem:[%s287 + $0x9c] sm:$0xf] %vm4795, %v4706
        %4836 = vst.msk [vmem:[%s287 + $0xa0] sm:$0xf] %vm4795, %v4707
        %4837 = vst.msk [vmem:[%s287 + $0xa4] sm:$0xf] %vm4795, %v4708
        %4838 = vst.msk [vmem:[%s287 + $0xa8] sm:$0xf] %vm4795, %v4709
        %4839 = vst.msk [vmem:[%s287 + $0xac] sm:$0xf] %vm4795, %v4710
        %4840 = vst.msk [vmem:[%s287 + $0xb0] sm:$0xf] %vm4795, %v4711
        %4841 = vst.msk [vmem:[%s287 + $0xb4] sm:$0xf] %vm4795, %v4712
        %4842 = vst.msk [vmem:[%s287 + $0xb8] sm:$0xf] %vm4795, %v4713
        %4843 = vst.msk [vmem:[%s287 + $0xbc] sm:$0xf] %vm4795, %v4714
        %4844 = vst.msk [vmem:[%s287 + $0xc0] sm:$0xf] %vm4795, %v4715
        %4845 = vst.msk [vmem:[%s287 + $0xc4] sm:$0xf] %vm4795, %v4716
        %4846 = vst.msk [vmem:[%s287 + $0xc8] sm:$0xf] %vm4795, %v4717
        %4847 = vst.msk [vmem:[%s287 + $0xcc] sm:$0xf] %vm4795, %v4718
        %4848 = vst.msk [vmem:[%s287 + $0xd0] sm:$0xf] %vm4795, %v4719
        %4849 = vst.msk [vmem:[%s287 + $0xd4] sm:$0xf] %vm4795, %v4720
        %4850 = vst.msk [vmem:[%s287 + $0xd8] sm:$0xf] %vm4795, %v4721
        %4851 = vst.msk [vmem:[%s287 + $0xdc] sm:$0xf] %vm4795, %v4722
        %4852 = vst.msk [vmem:[%s287 + $0xe0] sm:$0xf] %vm4795, %v4723
        %4853 = vst.msk [vmem:[%s287 + $0xe4] sm:$0xf] %vm4795, %v4724
        %4854 = vst.msk [vmem:[%s287 + $0xe8] sm:$0xf] %vm4795, %v4725
        %4855 = vst.msk [vmem:[%s287 + $0xec] sm:$0xf] %vm4795, %v4726
        %4856 = vst.msk [vmem:[%s287 + $0xf0] sm:$0xf] %vm4795, %v4727
        %4857 = vst.msk [vmem:[%s287 + $0xf4] sm:$0xf] %vm4795, %v4728
        %4858 = vst.msk [vmem:[%s287 + $0xf8] sm:$0xf] %vm4795, %v4729
        %4859 = vst.msk [vmem:[%s287 + $0xfc] sm:$0xf] %vm4795, %v4730
      $region40: #{mhsa_block_forward.4} parent=31 // pred_fallthru
        _
      %s4860 = smul.u32 64, %s20
      %p4861 = scmp.lt.s32.totalorder %s19, 1
      %s4862 = scalar_select %p4861, %s19, 1
      %p4863 = scmp.lt.s32.totalorder %s4860, 127
      %s4864 = scalar_select %p4863, %s4860, 127
      %s4865 = smul.addr %s4862, 128
      %s4866 = sadd.s32 %s4864, %s4865
      %s4867 = smul.addr %s4866, 4
      %s4868 = scalar_lea.vmem %s3, %s4867
      // Predicated region
      $region41: #{mhsa_block_forward.4} parent=31 // pred_check
        %p4869 = pneg %p137
      $region42: #{mhsa_block_forward.4} parent=31 // pred_check_branch
        %4871 = sbr.rel (%p4869) target = $region44
      $region43: #{mhsa_block_forward.4} parent=31 // pred_region
        %s4872 = smul.u32 64, %s20
      $region44: #{mhsa_block_forward.4} parent=31 // pred_fallthru
        _
    $region32: #{mhsa_block_forward.4} parent=5 // pred_fallthru
      _
    %p4873 = scmp.le.s32.totalorder 2, %s9
    // Predicated region
    $region45: #{mhsa_block_forward.4} parent=5 // pred_check
      %p4874 = pneg %p4873
    $region46: #{mhsa_block_forward.4} parent=5 // pred_check_branch
      %4876 = sbr.rel (%p4874) target = $region48
    $region47: #{mhsa_block_forward.4} parent=5 // pred_region
      %s4877 = ssub.s32 %s9, 2
      // Predicated region
      $region49: #{mhsa_block_forward.4} parent=47 // pred_check
        %p4878 = pneg %p143
      $region50: #{mhsa_block_forward.4} parent=47 // pred_check_branch
        %4880 = sbr.rel (%p4878) target = $region52
      $region51: #{mhsa_block_forward.4} parent=47 // pred_region
        %s4881 = smul.u32 64, %s23
        %p4882 = scmp.lt.s32.totalorder %s22, 1
        %s4883 = scalar_select %p4882, %s22, 1
        %p4884 = scmp.lt.s32.totalorder %s4881, 127
        %s4885 = scalar_select %p4884, %s4881, 127
        %s4886 = smul.addr %s4883, 128
        %s4887 = sadd.s32 %s4885, %s4886
        %s4888 = smul.addr %s4887, 4
        %s4889 = scalar_lea.vmem %s3, %s4888
      $region52: #{mhsa_block_forward.4} parent=47 // pred_fallthru
        _
    $region48: #{mhsa_block_forward.4} parent=5 // pred_fallthru
      _
  $region6: #{mhsa_block_forward.4} parent=0 // loop_footer
    %s13 = sadd.s32 1, %s9
  $region7: #{mhsa_block_forward.4} parent=0 // loop_footer_branch
    %8 = sbr.rel target = $region3
  $region8: #{mhsa_block_forward.4} parent=0 // loop_exit
    _

</llo_original>
